<compile_context>
chip_gen: v5e
topology: v5e:2x2
jax: 0.10.0
libtpu: 0.0.40
codegen_flags: <defaults>
</compile_context>

<pallas_src>
import functools

import jax
import jax.numpy as jnp
from jax.experimental import pallas as pl
from jax.experimental.pallas import tpu as pltpu


# ----------------------------- model dimensions -----------------------------

NUM_CLASS = 2          # "TwoClassClassifier"
C_IN = 3
H = W = 32             # small stand-in for the 260x260 input of the real model
K_TAPS = 9             # 3x3 convs
K_PAD = 32             # stem im2col K padded 27 -> 32
C_STEM = 32            # logical stem channels
C_STEM_P = 128         # stem channels zero-padded to the 128-lane grain
C_EXP = 128            # MBConv expand channels (lane dense)
C_SE = 8
C_HEAD = 128


# ----------------------------- the fused Pallas kernel -----------------------------

def _fused_kernel(patches_ref, masks_ref, stem_w_ref, stem_b_ref,
                  exp_w_ref, exp_b_ref, dw_w_ref, dw_b_ref,
                  se_rw_ref, se_rb_ref, se_ew_ref, se_eb_ref,
                  proj_w_ref, proj_b_ref, head_w_ref, head_b_ref,
                  fc_w_ref, fc_b_ref, o_ref, x_res_ref, *, wo):
    """Whole network in one kernel; only HBM traffic is the im2col patches / weights in and the
    (1, NUM_CLASS) probability out."""
    f32, bf16 = jnp.float32, jnp.bfloat16
    hw = patches_ref.shape[0]

    # ---- stem: im2col matmul (ImageNet normalize folded into weights) + bias + SiLU ----
    st = jnp.dot(patches_ref[...].astype(bf16), stem_w_ref[...].astype(bf16),
                 preferred_element_type=f32) + stem_b_ref[...]
    st = st * jax.nn.sigmoid(st)                               # (hw, C_STEM_P) f32
    xb = st.astype(bf16)
    x_res_ref[...] = xb      # park for the residual read later; bounds the f32 live range

    # ---- expand 1x1 + SiLU (MXU, bf16 operands, f32 accumulate) ----
    y = jnp.dot(xb, exp_w_ref[...].astype(bf16),
                preferred_element_type=f32) + exp_b_ref[...]
    y = y * jax.nn.sigmoid(y)                                  # (hw, C_EXP) f32

    # ---- depthwise 3x3 SAME via XLU rolls + precomputed border masks ----
    bm = masks_ref[...]                                        # (hw, 4) f32 {0,1}
    row_m = {-1: bm[:, 0:1], 0: None, 1: bm[:, 1:2]}           # not-first-row / not-last-row
    col_m = {-1: bm[:, 2:3], 0: None, 1: bm[:, 3:4]}           # not-first-col / not-last-col
    dww = dw_w_ref[...]                                        # (9, C_EXP), hoisted load
    acc = jnp.zeros_like(y)
    k = 0
    for dy in (-1, 0, 1):
        for dx in (-1, 0, 1):
            off = dy * wo + dx
            tap = y if off == 0 else pltpu.roll(y, shift=(-off) % hw, axis=0)
            m = row_m[dy]
            if col_m[dx] is not None:
                m = col_m[dx] if m is None else m * col_m[dx]
            if m is not None:
                tap = tap * m                                  # zero wrapped neighbors
            acc = acc + tap * dww[k:k + 1, :]                  # unrolled FMA chain
            k += 1
    acc = acc + dw_b_ref[...]
    dw = acc * jax.nn.sigmoid(acc)                             # (hw, C_EXP), SiLU

    # ---- squeeze-excite on VPU/XLU (no MXU pushes, no <128-lane masked layouts) ----
    pooled = jnp.mean(dw, axis=0, keepdims=True)               # (1, C_EXP)
    s = jnp.sum(se_rw_ref[...] * pooled, axis=1, keepdims=True) + se_rb_ref[...]   # (C_SE, 1)
    s = s * jax.nn.sigmoid(s)
    gate = jnp.sum(se_ew_ref[...] * s, axis=0, keepdims=True) + se_eb_ref[...]     # (1, C_EXP)
    gate = jax.nn.sigmoid(gate)
    dw = dw * gate

    # ---- project 1x1 + residual (re-read stem activation from VMEM, upcast bf16->f32) ----
    proj = (jnp.dot(dw.astype(bf16), proj_w_ref[...].astype(bf16),
                    preferred_element_type=f32)
            + proj_b_ref[...] + x_res_ref[...].astype(f32))    # (hw, C_STEM_P)

    # ---- head 1x1 + SiLU ----
    hd = jnp.dot(proj.astype(bf16), head_w_ref[...].astype(bf16),
                 preferred_element_type=f32) + head_b_ref[...]
    hd = hd * jax.nn.sigmoid(hd)                               # (hw, C_HEAD)

    # ---- global average pool + classifier + sigmoid ----
    pooled2 = jnp.mean(hd, axis=0, keepdims=True)              # (1, C_HEAD)
    logits = jnp.dot(pooled2, fc_w_ref[...], preferred_element_type=f32) + fc_b_ref[...]
    o_ref[...] = jax.nn.sigmoid(logits)


# ----------------------------- pallas_call wrapper -----------------------------

_VMEM = functools.partial(pl.BlockSpec, memory_space=pltpu.MemorySpace.VMEM)


def fused_forward(patches, masks, p, *, wo):
    hw = patches.shape[0]
    kern = functools.partial(_fused_kernel, wo=wo)
    n_in = 18
    return pl.pallas_call(
        kern,
        out_shape=jax.ShapeDtypeStruct((1, NUM_CLASS), jnp.float32),
        in_specs=[_VMEM() for _ in range(n_in)],
        out_specs=_VMEM(),
        scratch_shapes=[pltpu.VMEM((hw, C_STEM_P), jnp.bfloat16)],   # parked residual operand
        compiler_params=pltpu.CompilerParams(vmem_limit_bytes=32 * 1024 * 1024),
    )(patches, masks,
      p["stem_w"], p["stem_b"], p["exp_w"], p["exp_b"], p["dw_w"], p["dw_b"],
      p["se_red_w"], p["se_red_b"], p["se_exp_w"], p["se_exp_b"],
      p["proj_w"], p["proj_b"], p["head_w"], p["head_b"], p["fc_w"], p["fc_b"])


# ----------------------------- JAX glue (im2col + masks) -----------------------------

def stem_patches(img_chw, mean):
    """Raw (C, H, W) image -> (Ho*Wo, K_PAD) im2col patches for the 3x3/s2 stem.  The border is
    padded with the per-channel ImageNet mean so that, with the normalization folded into the
    stem weights, the result is exactly 'normalize -> zero-pad -> conv'."""
    c, h, w = img_chw.shape
    x = jnp.transpose(img_chw, (1, 2, 0))                      # (H, W, C)
    padp, k, stride = 1, 3, 2
    hp, wp = h + 2 * padp, w + 2 * padp
    xp = jnp.broadcast_to(mean.reshape(1, 1, c), (hp, wp, c))
    xp = jax.lax.dynamic_update_slice(xp, x, (padp, padp, 0))
    ho = (h + 2 * padp - k) // stride + 1
    wo = (w + 2 * padp - k) // stride + 1
    cols = [xp[ky:ky + stride * ho:stride, kx:kx + stride * wo:stride, :].reshape(ho * wo, c)
            for ky in range(k) for kx in range(k)]
    patches = jnp.concatenate(cols, axis=1)                    # (Ho*Wo, 27), tap-major columns
    patches = jnp.pad(patches, ((0, 0), (0, K_PAD - patches.shape[1])))
    return patches, ho, wo


def border_masks(ho, wo):
    """(hw, 4) f32 masks: [not_first_row, not_last_row, not_first_col, not_last_col]."""
    idx = jnp.arange(ho * wo, dtype=jnp.int32)
    r, c = idx // wo, idx % wo
    m = jnp.stack([r > 0, r < ho - 1, c > 0, c < wo - 1], axis=1)
    return m.astype(jnp.float32)


# ----------------------------- model parameters -----------------------------

def init_params(seed=42):
    key = jax.random.PRNGKey(seed)
    ks = jax.random.split(key, 16)
    f32 = jnp.float32

    def w(k, shape, fan_in):
        return jax.random.normal(k, shape, f32) / jnp.sqrt(jnp.float32(fan_in))

    return {
        # ImageNet normalization from tfms
        "mean":    jnp.array([[0.485, 0.456, 0.406]], f32),
        "inv_std": 1.0 / jnp.array([[0.229, 0.224, 0.225]], f32),
        # stem 3x3 s2 conv: (k*k*Cin, C_STEM), tap-major rows
        "stem_w": w(ks[0], (K_TAPS * C_IN, C_STEM), K_TAPS * C_IN),
        "stem_b": w(ks[1], (1, C_STEM), 1),
        # MBConv expand 1x1
        "exp_w": w(ks[2], (C_STEM, C_EXP), C_STEM),
        "exp_b": w(ks[3], (1, C_EXP), 1),
        # depthwise 3x3: (9 taps, C_EXP)
        "dw_w": w(ks[4], (K_TAPS, C_EXP), K_TAPS),
        "dw_b": w(ks[5], (1, C_EXP), 1),
        # squeeze-excite
        "se_red_w": w(ks[6], (C_EXP, C_SE), C_EXP),
        "se_red_b": w(ks[7], (1, C_SE), 1),
        "se_exp_w": w(ks[8], (C_SE, C_EXP), C_SE),
        "se_exp_b": w(ks[9], (1, C_EXP), 1),
        # project 1x1
        "proj_w": w(ks[10], (C_EXP, C_STEM), C_EXP),
        "proj_b": w(ks[11], (1, C_STEM), 1),
        # head 1x1 conv
        "head_w": w(ks[12], (C_STEM, C_HEAD), C_STEM),
        "head_b": w(ks[13], (1, C_HEAD), 1),
        # classifier
        "fc_w": w(ks[14], (C_HEAD, NUM_CLASS), C_HEAD),
        "fc_b": w(ks[15], (1, NUM_CLASS), 1),
    }


def prepare_params(p):
    """Fold ImageNet normalization into the stem conv, zero-pad K / C_STEM dims to the MXU /
    128-lane grain and lay the SE weights out for the VPU/XLU path.  All padding is zero-filled,
    so the padded model is numerically identical to the logical one."""
    mean, inv_std = p["mean"][0], p["inv_std"][0]              # (3,)
    w3 = p["stem_w"].reshape(K_TAPS, C_IN, C_STEM)
    stem_w = (w3 * inv_std[None, :, None]).reshape(K_TAPS * C_IN, C_STEM)
    stem_b = p["stem_b"] - jnp.sum(w3 * (mean * inv_std)[None, :, None],
                                   axis=(0, 1))[None, :]
    pad_k = K_PAD - K_TAPS * C_IN
    pad_c = C_STEM_P - C_STEM

    q = dict(p)
    q["stem_w"] = jnp.pad(stem_w, ((0, pad_k), (0, pad_c)))
    q["stem_b"] = jnp.pad(stem_b, ((0, 0), (0, pad_c)))
    q["exp_w"] = jnp.pad(p["exp_w"], ((0, pad_c), (0, 0)))
    q["proj_w"] = jnp.pad(p["proj_w"], ((0, 0), (0, pad_c)))
    q["proj_b"] = jnp.pad(p["proj_b"], ((0, 0), (0, pad_c)))
    q["head_w"] = jnp.pad(p["head_w"], ((0, pad_c), (0, 0)))
    # SE weights transposed / column bias so the in-kernel SE is lane-dense broadcast+reduce.
    q["se_red_w"] = p["se_red_w"].T                            # (C_SE, C_EXP)
    q["se_red_b"] = p["se_red_b"].T                            # (C_SE, 1)
    return q


# ----------------------------- forward pass -----------------------------

def valid_efficientnet_forward(params_p, img_chw):
    """img_chw: (3, H, W) float32 in [0,1] (post-ToTensor).  Returns (1, num_class)
    probabilities (matches `torch.sigmoid(model(tensor))` in forward())."""
    patches, ho, wo = stem_patches(img_chw, params_p["mean"])
    masks = border_masks(ho, wo)
    return fused_forward(patches, masks, params_p, wo=wo)


# ----------------------------- pure-JAX f32 reference -----------------------------

def reference_forward(p, img_chw):
    """Reference of the same simplified network on the unpadded logical params (all f32)."""
    mean, inv_std = p["mean"][0], p["inv_std"][0]
    x = (jnp.transpose(img_chw, (1, 2, 0)) - mean) * inv_std
    xp = jnp.pad(x, ((1, 1), (1, 1), (0, 0)))
    h, w = img_chw.shape[1], img_chw.shape[2]
    ho = (h + 2 - 3) // 2 + 1
    wo = (w + 2 - 3) // 2 + 1
    cols = [xp[ky:ky + 2 * ho:2, kx:kx + 2 * wo:2, :].reshape(ho * wo, C_IN)
            for ky in range(3) for kx in range(3)]
    patches = jnp.concatenate(cols, axis=1)

    st = patches @ p["stem_w"] + p["stem_b"]
    st = st * jax.nn.sigmoid(st)

    y = st @ p["exp_w"] + p["exp_b"]
    y = y * jax.nn.sigmoid(y)

    yi = y.reshape(ho, wo, C_EXP)
    yp = jnp.pad(yi, ((1, 1), (1, 1), (0, 0)))
    acc = jnp.zeros_like(yi)
    for k in range(K_TAPS):
        ky, kx = k // 3, k % 3
        acc = acc + yp[ky:ky + ho, kx:kx + wo, :] * p["dw_w"][k]
    acc = acc.reshape(ho * wo, C_EXP) + p["dw_b"]
    dw = acc * jax.nn.sigmoid(acc)

    pooled = jnp.mean(dw, axis=0, keepdims=True)
    s = pooled @ p["se_red_w"] + p["se_red_b"]
    s = s * jax.nn.sigmoid(s)
    gate = jax.nn.sigmoid(s @ p["se_exp_w"] + p["se_exp_b"])
    dw = dw * gate

    proj = dw @ p["proj_w"] + p["proj_b"] + st
    hd = proj @ p["head_w"] + p["head_b"]
    hd = hd * jax.nn.sigmoid(hd)

    pooled2 = jnp.mean(hd, axis=0, keepdims=True)
    logits = pooled2 @ p["fc_w"] + p["fc_b"]
    return jax.nn.sigmoid(logits)


# ----------------------------- main -----------------------------

if __name__ == "__main__":
    raw = init_params(seed=42)
    params = prepare_params(raw)

    key = jax.random.PRNGKey(0)
    # synthetic "image" tensor as produced by ToTensor(): (3, H, W) in [0,1]
    img = jax.random.uniform(key, (C_IN, H, W), dtype=jnp.float32)

    fwd = jax.jit(functools.partial(valid_efficientnet_forward, params))
    probs = jax.block_until_ready(fwd(img))

    assert probs.shape == (1, NUM_CLASS), probs.shape
    assert bool(jnp.all(jnp.isfinite(probs))), probs
    assert bool(jnp.all((probs >= 0.0) & (probs <= 1.0))), probs

    # correctness vs. the pure-JAX f32 reference (bf16 matmuls -> generous tolerance)
    ref = reference_forward(raw, img)
    max_err = float(jnp.max(jnp.abs(probs - ref)))
    assert max_err < 5e-2, (max_err, probs, ref)

    print("KERNEL_OK")
</pallas_src>

<mosaic_0001>
module attributes {stable_mosaic.version = 11 : i64} {
  func.func @_fused_kernel(%arg0: memref<256x32xf32, #tpu.memory_space<vmem>>, %arg1: memref<256x4xf32, #tpu.memory_space<vmem>>, %arg2: memref<32x128xf32, #tpu.memory_space<vmem>>, %arg3: memref<1x128xf32, #tpu.memory_space<vmem>>, %arg4: memref<128x128xf32, #tpu.memory_space<vmem>>, %arg5: memref<1x128xf32, #tpu.memory_space<vmem>>, %arg6: memref<9x128xf32, #tpu.memory_space<vmem>>, %arg7: memref<1x128xf32, #tpu.memory_space<vmem>>, %arg8: memref<8x128xf32, #tpu.memory_space<vmem>>, %arg9: memref<8x1xf32, #tpu.memory_space<vmem>>, %arg10: memref<8x128xf32, #tpu.memory_space<vmem>>, %arg11: memref<1x128xf32, #tpu.memory_space<vmem>>, %arg12: memref<128x128xf32, #tpu.memory_space<vmem>>, %arg13: memref<1x128xf32, #tpu.memory_space<vmem>>, %arg14: memref<128x128xf32, #tpu.memory_space<vmem>>, %arg15: memref<1x128xf32, #tpu.memory_space<vmem>>, %arg16: memref<128x2xf32, #tpu.memory_space<vmem>>, %arg17: memref<1x2xf32, #tpu.memory_space<vmem>>, %arg18: memref<1x2xf32, #tpu.memory_space<vmem>>, %arg19: memref<256x128xbf16, #tpu.memory_space<vmem>>) attributes {dimension_semantics = [], scalar_prefetch = 0 : i64, scratch_operands = 1 : i64, tpu.core_type = #tpu.core_type<tc>} {
    %c0 = arith.constant 0 : index
    %c0_0 = arith.constant 0 : index
    %0 = vector.load %arg0[%c0, %c0_0] : memref<256x32xf32, #tpu.memory_space<vmem>>, vector<256x32xf32>
    %1 = arith.truncf %0 : vector<256x32xf32> to vector<256x32xbf16>
    %c0_1 = arith.constant 0 : index
    %c0_2 = arith.constant 0 : index
    %2 = vector.load %arg2[%c0_1, %c0_2] : memref<32x128xf32, #tpu.memory_space<vmem>>, vector<32x128xf32>
    %3 = arith.truncf %2 : vector<32x128xf32> to vector<32x128xbf16>
    %cst = arith.constant dense<0.000000e+00> : vector<256x128xf32>
    %4 = tpu.matmul %1, %3, %cst {dimension_numbers = #tpu.dot_dimension_numbers<[1], [0], [0], [1], [0, 0, 1, 1], [], []>} : vector<256x32xbf16>, vector<32x128xbf16>, vector<256x128xf32> -> vector<256x128xf32>
    %c0_3 = arith.constant 0 : index
    %c0_4 = arith.constant 0 : index
    %5 = vector.load %arg3[%c0_3, %c0_4] : memref<1x128xf32, #tpu.memory_space<vmem>>, vector<1x128xf32>
    %6 = vector.broadcast %5 : vector<1x128xf32> to vector<256x128xf32>
    %7 = arith.addf %4, %6 : vector<256x128xf32>
    %8 = arith.negf %7 : vector<256x128xf32>
    %9 = math.exp %8 : vector<256x128xf32>
    %cst_5 = arith.constant 1.000000e+00 : f32
    %10 = vector.broadcast %cst_5 : f32 to vector<256x128xf32>
    %11 = arith.addf %10, %9 : vector<256x128xf32>
    %12 = arith.divf %10, %11 : vector<256x128xf32>
    %13 = arith.mulf %7, %12 : vector<256x128xf32>
    %14 = arith.truncf %13 : vector<256x128xf32> to vector<256x128xbf16>
    %c0_6 = arith.constant 0 : index
    %c0_7 = arith.constant 0 : index
    %15 = vector.load %arg19[%c0_6, %c0_7] : memref<256x128xbf16, #tpu.memory_space<vmem>>, vector<256x128xbf16>
    tpu.vector_store %arg19[%c0_6, %c0_7], %14 {strides = array<i32>} : memref<256x128xbf16, #tpu.memory_space<vmem>>, vector<256x128xbf16>,
    %c0_8 = arith.constant 0 : index
    %c0_9 = arith.constant 0 : index
    %16 = vector.load %arg4[%c0_8, %c0_9] : memref<128x128xf32, #tpu.memory_space<vmem>>, vector<128x128xf32>
    %17 = arith.truncf %16 : vector<128x128xf32> to vector<128x128xbf16>
    %cst_10 = arith.constant dense<0.000000e+00> : vector<256x128xf32>
    %18 = tpu.matmul %14, %17, %cst_10 {dimension_numbers = #tpu.dot_dimension_numbers<[1], [0], [0], [1], [0, 0, 1, 1], [], []>} : vector<256x128xbf16>, vector<128x128xbf16>, vector<256x128xf32> -> vector<256x128xf32>
    %c0_11 = arith.constant 0 : index
    %c0_12 = arith.constant 0 : index
    %19 = vector.load %arg5[%c0_11, %c0_12] : memref<1x128xf32, #tpu.memory_space<vmem>>, vector<1x128xf32>
    %20 = vector.broadcast %19 : vector<1x128xf32> to vector<256x128xf32>
    %21 = arith.addf %18, %20 : vector<256x128xf32>
    %22 = arith.negf %21 : vector<256x128xf32>
    %23 = math.exp %22 : vector<256x128xf32>
    %cst_13 = arith.constant 1.000000e+00 : f32
    %24 = vector.broadcast %cst_13 : f32 to vector<256x128xf32>
    %25 = arith.addf %24, %23 : vector<256x128xf32>
    %26 = arith.divf %24, %25 : vector<256x128xf32>
    %27 = arith.mulf %21, %26 : vector<256x128xf32>
    %c0_14 = arith.constant 0 : index
    %c0_15 = arith.constant 0 : index
    %28 = vector.load %arg1[%c0_14, %c0_15] : memref<256x4xf32, #tpu.memory_space<vmem>>, vector<256x4xf32>
    %29 = vector.extract_strided_slice %28 {offsets = [0, 0], sizes = [256, 1], strides = [1, 1]} : vector<256x4xf32> to vector<256x1xf32>
    %30 = vector.extract_strided_slice %28 {offsets = [0, 1], sizes = [256, 1], strides = [1, 1]} : vector<256x4xf32> to vector<256x1xf32>
    %31 = vector.extract_strided_slice %28 {offsets = [0, 2], sizes = [256, 1], strides = [1, 1]} : vector<256x4xf32> to vector<256x1xf32>
    %32 = vector.extract_strided_slice %28 {offsets = [0, 3], sizes = [256, 1], strides = [1, 1]} : vector<256x4xf32> to vector<256x1xf32>
    %c0_16 = arith.constant 0 : index
    %c0_17 = arith.constant 0 : index
    %33 = vector.load %arg6[%c0_16, %c0_17] : memref<9x128xf32, #tpu.memory_space<vmem>>, vector<9x128xf32>
    %cst_18 = arith.constant 0.000000e+00 : f32
    %34 = vector.broadcast %cst_18 : f32 to vector<256x128xf32>
    %c17_i32 = arith.constant 17 : i32
    %35 = tpu.dynamic_rotate %27 by %c17_i32 dim 0 : vector<256x128xf32>, i32 -> vector<256x128xf32>
    %36 = arith.mulf %29, %31 : vector<256x1xf32>
    %37 = vector.broadcast %36 : vector<256x1xf32> to vector<256x128xf32>
    %38 = arith.mulf %35, %37 : vector<256x128xf32>
    %39 = vector.extract_strided_slice %33 {offsets = [0, 0], sizes = [1, 128], strides = [1, 1]} : vector<9x128xf32> to vector<1x128xf32>
    %40 = vector.broadcast %39 : vector<1x128xf32> to vector<256x128xf32>
    %41 = arith.mulf %38, %40 : vector<256x128xf32>
    %42 = arith.addf %34, %41 : vector<256x128xf32>
    %c16_i32 = arith.constant 16 : i32
    %43 = tpu.dynamic_rotate %27 by %c16_i32 dim 0 : vector<256x128xf32>, i32 -> vector<256x128xf32>
    %44 = vector.broadcast %29 : vector<256x1xf32> to vector<256x128xf32>
    %45 = arith.mulf %43, %44 : vector<256x128xf32>
    %46 = vector.extract_strided_slice %33 {offsets = [1, 0], sizes = [1, 128], strides = [1, 1]} : vector<9x128xf32> to vector<1x128xf32>
    %47 = vector.broadcast %46 : vector<1x128xf32> to vector<256x128xf32>
    %48 = arith.mulf %45, %47 : vector<256x128xf32>
    %49 = arith.addf %42, %48 : vector<256x128xf32>
    %c15_i32 = arith.constant 15 : i32
    %50 = tpu.dynamic_rotate %27 by %c15_i32 dim 0 : vector<256x128xf32>, i32 -> vector<256x128xf32>
    %51 = arith.mulf %29, %32 : vector<256x1xf32>
    %52 = vector.broadcast %51 : vector<256x1xf32> to vector<256x128xf32>
    %53 = arith.mulf %50, %52 : vector<256x128xf32>
    %54 = vector.extract_strided_slice %33 {offsets = [2, 0], sizes = [1, 128], strides = [1, 1]} : vector<9x128xf32> to vector<1x128xf32>
    %55 = vector.broadcast %54 : vector<1x128xf32> to vector<256x128xf32>
    %56 = arith.mulf %53, %55 : vector<256x128xf32>
    %57 = arith.addf %49, %56 : vector<256x128xf32>
    %c1_i32 = arith.constant 1 : i32
    %58 = tpu.dynamic_rotate %27 by %c1_i32 dim 0 : vector<256x128xf32>, i32 -> vector<256x128xf32>
    %59 = vector.broadcast %31 : vector<256x1xf32> to vector<256x128xf32>
    %60 = arith.mulf %58, %59 : vector<256x128xf32>
    %61 = vector.extract_strided_slice %33 {offsets = [3, 0], sizes = [1, 128], strides = [1, 1]} : vector<9x128xf32> to vector<1x128xf32>
    %62 = vector.broadcast %61 : vector<1x128xf32> to vector<256x128xf32>
    %63 = arith.mulf %60, %62 : vector<256x128xf32>
    %64 = arith.addf %57, %63 : vector<256x128xf32>
    %65 = vector.extract_strided_slice %33 {offsets = [4, 0], sizes = [1, 128], strides = [1, 1]} : vector<9x128xf32> to vector<1x128xf32>
    %66 = vector.broadcast %65 : vector<1x128xf32> to vector<256x128xf32>
    %67 = arith.mulf %27, %66 : vector<256x128xf32>
    %68 = arith.addf %64, %67 : vector<256x128xf32>
    %c255_i32 = arith.constant 255 : i32
    %69 = tpu.dynamic_rotate %27 by %c255_i32 dim 0 : vector<256x128xf32>, i32 -> vector<256x128xf32>
    %70 = vector.broadcast %32 : vector<256x1xf32> to vector<256x128xf32>
    %71 = arith.mulf %69, %70 : vector<256x128xf32>
    %72 = vector.extract_strided_slice %33 {offsets = [5, 0], sizes = [1, 128], strides = [1, 1]} : vector<9x128xf32> to vector<1x128xf32>
    %73 = vector.broadcast %72 : vector<1x128xf32> to vector<256x128xf32>
    %74 = arith.mulf %71, %73 : vector<256x128xf32>
    %75 = arith.addf %68, %74 : vector<256x128xf32>
    %c241_i32 = arith.constant 241 : i32
    %76 = tpu.dynamic_rotate %27 by %c241_i32 dim 0 : vector<256x128xf32>, i32 -> vector<256x128xf32>
    %77 = arith.mulf %30, %31 : vector<256x1xf32>
    %78 = vector.broadcast %77 : vector<256x1xf32> to vector<256x128xf32>
    %79 = arith.mulf %76, %78 : vector<256x128xf32>
    %80 = vector.extract_strided_slice %33 {offsets = [6, 0], sizes = [1, 128], strides = [1, 1]} : vector<9x128xf32> to vector<1x128xf32>
    %81 = vector.broadcast %80 : vector<1x128xf32> to vector<256x128xf32>
    %82 = arith.mulf %79, %81 : vector<256x128xf32>
    %83 = arith.addf %75, %82 : vector<256x128xf32>
    %c240_i32 = arith.constant 240 : i32
    %84 = tpu.dynamic_rotate %27 by %c240_i32 dim 0 : vector<256x128xf32>, i32 -> vector<256x128xf32>
    %85 = vector.broadcast %30 : vector<256x1xf32> to vector<256x128xf32>
    %86 = arith.mulf %84, %85 : vector<256x128xf32>
    %87 = vector.extract_strided_slice %33 {offsets = [7, 0], sizes = [1, 128], strides = [1, 1]} : vector<9x128xf32> to vector<1x128xf32>
    %88 = vector.broadcast %87 : vector<1x128xf32> to vector<256x128xf32>
    %89 = arith.mulf %86, %88 : vector<256x128xf32>
    %90 = arith.addf %83, %89 : vector<256x128xf32>
    %c239_i32 = arith.constant 239 : i32
    %91 = tpu.dynamic_rotate %27 by %c239_i32 dim 0 : vector<256x128xf32>, i32 -> vector<256x128xf32>
    %92 = arith.mulf %30, %32 : vector<256x1xf32>
    %93 = vector.broadcast %92 : vector<256x1xf32> to vector<256x128xf32>
    %94 = arith.mulf %91, %93 : vector<256x128xf32>
    %95 = vector.extract_strided_slice %33 {offsets = [8, 0], sizes = [1, 128], strides = [1, 1]} : vector<9x128xf32> to vector<1x128xf32>
    %96 = vector.broadcast %95 : vector<1x128xf32> to vector<256x128xf32>
    %97 = arith.mulf %94, %96 : vector<256x128xf32>
    %98 = arith.addf %90, %97 : vector<256x128xf32>
    %c0_19 = arith.constant 0 : index
    %c0_20 = arith.constant 0 : index
    %99 = vector.load %arg7[%c0_19, %c0_20] : memref<1x128xf32, #tpu.memory_space<vmem>>, vector<1x128xf32>
    %100 = vector.broadcast %99 : vector<1x128xf32> to vector<256x128xf32>
    %101 = arith.addf %98, %100 : vector<256x128xf32>
    %102 = arith.negf %101 : vector<256x128xf32>
    %103 = math.exp %102 : vector<256x128xf32>
    %cst_21 = arith.constant 1.000000e+00 : f32
    %104 = vector.broadcast %cst_21 : f32 to vector<256x128xf32>
    %105 = arith.addf %104, %103 : vector<256x128xf32>
    %106 = arith.divf %104, %105 : vector<256x128xf32>
    %107 = arith.mulf %101, %106 : vector<256x128xf32>
    %cst_22 = arith.constant dense<0.000000e+00> : vector<128xf32>
    %108 = vector.multi_reduction <add>, %107, %cst_22 [0] : vector<256x128xf32> to vector<128xf32>
    %109 = vector.shape_cast %108 : vector<128xf32> to vector<1x128xf32>
    %cst_23 = arith.constant 2.560000e+02 : f32
    %110 = vector.broadcast %cst_23 : f32 to vector<1x128xf32>
    %111 = arith.divf %109, %110 : vector<1x128xf32>
    %c0_24 = arith.constant 0 : index
    %c0_25 = arith.constant 0 : index
    %112 = vector.load %arg8[%c0_24, %c0_25] : memref<8x128xf32, #tpu.memory_space<vmem>>, vector<8x128xf32>
    %113 = vector.broadcast %111 : vector<1x128xf32> to vector<8x128xf32>
    %114 = arith.mulf %112, %113 : vector<8x128xf32>
    %cst_26 = arith.constant dense<0.000000e+00> : vector<8xf32>
    %115 = vector.multi_reduction <add>, %114, %cst_26 [1] : vector<8x128xf32> to vector<8xf32>
    %116 = vector.shape_cast %115 : vector<8xf32> to vector<8x1xf32>
    %c0_27 = arith.constant 0 : index
    %c0_28 = arith.constant 0 : index
    %117 = vector.load %arg9[%c0_27, %c0_28] : memref<8x1xf32, #tpu.memory_space<vmem>>, vector<8x1xf32>
    %118 = arith.addf %116, %117 : vector<8x1xf32>
    %119 = arith.negf %118 : vector<8x1xf32>
    %120 = math.exp %119 : vector<8x1xf32>
    %cst_29 = arith.constant 1.000000e+00 : f32
    %121 = vector.broadcast %cst_29 : f32 to vector<8x1xf32>
    %122 = arith.addf %121, %120 : vector<8x1xf32>
    %123 = arith.divf %121, %122 : vector<8x1xf32>
    %124 = arith.mulf %118, %123 : vector<8x1xf32>
    %c0_30 = arith.constant 0 : index
    %c0_31 = arith.constant 0 : index
    %125 = vector.load %arg10[%c0_30, %c0_31] : memref<8x128xf32, #tpu.memory_space<vmem>>, vector<8x128xf32>
    %126 = vector.broadcast %124 : vector<8x1xf32> to vector<8x128xf32>
    %127 = arith.mulf %125, %126 : vector<8x128xf32>
    %cst_32 = arith.constant dense<0.000000e+00> : vector<128xf32>
    %128 = vector.multi_reduction <add>, %127, %cst_32 [0] : vector<8x128xf32> to vector<128xf32>
    %129 = vector.shape_cast %128 : vector<128xf32> to vector<1x128xf32>
    %c0_33 = arith.constant 0 : index
    %c0_34 = arith.constant 0 : index
    %130 = vector.load %arg11[%c0_33, %c0_34] : memref<1x128xf32, #tpu.memory_space<vmem>>, vector<1x128xf32>
    %131 = arith.addf %129, %130 : vector<1x128xf32>
    %132 = arith.negf %131 : vector<1x128xf32>
    %133 = math.exp %132 : vector<1x128xf32>
    %cst_35 = arith.constant 1.000000e+00 : f32
    %134 = vector.broadcast %cst_35 : f32 to vector<1x128xf32>
    %135 = arith.addf %134, %133 : vector<1x128xf32>
    %136 = arith.divf %134, %135 : vector<1x128xf32>
    %137 = vector.broadcast %136 : vector<1x128xf32> to vector<256x128xf32>
    %138 = arith.mulf %107, %137 : vector<256x128xf32>
    %139 = arith.truncf %138 : vector<256x128xf32> to vector<256x128xbf16>
    %c0_36 = arith.constant 0 : index
    %c0_37 = arith.constant 0 : index
    %140 = vector.load %arg12[%c0_36, %c0_37] : memref<128x128xf32, #tpu.memory_space<vmem>>, vector<128x128xf32>
    %141 = arith.truncf %140 : vector<128x128xf32> to vector<128x128xbf16>
    %cst_38 = arith.constant dense<0.000000e+00> : vector<256x128xf32>
    %142 = tpu.matmul %139, %141, %cst_38 {dimension_numbers = #tpu.dot_dimension_numbers<[1], [0], [0], [1], [0, 0, 1, 1], [], []>} : vector<256x128xbf16>, vector<128x128xbf16>, vector<256x128xf32> -> vector<256x128xf32>
    %c0_39 = arith.constant 0 : index
    %c0_40 = arith.constant 0 : index
    %143 = vector.load %arg13[%c0_39, %c0_40] : memref<1x128xf32, #tpu.memory_space<vmem>>, vector<1x128xf32>
    %144 = vector.broadcast %143 : vector<1x128xf32> to vector<256x128xf32>
    %145 = arith.addf %142, %144 : vector<256x128xf32>
    %c0_41 = arith.constant 0 : index
    %c0_42 = arith.constant 0 : index
    %146 = vector.load %arg19[%c0_41, %c0_42] : memref<256x128xbf16, #tpu.memory_space<vmem>>, vector<256x128xbf16>
    %147 = arith.extf %146 : vector<256x128xbf16> to vector<256x128xf32>
    %148 = arith.addf %145, %147 : vector<256x128xf32>
    %149 = arith.truncf %148 : vector<256x128xf32> to vector<256x128xbf16>
    %c0_43 = arith.constant 0 : index
    %c0_44 = arith.constant 0 : index
    %150 = vector.load %arg14[%c0_43, %c0_44] : memref<128x128xf32, #tpu.memory_space<vmem>>, vector<128x128xf32>
    %151 = arith.truncf %150 : vector<128x128xf32> to vector<128x128xbf16>
    %cst_45 = arith.constant dense<0.000000e+00> : vector<256x128xf32>
    %152 = tpu.matmul %149, %151, %cst_45 {dimension_numbers = #tpu.dot_dimension_numbers<[1], [0], [0], [1], [0, 0, 1, 1], [], []>} : vector<256x128xbf16>, vector<128x128xbf16>, vector<256x128xf32> -> vector<256x128xf32>
    %c0_46 = arith.constant 0 : index
    %c0_47 = arith.constant 0 : index
    %153 = vector.load %arg15[%c0_46, %c0_47] : memref<1x128xf32, #tpu.memory_space<vmem>>, vector<1x128xf32>
    %154 = vector.broadcast %153 : vector<1x128xf32> to vector<256x128xf32>
    %155 = arith.addf %152, %154 : vector<256x128xf32>
    %156 = arith.negf %155 : vector<256x128xf32>
    %157 = math.exp %156 : vector<256x128xf32>
    %cst_48 = arith.constant 1.000000e+00 : f32
    %158 = vector.broadcast %cst_48 : f32 to vector<256x128xf32>
    %159 = arith.addf %158, %157 : vector<256x128xf32>
    %160 = arith.divf %158, %159 : vector<256x128xf32>
    %161 = arith.mulf %155, %160 : vector<256x128xf32>
    %cst_49 = arith.constant dense<0.000000e+00> : vector<128xf32>
    %162 = vector.multi_reduction <add>, %161, %cst_49 [0] : vector<256x128xf32> to vector<128xf32>
    %163 = vector.shape_cast %162 : vector<128xf32> to vector<1x128xf32>
    %cst_50 = arith.constant 2.560000e+02 : f32
    %164 = vector.broadcast %cst_50 : f32 to vector<1x128xf32>
    %165 = arith.divf %163, %164 : vector<1x128xf32>
    %c0_51 = arith.constant 0 : index
    %c0_52 = arith.constant 0 : index
    %166 = vector.load %arg16[%c0_51, %c0_52] : memref<128x2xf32, #tpu.memory_space<vmem>>, vector<128x2xf32>
    %cst_53 = arith.constant dense<0.000000e+00> : vector<1x2xf32>
    %167 = tpu.matmul %165, %166, %cst_53 {dimension_numbers = #tpu.dot_dimension_numbers<[1], [0], [0], [1], [0, 0, 1, 1], [], []>} : vector<1x128xf32>, vector<128x2xf32>, vector<1x2xf32> -> vector<1x2xf32>
    %c0_54 = arith.constant 0 : index
    %c0_55 = arith.constant 0 : index
    %168 = vector.load %arg17[%c0_54, %c0_55] : memref<1x2xf32, #tpu.memory_space<vmem>>, vector<1x2xf32>
    %169 = arith.addf %167, %168 : vector<1x2xf32>
    %170 = arith.negf %169 : vector<1x2xf32>
    %171 = math.exp %170 : vector<1x2xf32>
    %cst_56 = arith.constant 1.000000e+00 : f32
    %172 = vector.broadcast %cst_56 : f32 to vector<1x2xf32>
    %173 = arith.addf %172, %171 : vector<1x2xf32>
    %174 = arith.divf %172, %173 : vector<1x2xf32>
    %c0_57 = arith.constant 0 : index
    %c0_58 = arith.constant 0 : index
    %175 = vector.load %arg18[%c0_57, %c0_58] : memref<1x2xf32, #tpu.memory_space<vmem>>, vector<1x2xf32>
    tpu.vector_store %arg18[%c0_57, %c0_58], %174 {strides = array<i32>} : memref<1x2xf32, #tpu.memory_space<vmem>>, vector<1x2xf32>,
    return
  }
}

</mosaic_0001>

<llo_original>
// kernel: valid_efficientnet_forward.1
$region0: #{valid_efficientnet_forward.1}
  #allocation0 [shape = 'u32[]', space=smem, size = 0x4, offset = 0x4, fixed_abs, tag = 'smem constant byte address 0x4 - core index']
  #allocation1 [shape = 'u32[72,128]{1,0:T(1,128)}', space=vmem, size = 0x9000, scoped, tag = 'internal scratch']
  #allocation2 [shape = 'bf16[256,128]{1,0:T(8,128)(2,1)}', space=vmem, size = 0x10000, scoped, tag = 'scratch operand']
  %s0 = inlined_call_operand.vmem [shape: f32[256,32], index: 0, kind: input, shape index: {}]
  %s1 = inlined_call_operand.vmem [shape: f32[256,4], index: 1, kind: input, shape index: {}]
  %s2 = inlined_call_operand.vmem [shape: f32[32,128], index: 2, kind: input, shape index: {}]
  %s3 = inlined_call_operand.vmem [shape: f32[1,128], index: 3, kind: input, shape index: {}]
  %s4 = inlined_call_operand.vmem [shape: f32[128,128], index: 4, kind: input, shape index: {}]
  %s5 = inlined_call_operand.vmem [shape: f32[1,128], index: 5, kind: input, shape index: {}]
  %s6 = inlined_call_operand.vmem [shape: f32[9,128], index: 6, kind: input, shape index: {}]
  %s7 = inlined_call_operand.vmem [shape: f32[1,128], index: 7, kind: input, shape index: {}]
  %s8 = inlined_call_operand.vmem [shape: f32[8,128], index: 8, kind: input, shape index: {}]
  %s9 = inlined_call_operand.vmem [shape: f32[8,1], index: 9, kind: input, shape index: {}]
  %s10 = inlined_call_operand.vmem [shape: f32[8,128], index: 10, kind: input, shape index: {}]
  %s11 = inlined_call_operand.vmem [shape: f32[1,128], index: 11, kind: input, shape index: {}]
  %s12 = inlined_call_operand.vmem [shape: f32[128,128], index: 12, kind: input, shape index: {}]
  %s13 = inlined_call_operand.vmem [shape: f32[1,128], index: 13, kind: input, shape index: {}]
  %s14 = inlined_call_operand.vmem [shape: f32[128,128], index: 14, kind: input, shape index: {}]
  %s15 = inlined_call_operand.vmem [shape: f32[1,128], index: 15, kind: input, shape index: {}]
  %s16 = inlined_call_operand.vmem [shape: f32[128,2], index: 16, kind: input, shape index: {}]
  %s17 = inlined_call_operand.vmem [shape: f32[1,2], index: 17, kind: input, shape index: {}]
  %s18 = inlined_call_operand.hbm [shape: f32[1,2], index: 18, kind: output, shape index: {}]
  %s19 = sld [smem:[#allocation0]]
  $region82: #{valid_efficientnet_forward.1} parent=0
    _
  %s21 = ssub.s32 1, %s19
  %s22 = scalar_select 0, %s21, %s19
  $region1: #{valid_efficientnet_forward.1} parent=0
    #allocation3 [shape = 'u8[512]{0}', space=vmem, size = 0x400, scoped, tag = 'output window, operand 0, single buffered']
    #allocation4 [shape = 's32[1]{0}', space=sflag, size = 0x4, scoped, tag = 'scoped memory for valid_efficientnet_forward.1']
    %23 = vsyncpa [#allocation4], 0
    // Predicated region
    $region2: #{valid_efficientnet_forward.1} parent=1 // pred_check
      _
    $region3: #{valid_efficientnet_forward.1} parent=1 // pred_check_branch
      %25 = sbr.rel (0) target = $region5
    $region4: #{valid_efficientnet_forward.1} parent=1 // pred_region
      _
    $region5: #{valid_efficientnet_forward.1} parent=1 // pred_fallthru
      _
    // Predicated region
    $region6: #{valid_efficientnet_forward.1} parent=1 // pred_check
      _
    $region7: #{valid_efficientnet_forward.1} parent=1 // pred_check_branch
      %27 = sbr.rel (0) target = $region9
    $region8: #{valid_efficientnet_forward.1} parent=1 // pred_region
      _
    $region9: #{valid_efficientnet_forward.1} parent=1 // pred_fallthru
      _
    // Predicated region
    $region10: #{valid_efficientnet_forward.1} parent=1 // pred_check
      _
    $region11: #{valid_efficientnet_forward.1} parent=1 // pred_check_branch
      %29 = sbr.rel (0) target = $region13
    $region12: #{valid_efficientnet_forward.1} parent=1 // pred_region
      _
    $region13: #{valid_efficientnet_forward.1} parent=1 // pred_fallthru
      _
    // Predicated region
    $region14: #{valid_efficientnet_forward.1} parent=1 // pred_check
      _
    $region15: #{valid_efficientnet_forward.1} parent=1 // pred_check_branch
      %31 = sbr.rel (0) target = $region17
    $region16: #{valid_efficientnet_forward.1} parent=1 // pred_region
      _
    $region17: #{valid_efficientnet_forward.1} parent=1 // pred_fallthru
      _
    // Predicated region
    $region18: #{valid_efficientnet_forward.1} parent=1 // pred_check
      _
    $region19: #{valid_efficientnet_forward.1} parent=1 // pred_check_branch
      %33 = sbr.rel (0) target = $region21
    $region20: #{valid_efficientnet_forward.1} parent=1 // pred_region
      _
    $region21: #{valid_efficientnet_forward.1} parent=1 // pred_fallthru
      _
    // Predicated region
    $region22: #{valid_efficientnet_forward.1} parent=1 // pred_check
      _
    $region23: #{valid_efficientnet_forward.1} parent=1 // pred_check_branch
      %35 = sbr.rel (0) target = $region25
    $region24: #{valid_efficientnet_forward.1} parent=1 // pred_region
      _
    $region25: #{valid_efficientnet_forward.1} parent=1 // pred_fallthru
      _
    // Predicated region
    $region26: #{valid_efficientnet_forward.1} parent=1 // pred_check
      _
    $region27: #{valid_efficientnet_forward.1} parent=1 // pred_check_branch
      %37 = sbr.rel (0) target = $region29
    $region28: #{valid_efficientnet_forward.1} parent=1 // pred_region
      _
    $region29: #{valid_efficientnet_forward.1} parent=1 // pred_fallthru
      _
    // Predicated region
    $region30: #{valid_efficientnet_forward.1} parent=1 // pred_check
      _
    $region31: #{valid_efficientnet_forward.1} parent=1 // pred_check_branch
      %39 = sbr.rel (0) target = $region33
    $region32: #{valid_efficientnet_forward.1} parent=1 // pred_region
      _
    $region33: #{valid_efficientnet_forward.1} parent=1 // pred_fallthru
      _
    // Predicated region
    $region34: #{valid_efficientnet_forward.1} parent=1 // pred_check
      _
    $region35: #{valid_efficientnet_forward.1} parent=1 // pred_check_branch
      %41 = sbr.rel (0) target = $region37
    $region36: #{valid_efficientnet_forward.1} parent=1 // pred_region
      _
    $region37: #{valid_efficientnet_forward.1} parent=1 // pred_fallthru
      _
    // Predicated region
    $region38: #{valid_efficientnet_forward.1} parent=1 // pred_check
      _
    $region39: #{valid_efficientnet_forward.1} parent=1 // pred_check_branch
      %43 = sbr.rel (0) target = $region41
    $region40: #{valid_efficientnet_forward.1} parent=1 // pred_region
      _
    $region41: #{valid_efficientnet_forward.1} parent=1 // pred_fallthru
      _
    // Predicated region
    $region42: #{valid_efficientnet_forward.1} parent=1 // pred_check
      _
    $region43: #{valid_efficientnet_forward.1} parent=1 // pred_check_branch
      %45 = sbr.rel (0) target = $region45
    $region44: #{valid_efficientnet_forward.1} parent=1 // pred_region
      _
    $region45: #{valid_efficientnet_forward.1} parent=1 // pred_fallthru
      _
    // Predicated region
    $region46: #{valid_efficientnet_forward.1} parent=1 // pred_check
      _
    $region47: #{valid_efficientnet_forward.1} parent=1 // pred_check_branch
      %47 = sbr.rel (0) target = $region49
    $region48: #{valid_efficientnet_forward.1} parent=1 // pred_region
      _
    $region49: #{valid_efficientnet_forward.1} parent=1 // pred_fallthru
      _
    // Predicated region
    $region50: #{valid_efficientnet_forward.1} parent=1 // pred_check
      _
    $region51: #{valid_efficientnet_forward.1} parent=1 // pred_check_branch
      %49 = sbr.rel (0) target = $region53
    $region52: #{valid_efficientnet_forward.1} parent=1 // pred_region
      _
    $region53: #{valid_efficientnet_forward.1} parent=1 // pred_fallthru
      _
    // Predicated region
    $region54: #{valid_efficientnet_forward.1} parent=1 // pred_check
      _
    $region55: #{valid_efficientnet_forward.1} parent=1 // pred_check_branch
      %51 = sbr.rel (0) target = $region57
    $region56: #{valid_efficientnet_forward.1} parent=1 // pred_region
      _
    $region57: #{valid_efficientnet_forward.1} parent=1 // pred_fallthru
      _
    // Predicated region
    $region58: #{valid_efficientnet_forward.1} parent=1 // pred_check
      _
    $region59: #{valid_efficientnet_forward.1} parent=1 // pred_check_branch
      %53 = sbr.rel (0) target = $region61
    $region60: #{valid_efficientnet_forward.1} parent=1 // pred_region
      _
    $region61: #{valid_efficientnet_forward.1} parent=1 // pred_fallthru
      _
    // Predicated region
    $region62: #{valid_efficientnet_forward.1} parent=1 // pred_check
      _
    $region63: #{valid_efficientnet_forward.1} parent=1 // pred_check_branch
      %55 = sbr.rel (0) target = $region65
    $region64: #{valid_efficientnet_forward.1} parent=1 // pred_region
      _
    $region65: #{valid_efficientnet_forward.1} parent=1 // pred_fallthru
      _
    // Predicated region
    $region66: #{valid_efficientnet_forward.1} parent=1 // pred_check
      _
    $region67: #{valid_efficientnet_forward.1} parent=1 // pred_check_branch
      %57 = sbr.rel (0) target = $region69
    $region68: #{valid_efficientnet_forward.1} parent=1 // pred_region
      _
    $region69: #{valid_efficientnet_forward.1} parent=1 // pred_fallthru
      _
    // Predicated region
    $region70: #{valid_efficientnet_forward.1} parent=1 // pred_check
      _
    $region71: #{valid_efficientnet_forward.1} parent=1 // pred_check_branch
      %59 = sbr.rel (0) target = $region73
    $region72: #{valid_efficientnet_forward.1} parent=1 // pred_region
      _
    $region73: #{valid_efficientnet_forward.1} parent=1 // pred_fallthru
      _
    %v61 = vld [vmem:[%s0] sm:$0xff]
    %v62 = vld [vmem:[%s0 + $0x8] sm:$0xff]
    %v63 = vld [vmem:[%s0 + $0x10] sm:$0xff]
    %v64 = vld [vmem:[%s0 + $0x18] sm:$0xff]
    %v65 = vld [vmem:[%s0 + $0x20] sm:$0xff]
    %v66 = vld [vmem:[%s0 + $0x28] sm:$0xff]
    %v67 = vld [vmem:[%s0 + $0x30] sm:$0xff]
    %v68 = vld [vmem:[%s0 + $0x38] sm:$0xff]
    %v69 = vld [vmem:[%s0 + $0x40] sm:$0xff]
    %v70 = vld [vmem:[%s0 + $0x48] sm:$0xff]
    %v71 = vld [vmem:[%s0 + $0x50] sm:$0xff]
    %v72 = vld [vmem:[%s0 + $0x58] sm:$0xff]
    %v73 = vld [vmem:[%s0 + $0x60] sm:$0xff]
    %v74 = vld [vmem:[%s0 + $0x68] sm:$0xff]
    %v75 = vld [vmem:[%s0 + $0x70] sm:$0xff]
    %v76 = vld [vmem:[%s0 + $0x78] sm:$0xff]
    %v77 = vld [vmem:[%s0 + $0x80] sm:$0xff]
    %v78 = vld [vmem:[%s0 + $0x88] sm:$0xff]
    %v79 = vld [vmem:[%s0 + $0x90] sm:$0xff]
    %v80 = vld [vmem:[%s0 + $0x98] sm:$0xff]
    %v81 = vld [vmem:[%s0 + $0xa0] sm:$0xff]
    %v82 = vld [vmem:[%s0 + $0xa8] sm:$0xff]
    %v83 = vld [vmem:[%s0 + $0xb0] sm:$0xff]
    %v84 = vld [vmem:[%s0 + $0xb8] sm:$0xff]
    %v85 = vld [vmem:[%s0 + $0xc0] sm:$0xff]
    %v86 = vld [vmem:[%s0 + $0xc8] sm:$0xff]
    %v87 = vld [vmem:[%s0 + $0xd0] sm:$0xff]
    %v88 = vld [vmem:[%s0 + $0xd8] sm:$0xff]
    %v89 = vld [vmem:[%s0 + $0xe0] sm:$0xff]
    %v90 = vld [vmem:[%s0 + $0xe8] sm:$0xff]
    %v91 = vld [vmem:[%s0 + $0xf0] sm:$0xff]
    %v92 = vld [vmem:[%s0 + $0xf8] sm:$0xff]
    %v93 = vpack.c.bf16 %v62, %v61
    %v94 = vpack.c.bf16 %v64, %v63
    %v95 = vpack.c.bf16 %v66, %v65
    %v96 = vpack.c.bf16 %v68, %v67
    %v97 = vpack.c.bf16 %v70, %v69
    %v98 = vpack.c.bf16 %v72, %v71
    %v99 = vpack.c.bf16 %v74, %v73
    %v100 = vpack.c.bf16 %v76, %v75
    %v101 = vpack.c.bf16 %v78, %v77
    %v102 = vpack.c.bf16 %v80, %v79
    %v103 = vpack.c.bf16 %v82, %v81
    %v104 = vpack.c.bf16 %v84, %v83
    %v105 = vpack.c.bf16 %v86, %v85
    %v106 = vpack.c.bf16 %v88, %v87
    %v107 = vpack.c.bf16 %v90, %v89
    %v108 = vpack.c.bf16 %v92, %v91
    %v109 = vld [vmem:[%s2] sm:$0xff]
    %v110 = vld [vmem:[%s2 + $0x8] sm:$0xff]
    %v111 = vld [vmem:[%s2 + $0x10] sm:$0xff]
    %v112 = vld [vmem:[%s2 + $0x18] sm:$0xff]
    %v113 = vpack.c.bf16 %v110, %v109
    %v114 = vpack.c.bf16 %v112, %v111
    %v115 = vld [vmem:[%s3] sm:$0x1]
    %v117 = vperm.slane %v115, 0
    %vm119 = vcmask 261120
    %v121 = vsel %vm119, %v93, 0
    %v124 = vsel %vm119, %v94, 0
    %v127 = vsel %vm119, %v95, 0
    %v130 = vsel %vm119, %v96, 0
    %v133 = vsel %vm119, %v97, 0
    %v136 = vsel %vm119, %v98, 0
    %v139 = vsel %vm119, %v99, 0
    %v142 = vsel %vm119, %v100, 0
    %v145 = vsel %vm119, %v101, 0
    %v148 = vsel %vm119, %v102, 0
    %v151 = vsel %vm119, %v103, 0
    %v154 = vsel %vm119, %v104, 0
    %v157 = vsel %vm119, %v105, 0
    %v160 = vsel %vm119, %v106, 0
    %v163 = vsel %vm119, %v107, 0
    %v166 = vsel %vm119, %v108, 0
    %168 = vmatpush.bf16.msra.mxu0 0
    %169 = vmatpush.bf16.msra.mxu0 0
    %170 = vmatpush.bf16.msra.mxu0 0
    %171 = vmatpush.bf16.msra.mxu0 0
    %172 = vmatpush.bf16.msra.mxu0 0
    %173 = vmatpush.bf16.msra.mxu0 0
    %174 = vmatpush.bf16.msra.mxu0 %v114
    %175 = vmatpush.bf16.msra.mxu0 %v113
    %176 = vmatmul.bf16.gmra.mxu0 %v121
    %v177 = vpop.f32.mrf.mxu0
    %v178 = vadd.f32 %v117, %v177
    %v179 = vpop.f32.mrf.mxu0
    %v180 = vadd.f32 %v117, %v179
    %181 = vmatmul.bf16.gmra.mxu0 %v124
    %v182 = vpop.f32.mrf.mxu0
    %v183 = vadd.f32 %v117, %v182
    %v184 = vpop.f32.mrf.mxu0
    %v185 = vadd.f32 %v117, %v184
    %186 = vmatmul.bf16.gmra.mxu0 %v127
    %v187 = vpop.f32.mrf.mxu0
    %v188 = vadd.f32 %v117, %v187
    %v189 = vpop.f32.mrf.mxu0
    %v190 = vadd.f32 %v117, %v189
    %191 = vmatmul.bf16.gmra.mxu0 %v130
    %v192 = vpop.f32.mrf.mxu0
    %v193 = vadd.f32 %v117, %v192
    %v194 = vpop.f32.mrf.mxu0
    %v195 = vadd.f32 %v117, %v194
    %196 = vmatmul.bf16.gmra.mxu0 %v133
    %v197 = vpop.f32.mrf.mxu0
    %v198 = vadd.f32 %v117, %v197
    %v199 = vpop.f32.mrf.mxu0
    %v200 = vadd.f32 %v117, %v199
    %201 = vmatmul.bf16.gmra.mxu0 %v136
    %v202 = vpop.f32.mrf.mxu0
    %v203 = vadd.f32 %v117, %v202
    %v204 = vpop.f32.mrf.mxu0
    %v205 = vadd.f32 %v117, %v204
    %206 = vmatmul.bf16.gmra.mxu0 %v139
    %v207 = vpop.f32.mrf.mxu0
    %v208 = vadd.f32 %v117, %v207
    %v209 = vpop.f32.mrf.mxu0
    %v210 = vadd.f32 %v117, %v209
    %211 = vmatmul.bf16.gmra.mxu0 %v142
    %v212 = vpop.f32.mrf.mxu0
    %v213 = vadd.f32 %v117, %v212
    %v214 = vpop.f32.mrf.mxu0
    %v215 = vadd.f32 %v117, %v214
    %216 = vmatmul.bf16.gmra.mxu0 %v145
    %v217 = vpop.f32.mrf.mxu0
    %v218 = vadd.f32 %v117, %v217
    %v219 = vpop.f32.mrf.mxu0
    %v220 = vadd.f32 %v117, %v219
    %221 = vmatmul.bf16.gmra.mxu0 %v148
    %v222 = vpop.f32.mrf.mxu0
    %v223 = vadd.f32 %v117, %v222
    %v224 = vpop.f32.mrf.mxu0
    %v225 = vadd.f32 %v117, %v224
    %226 = vmatmul.bf16.gmra.mxu0 %v151
    %v227 = vpop.f32.mrf.mxu0
    %v228 = vadd.f32 %v117, %v227
    %v229 = vpop.f32.mrf.mxu0
    %v230 = vadd.f32 %v117, %v229
    %231 = vmatmul.bf16.gmra.mxu0 %v154
    %v232 = vpop.f32.mrf.mxu0
    %v233 = vadd.f32 %v117, %v232
    %v234 = vpop.f32.mrf.mxu0
    %v235 = vadd.f32 %v117, %v234
    %236 = vmatmul.bf16.gmra.mxu0 %v157
    %v237 = vpop.f32.mrf.mxu0
    %v238 = vadd.f32 %v117, %v237
    %v239 = vpop.f32.mrf.mxu0
    %v240 = vadd.f32 %v117, %v239
    %241 = vmatmul.bf16.gmra.mxu0 %v160
    %v242 = vpop.f32.mrf.mxu0
    %v243 = vadd.f32 %v117, %v242
    %v244 = vpop.f32.mrf.mxu0
    %v245 = vadd.f32 %v117, %v244
    %246 = vmatmul.bf16.gmra.mxu0 %v163
    %v247 = vpop.f32.mrf.mxu0
    %v248 = vadd.f32 %v117, %v247
    %v249 = vpop.f32.mrf.mxu0
    %v250 = vadd.f32 %v117, %v249
    %251 = vmatmul.bf16.gmra.mxu0 %v166
    %v252 = vpop.f32.mrf.mxu0
    %v253 = vadd.f32 %v117, %v252
    %v254 = vpop.f32.mrf.mxu0
    %v255 = vadd.f32 %v117, %v254
    %256 = vdwg.mxu0
    %v257 = vxor.u32 %v178, 2147483648
    %v258 = vxor.u32 %v180, 2147483648
    %v259 = vxor.u32 %v183, 2147483648
    %v260 = vxor.u32 %v185, 2147483648
    %v261 = vxor.u32 %v188, 2147483648
    %v262 = vxor.u32 %v190, 2147483648
    %v263 = vxor.u32 %v193, 2147483648
    %v264 = vxor.u32 %v195, 2147483648
    %v265 = vxor.u32 %v198, 2147483648
    %v266 = vxor.u32 %v200, 2147483648
    %v267 = vxor.u32 %v203, 2147483648
    %v268 = vxor.u32 %v205, 2147483648
    %v269 = vxor.u32 %v208, 2147483648
    %v270 = vxor.u32 %v210, 2147483648
    %v271 = vxor.u32 %v213, 2147483648
    %v272 = vxor.u32 %v215, 2147483648
    %v273 = vxor.u32 %v218, 2147483648
    %v274 = vxor.u32 %v220, 2147483648
    %v275 = vxor.u32 %v223, 2147483648
    %v276 = vxor.u32 %v225, 2147483648
    %v277 = vxor.u32 %v228, 2147483648
    %v278 = vxor.u32 %v230, 2147483648
    %v279 = vxor.u32 %v233, 2147483648
    %v280 = vxor.u32 %v235, 2147483648
    %v281 = vxor.u32 %v238, 2147483648
    %v282 = vxor.u32 %v240, 2147483648
    %v283 = vxor.u32 %v243, 2147483648
    %v284 = vxor.u32 %v245, 2147483648
    %v285 = vxor.u32 %v248, 2147483648
    %v286 = vxor.u32 %v250, 2147483648
    %v287 = vxor.u32 %v253, 2147483648
    %v288 = vxor.u32 %v255, 2147483648
    %v289 = vmul.f32 %v257, 1.442695
    %v290 = vpow.pop %v289
    %v291 = vmul.f32 %v258, 1.442695
    %v292 = vpow.pop %v291
    %v293 = vmul.f32 %v259, 1.442695
    %v294 = vpow.pop %v293
    %v295 = vmul.f32 %v260, 1.442695
    %v296 = vpow.pop %v295
    %v297 = vmul.f32 %v261, 1.442695
    %v298 = vpow.pop %v297
    %v299 = vmul.f32 %v262, 1.442695
    %v300 = vpow.pop %v299
    %v301 = vmul.f32 %v263, 1.442695
    %v302 = vpow.pop %v301
    %v303 = vmul.f32 %v264, 1.442695
    %v304 = vpow.pop %v303
    %v305 = vmul.f32 %v265, 1.442695
    %v306 = vpow.pop %v305
    %v307 = vmul.f32 %v266, 1.442695
    %v308 = vpow.pop %v307
    %v309 = vmul.f32 %v267, 1.442695
    %v310 = vpow.pop %v309
    %v311 = vmul.f32 %v268, 1.442695
    %v312 = vpow.pop %v311
    %v313 = vmul.f32 %v269, 1.442695
    %v314 = vpow.pop %v313
    %v315 = vmul.f32 %v270, 1.442695
    %v316 = vpow.pop %v315
    %v317 = vmul.f32 %v271, 1.442695
    %v318 = vpow.pop %v317
    %v319 = vmul.f32 %v272, 1.442695
    %v320 = vpow.pop %v319
    %v321 = vmul.f32 %v273, 1.442695
    %v322 = vpow.pop %v321
    %v323 = vmul.f32 %v274, 1.442695
    %v324 = vpow.pop %v323
    %v325 = vmul.f32 %v275, 1.442695
    %v326 = vpow.pop %v325
    %v327 = vmul.f32 %v276, 1.442695
    %v328 = vpow.pop %v327
    %v329 = vmul.f32 %v277, 1.442695
    %v330 = vpow.pop %v329
    %v331 = vmul.f32 %v278, 1.442695
    %v332 = vpow.pop %v331
    %v333 = vmul.f32 %v279, 1.442695
    %v334 = vpow.pop %v333
    %v335 = vmul.f32 %v280, 1.442695
    %v336 = vpow.pop %v335
    %v337 = vmul.f32 %v281, 1.442695
    %v338 = vpow.pop %v337
    %v339 = vmul.f32 %v282, 1.442695
    %v340 = vpow.pop %v339
    %v341 = vmul.f32 %v283, 1.442695
    %v342 = vpow.pop %v341
    %v343 = vmul.f32 %v284, 1.442695
    %v344 = vpow.pop %v343
    %v345 = vmul.f32 %v285, 1.442695
    %v346 = vpow.pop %v345
    %v347 = vmul.f32 %v286, 1.442695
    %v348 = vpow.pop %v347
    %v349 = vmul.f32 %v287, 1.442695
    %v350 = vpow.pop %v349
    %v351 = vmul.f32 %v288, 1.442695
    %v352 = vpow.pop %v351
    %v353 = vadd.f32 %v290, 1.0
    %v354 = vadd.f32 %v292, 1.0
    %v355 = vadd.f32 %v294, 1.0
    %v356 = vadd.f32 %v296, 1.0
    %v357 = vadd.f32 %v298, 1.0
    %v358 = vadd.f32 %v300, 1.0
    %v359 = vadd.f32 %v302, 1.0
    %v360 = vadd.f32 %v304, 1.0
    %v361 = vadd.f32 %v306, 1.0
    %v362 = vadd.f32 %v308, 1.0
    %v363 = vadd.f32 %v310, 1.0
    %v364 = vadd.f32 %v312, 1.0
    %v365 = vadd.f32 %v314, 1.0
    %v366 = vadd.f32 %v316, 1.0
    %v367 = vadd.f32 %v318, 1.0
    %v368 = vadd.f32 %v320, 1.0
    %v369 = vadd.f32 %v322, 1.0
    %v370 = vadd.f32 %v324, 1.0
    %v371 = vadd.f32 %v326, 1.0
    %v372 = vadd.f32 %v328, 1.0
    %v373 = vadd.f32 %v330, 1.0
    %v374 = vadd.f32 %v332, 1.0
    %v375 = vadd.f32 %v334, 1.0
    %v376 = vadd.f32 %v336, 1.0
    %v377 = vadd.f32 %v338, 1.0
    %v378 = vadd.f32 %v340, 1.0
    %v379 = vadd.f32 %v342, 1.0
    %v380 = vadd.f32 %v344, 1.0
    %v381 = vadd.f32 %v346, 1.0
    %v382 = vadd.f32 %v348, 1.0
    %v383 = vadd.f32 %v350, 1.0
    %v384 = vadd.f32 %v352, 1.0
    %v385 = vrcp.pop %v353
    %v386 = vmul.f32 %v353, %v385
    %v387 = vsub.f32 1.0, %v386
    %v388 = vmul.f32 %v385, %v387
    %v389 = vadd.f32 %v385, %v388
    %vm390 = vweird.f32 %v353
    %vm391 = vweird.f32 %v385
    %vm392 = vmor %vm390, %vm391
    %v393 = vsel %vm392, %v385, %v389
    %v394 = vand.u32 2147483647, %v353
    %vm395 = vcmp.eq.f32.partialorder %v394, 8.507059e+37
    %v396 = vand.u32 %v353, 2147483648
    %v397 = vor.u32 1.1754944e-38, %v396
    %v398 = vsel %vm395, %v397, %v393
    %v399 = vmul.f32 1.0, %v398
    %v400 = vrcp.pop %v354
    %v401 = vmul.f32 %v354, %v400
    %v402 = vsub.f32 1.0, %v401
    %v403 = vmul.f32 %v400, %v402
    %v404 = vadd.f32 %v400, %v403
    %vm405 = vweird.f32 %v354
    %vm406 = vweird.f32 %v400
    %vm407 = vmor %vm405, %vm406
    %v408 = vsel %vm407, %v400, %v404
    %v409 = vand.u32 2147483647, %v354
    %vm410 = vcmp.eq.f32.partialorder %v409, 8.507059e+37
    %v411 = vand.u32 %v354, 2147483648
    %v412 = vor.u32 1.1754944e-38, %v411
    %v413 = vsel %vm410, %v412, %v408
    %v414 = vmul.f32 1.0, %v413
    %v415 = vrcp.pop %v355
    %v416 = vmul.f32 %v355, %v415
    %v417 = vsub.f32 1.0, %v416
    %v418 = vmul.f32 %v415, %v417
    %v419 = vadd.f32 %v415, %v418
    %vm420 = vweird.f32 %v355
    %vm421 = vweird.f32 %v415
    %vm422 = vmor %vm420, %vm421
    %v423 = vsel %vm422, %v415, %v419
    %v424 = vand.u32 2147483647, %v355
    %vm425 = vcmp.eq.f32.partialorder %v424, 8.507059e+37
    %v426 = vand.u32 %v355, 2147483648
    %v427 = vor.u32 1.1754944e-38, %v426
    %v428 = vsel %vm425, %v427, %v423
    %v429 = vmul.f32 1.0, %v428
    %v430 = vrcp.pop %v356
    %v431 = vmul.f32 %v356, %v430
    %v432 = vsub.f32 1.0, %v431
    %v433 = vmul.f32 %v430, %v432
    %v434 = vadd.f32 %v430, %v433
    %vm435 = vweird.f32 %v356
    %vm436 = vweird.f32 %v430
    %vm437 = vmor %vm435, %vm436
    %v438 = vsel %vm437, %v430, %v434
    %v439 = vand.u32 2147483647, %v356
    %vm440 = vcmp.eq.f32.partialorder %v439, 8.507059e+37
    %v441 = vand.u32 %v356, 2147483648
    %v442 = vor.u32 1.1754944e-38, %v441
    %v443 = vsel %vm440, %v442, %v438
    %v444 = vmul.f32 1.0, %v443
    %v445 = vrcp.pop %v357
    %v446 = vmul.f32 %v357, %v445
    %v447 = vsub.f32 1.0, %v446
    %v448 = vmul.f32 %v445, %v447
    %v449 = vadd.f32 %v445, %v448
    %vm450 = vweird.f32 %v357
    %vm451 = vweird.f32 %v445
    %vm452 = vmor %vm450, %vm451
    %v453 = vsel %vm452, %v445, %v449
    %v454 = vand.u32 2147483647, %v357
    %vm455 = vcmp.eq.f32.partialorder %v454, 8.507059e+37
    %v456 = vand.u32 %v357, 2147483648
    %v457 = vor.u32 1.1754944e-38, %v456
    %v458 = vsel %vm455, %v457, %v453
    %v459 = vmul.f32 1.0, %v458
    %v460 = vrcp.pop %v358
    %v461 = vmul.f32 %v358, %v460
    %v462 = vsub.f32 1.0, %v461
    %v463 = vmul.f32 %v460, %v462
    %v464 = vadd.f32 %v460, %v463
    %vm465 = vweird.f32 %v358
    %vm466 = vweird.f32 %v460
    %vm467 = vmor %vm465, %vm466
    %v468 = vsel %vm467, %v460, %v464
    %v469 = vand.u32 2147483647, %v358
    %vm470 = vcmp.eq.f32.partialorder %v469, 8.507059e+37
    %v471 = vand.u32 %v358, 2147483648
    %v472 = vor.u32 1.1754944e-38, %v471
    %v473 = vsel %vm470, %v472, %v468
    %v474 = vmul.f32 1.0, %v473
    %v475 = vrcp.pop %v359
    %v476 = vmul.f32 %v359, %v475
    %v477 = vsub.f32 1.0, %v476
    %v478 = vmul.f32 %v475, %v477
    %v479 = vadd.f32 %v475, %v478
    %vm480 = vweird.f32 %v359
    %vm481 = vweird.f32 %v475
    %vm482 = vmor %vm480, %vm481
    %v483 = vsel %vm482, %v475, %v479
    %v484 = vand.u32 2147483647, %v359
    %vm485 = vcmp.eq.f32.partialorder %v484, 8.507059e+37
    %v486 = vand.u32 %v359, 2147483648
    %v487 = vor.u32 1.1754944e-38, %v486
    %v488 = vsel %vm485, %v487, %v483
    %v489 = vmul.f32 1.0, %v488
    %v490 = vrcp.pop %v360
    %v491 = vmul.f32 %v360, %v490
    %v492 = vsub.f32 1.0, %v491
    %v493 = vmul.f32 %v490, %v492
    %v494 = vadd.f32 %v490, %v493
    %vm495 = vweird.f32 %v360
    %vm496 = vweird.f32 %v490
    %vm497 = vmor %vm495, %vm496
    %v498 = vsel %vm497, %v490, %v494
    %v499 = vand.u32 2147483647, %v360
    %vm500 = vcmp.eq.f32.partialorder %v499, 8.507059e+37
    %v501 = vand.u32 %v360, 2147483648
    %v502 = vor.u32 1.1754944e-38, %v501
    %v503 = vsel %vm500, %v502, %v498
    %v504 = vmul.f32 1.0, %v503
    %v505 = vrcp.pop %v361
    %v506 = vmul.f32 %v361, %v505
    %v507 = vsub.f32 1.0, %v506
    %v508 = vmul.f32 %v505, %v507
    %v509 = vadd.f32 %v505, %v508
    %vm510 = vweird.f32 %v361
    %vm511 = vweird.f32 %v505
    %vm512 = vmor %vm510, %vm511
    %v513 = vsel %vm512, %v505, %v509
    %v514 = vand.u32 2147483647, %v361
    %vm515 = vcmp.eq.f32.partialorder %v514, 8.507059e+37
    %v516 = vand.u32 %v361, 2147483648
    %v517 = vor.u32 1.1754944e-38, %v516
    %v518 = vsel %vm515, %v517, %v513
    %v519 = vmul.f32 1.0, %v518
    %v520 = vrcp.pop %v362
    %v521 = vmul.f32 %v362, %v520
    %v522 = vsub.f32 1.0, %v521
    %v523 = vmul.f32 %v520, %v522
    %v524 = vadd.f32 %v520, %v523
    %vm525 = vweird.f32 %v362
    %vm526 = vweird.f32 %v520
    %vm527 = vmor %vm525, %vm526
    %v528 = vsel %vm527, %v520, %v524
    %v529 = vand.u32 2147483647, %v362
    %vm530 = vcmp.eq.f32.partialorder %v529, 8.507059e+37
    %v531 = vand.u32 %v362, 2147483648
    %v532 = vor.u32 1.1754944e-38, %v531
    %v533 = vsel %vm530, %v532, %v528
    %v534 = vmul.f32 1.0, %v533
    %v535 = vrcp.pop %v363
    %v536 = vmul.f32 %v363, %v535
    %v537 = vsub.f32 1.0, %v536
    %v538 = vmul.f32 %v535, %v537
    %v539 = vadd.f32 %v535, %v538
    %vm540 = vweird.f32 %v363
    %vm541 = vweird.f32 %v535
    %vm542 = vmor %vm540, %vm541
    %v543 = vsel %vm542, %v535, %v539
    %v544 = vand.u32 2147483647, %v363
    %vm545 = vcmp.eq.f32.partialorder %v544, 8.507059e+37
    %v546 = vand.u32 %v363, 2147483648
    %v547 = vor.u32 1.1754944e-38, %v546
    %v548 = vsel %vm545, %v547, %v543
    %v549 = vmul.f32 1.0, %v548
    %v550 = vrcp.pop %v364
    %v551 = vmul.f32 %v364, %v550
    %v552 = vsub.f32 1.0, %v551
    %v553 = vmul.f32 %v550, %v552
    %v554 = vadd.f32 %v550, %v553
    %vm555 = vweird.f32 %v364
    %vm556 = vweird.f32 %v550
    %vm557 = vmor %vm555, %vm556
    %v558 = vsel %vm557, %v550, %v554
    %v559 = vand.u32 2147483647, %v364
    %vm560 = vcmp.eq.f32.partialorder %v559, 8.507059e+37
    %v561 = vand.u32 %v364, 2147483648
    %v562 = vor.u32 1.1754944e-38, %v561
    %v563 = vsel %vm560, %v562, %v558
    %v564 = vmul.f32 1.0, %v563
    %v565 = vrcp.pop %v365
    %v566 = vmul.f32 %v365, %v565
    %v567 = vsub.f32 1.0, %v566
    %v568 = vmul.f32 %v565, %v567
    %v569 = vadd.f32 %v565, %v568
    %vm570 = vweird.f32 %v365
    %vm571 = vweird.f32 %v565
    %vm572 = vmor %vm570, %vm571
    %v573 = vsel %vm572, %v565, %v569
    %v574 = vand.u32 2147483647, %v365
    %vm575 = vcmp.eq.f32.partialorder %v574, 8.507059e+37
    %v576 = vand.u32 %v365, 2147483648
    %v577 = vor.u32 1.1754944e-38, %v576
    %v578 = vsel %vm575, %v577, %v573
    %v579 = vmul.f32 1.0, %v578
    %v580 = vrcp.pop %v366
    %v581 = vmul.f32 %v366, %v580
    %v582 = vsub.f32 1.0, %v581
    %v583 = vmul.f32 %v580, %v582
    %v584 = vadd.f32 %v580, %v583
    %vm585 = vweird.f32 %v366
    %vm586 = vweird.f32 %v580
    %vm587 = vmor %vm585, %vm586
    %v588 = vsel %vm587, %v580, %v584
    %v589 = vand.u32 2147483647, %v366
    %vm590 = vcmp.eq.f32.partialorder %v589, 8.507059e+37
    %v591 = vand.u32 %v366, 2147483648
    %v592 = vor.u32 1.1754944e-38, %v591
    %v593 = vsel %vm590, %v592, %v588
    %v594 = vmul.f32 1.0, %v593
    %v595 = vrcp.pop %v367
    %v596 = vmul.f32 %v367, %v595
    %v597 = vsub.f32 1.0, %v596
    %v598 = vmul.f32 %v595, %v597
    %v599 = vadd.f32 %v595, %v598
    %vm600 = vweird.f32 %v367
    %vm601 = vweird.f32 %v595
    %vm602 = vmor %vm600, %vm601
    %v603 = vsel %vm602, %v595, %v599
    %v604 = vand.u32 2147483647, %v367
    %vm605 = vcmp.eq.f32.partialorder %v604, 8.507059e+37
    %v606 = vand.u32 %v367, 2147483648
    %v607 = vor.u32 1.1754944e-38, %v606
    %v608 = vsel %vm605, %v607, %v603
    %v609 = vmul.f32 1.0, %v608
    %v610 = vrcp.pop %v368
    %v611 = vmul.f32 %v368, %v610
    %v612 = vsub.f32 1.0, %v611
    %v613 = vmul.f32 %v610, %v612
    %v614 = vadd.f32 %v610, %v613
    %vm615 = vweird.f32 %v368
    %vm616 = vweird.f32 %v610
    %vm617 = vmor %vm615, %vm616
    %v618 = vsel %vm617, %v610, %v614
    %v619 = vand.u32 2147483647, %v368
    %vm620 = vcmp.eq.f32.partialorder %v619, 8.507059e+37
    %v621 = vand.u32 %v368, 2147483648
    %v622 = vor.u32 1.1754944e-38, %v621
    %v623 = vsel %vm620, %v622, %v618
    %v624 = vmul.f32 1.0, %v623
    %v625 = vrcp.pop %v369
    %v626 = vmul.f32 %v369, %v625
    %v627 = vsub.f32 1.0, %v626
    %v628 = vmul.f32 %v625, %v627
    %v629 = vadd.f32 %v625, %v628
    %vm630 = vweird.f32 %v369
    %vm631 = vweird.f32 %v625
    %vm632 = vmor %vm630, %vm631
    %v633 = vsel %vm632, %v625, %v629
    %v634 = vand.u32 2147483647, %v369
    %vm635 = vcmp.eq.f32.partialorder %v634, 8.507059e+37
    %v636 = vand.u32 %v369, 2147483648
    %v637 = vor.u32 1.1754944e-38, %v636
    %v638 = vsel %vm635, %v637, %v633
    %v639 = vmul.f32 1.0, %v638
    %v640 = vrcp.pop %v370
    %v641 = vmul.f32 %v370, %v640
    %v642 = vsub.f32 1.0, %v641
    %v643 = vmul.f32 %v640, %v642
    %v644 = vadd.f32 %v640, %v643
    %vm645 = vweird.f32 %v370
    %vm646 = vweird.f32 %v640
    %vm647 = vmor %vm645, %vm646
    %v648 = vsel %vm647, %v640, %v644
    %v649 = vand.u32 2147483647, %v370
    %vm650 = vcmp.eq.f32.partialorder %v649, 8.507059e+37
    %v651 = vand.u32 %v370, 2147483648
    %v652 = vor.u32 1.1754944e-38, %v651
    %v653 = vsel %vm650, %v652, %v648
    %v654 = vmul.f32 1.0, %v653
    %v655 = vrcp.pop %v371
    %v656 = vmul.f32 %v371, %v655
    %v657 = vsub.f32 1.0, %v656
    %v658 = vmul.f32 %v655, %v657
    %v659 = vadd.f32 %v655, %v658
    %vm660 = vweird.f32 %v371
    %vm661 = vweird.f32 %v655
    %vm662 = vmor %vm660, %vm661
    %v663 = vsel %vm662, %v655, %v659
    %v664 = vand.u32 2147483647, %v371
    %vm665 = vcmp.eq.f32.partialorder %v664, 8.507059e+37
    %v666 = vand.u32 %v371, 2147483648
    %v667 = vor.u32 1.1754944e-38, %v666
    %v668 = vsel %vm665, %v667, %v663
    %v669 = vmul.f32 1.0, %v668
    %v670 = vrcp.pop %v372
    %v671 = vmul.f32 %v372, %v670
    %v672 = vsub.f32 1.0, %v671
    %v673 = vmul.f32 %v670, %v672
    %v674 = vadd.f32 %v670, %v673
    %vm675 = vweird.f32 %v372
    %vm676 = vweird.f32 %v670
    %vm677 = vmor %vm675, %vm676
    %v678 = vsel %vm677, %v670, %v674
    %v679 = vand.u32 2147483647, %v372
    %vm680 = vcmp.eq.f32.partialorder %v679, 8.507059e+37
    %v681 = vand.u32 %v372, 2147483648
    %v682 = vor.u32 1.1754944e-38, %v681
    %v683 = vsel %vm680, %v682, %v678
    %v684 = vmul.f32 1.0, %v683
    %v685 = vrcp.pop %v373
    %v686 = vmul.f32 %v373, %v685
    %v687 = vsub.f32 1.0, %v686
    %v688 = vmul.f32 %v685, %v687
    %v689 = vadd.f32 %v685, %v688
    %vm690 = vweird.f32 %v373
    %vm691 = vweird.f32 %v685
    %vm692 = vmor %vm690, %vm691
    %v693 = vsel %vm692, %v685, %v689
    %v694 = vand.u32 2147483647, %v373
    %vm695 = vcmp.eq.f32.partialorder %v694, 8.507059e+37
    %v696 = vand.u32 %v373, 2147483648
    %v697 = vor.u32 1.1754944e-38, %v696
    %v698 = vsel %vm695, %v697, %v693
    %v699 = vmul.f32 1.0, %v698
    %v700 = vrcp.pop %v374
    %v701 = vmul.f32 %v374, %v700
    %v702 = vsub.f32 1.0, %v701
    %v703 = vmul.f32 %v700, %v702
    %v704 = vadd.f32 %v700, %v703
    %vm705 = vweird.f32 %v374
    %vm706 = vweird.f32 %v700
    %vm707 = vmor %vm705, %vm706
    %v708 = vsel %vm707, %v700, %v704
    %v709 = vand.u32 2147483647, %v374
    %vm710 = vcmp.eq.f32.partialorder %v709, 8.507059e+37
    %v711 = vand.u32 %v374, 2147483648
    %v712 = vor.u32 1.1754944e-38, %v711
    %v713 = vsel %vm710, %v712, %v708
    %v714 = vmul.f32 1.0, %v713
    %v715 = vrcp.pop %v375
    %v716 = vmul.f32 %v375, %v715
    %v717 = vsub.f32 1.0, %v716
    %v718 = vmul.f32 %v715, %v717
    %v719 = vadd.f32 %v715, %v718
    %vm720 = vweird.f32 %v375
    %vm721 = vweird.f32 %v715
    %vm722 = vmor %vm720, %vm721
    %v723 = vsel %vm722, %v715, %v719
    %v724 = vand.u32 2147483647, %v375
    %vm725 = vcmp.eq.f32.partialorder %v724, 8.507059e+37
    %v726 = vand.u32 %v375, 2147483648
    %v727 = vor.u32 1.1754944e-38, %v726
    %v728 = vsel %vm725, %v727, %v723
    %v729 = vmul.f32 1.0, %v728
    %v730 = vrcp.pop %v376
    %v731 = vmul.f32 %v376, %v730
    %v732 = vsub.f32 1.0, %v731
    %v733 = vmul.f32 %v730, %v732
    %v734 = vadd.f32 %v730, %v733
    %vm735 = vweird.f32 %v376
    %vm736 = vweird.f32 %v730
    %vm737 = vmor %vm735, %vm736
    %v738 = vsel %vm737, %v730, %v734
    %v739 = vand.u32 2147483647, %v376
    %vm740 = vcmp.eq.f32.partialorder %v739, 8.507059e+37
    %v741 = vand.u32 %v376, 2147483648
    %v742 = vor.u32 1.1754944e-38, %v741
    %v743 = vsel %vm740, %v742, %v738
    %v744 = vmul.f32 1.0, %v743
    %v745 = vrcp.pop %v377
    %v746 = vmul.f32 %v377, %v745
    %v747 = vsub.f32 1.0, %v746
    %v748 = vmul.f32 %v745, %v747
    %v749 = vadd.f32 %v745, %v748
    %vm750 = vweird.f32 %v377
    %vm751 = vweird.f32 %v745
    %vm752 = vmor %vm750, %vm751
    %v753 = vsel %vm752, %v745, %v749
    %v754 = vand.u32 2147483647, %v377
    %vm755 = vcmp.eq.f32.partialorder %v754, 8.507059e+37
    %v756 = vand.u32 %v377, 2147483648
    %v757 = vor.u32 1.1754944e-38, %v756
    %v758 = vsel %vm755, %v757, %v753
    %v759 = vmul.f32 1.0, %v758
    %v760 = vrcp.pop %v378
    %v761 = vmul.f32 %v378, %v760
    %v762 = vsub.f32 1.0, %v761
    %v763 = vmul.f32 %v760, %v762
    %v764 = vadd.f32 %v760, %v763
    %vm765 = vweird.f32 %v378
    %vm766 = vweird.f32 %v760
    %vm767 = vmor %vm765, %vm766
    %v768 = vsel %vm767, %v760, %v764
    %v769 = vand.u32 2147483647, %v378
    %vm770 = vcmp.eq.f32.partialorder %v769, 8.507059e+37
    %v771 = vand.u32 %v378, 2147483648
    %v772 = vor.u32 1.1754944e-38, %v771
    %v773 = vsel %vm770, %v772, %v768
    %v774 = vmul.f32 1.0, %v773
    %v775 = vrcp.pop %v379
    %v776 = vmul.f32 %v379, %v775
    %v777 = vsub.f32 1.0, %v776
    %v778 = vmul.f32 %v775, %v777
    %v779 = vadd.f32 %v775, %v778
    %vm780 = vweird.f32 %v379
    %vm781 = vweird.f32 %v775
    %vm782 = vmor %vm780, %vm781
    %v783 = vsel %vm782, %v775, %v779
    %v784 = vand.u32 2147483647, %v379
    %vm785 = vcmp.eq.f32.partialorder %v784, 8.507059e+37
    %v786 = vand.u32 %v379, 2147483648
    %v787 = vor.u32 1.1754944e-38, %v786
    %v788 = vsel %vm785, %v787, %v783
    %v789 = vmul.f32 1.0, %v788
    %v790 = vrcp.pop %v380
    %v791 = vmul.f32 %v380, %v790
    %v792 = vsub.f32 1.0, %v791
    %v793 = vmul.f32 %v790, %v792
    %v794 = vadd.f32 %v790, %v793
    %vm795 = vweird.f32 %v380
    %vm796 = vweird.f32 %v790
    %vm797 = vmor %vm795, %vm796
    %v798 = vsel %vm797, %v790, %v794
    %v799 = vand.u32 2147483647, %v380
    %vm800 = vcmp.eq.f32.partialorder %v799, 8.507059e+37
    %v801 = vand.u32 %v380, 2147483648
    %v802 = vor.u32 1.1754944e-38, %v801
    %v803 = vsel %vm800, %v802, %v798
    %v804 = vmul.f32 1.0, %v803
    %v805 = vrcp.pop %v381
    %v806 = vmul.f32 %v381, %v805
    %v807 = vsub.f32 1.0, %v806
    %v808 = vmul.f32 %v805, %v807
    %v809 = vadd.f32 %v805, %v808
    %vm810 = vweird.f32 %v381
    %vm811 = vweird.f32 %v805
    %vm812 = vmor %vm810, %vm811
    %v813 = vsel %vm812, %v805, %v809
    %v814 = vand.u32 2147483647, %v381
    %vm815 = vcmp.eq.f32.partialorder %v814, 8.507059e+37
    %v816 = vand.u32 %v381, 2147483648
    %v817 = vor.u32 1.1754944e-38, %v816
    %v818 = vsel %vm815, %v817, %v813
    %v819 = vmul.f32 1.0, %v818
    %v820 = vrcp.pop %v382
    %v821 = vmul.f32 %v382, %v820
    %v822 = vsub.f32 1.0, %v821
    %v823 = vmul.f32 %v820, %v822
    %v824 = vadd.f32 %v820, %v823
    %vm825 = vweird.f32 %v382
    %vm826 = vweird.f32 %v820
    %vm827 = vmor %vm825, %vm826
    %v828 = vsel %vm827, %v820, %v824
    %v829 = vand.u32 2147483647, %v382
    %vm830 = vcmp.eq.f32.partialorder %v829, 8.507059e+37
    %v831 = vand.u32 %v382, 2147483648
    %v832 = vor.u32 1.1754944e-38, %v831
    %v833 = vsel %vm830, %v832, %v828
    %v834 = vmul.f32 1.0, %v833
    %v835 = vrcp.pop %v383
    %v836 = vmul.f32 %v383, %v835
    %v837 = vsub.f32 1.0, %v836
    %v838 = vmul.f32 %v835, %v837
    %v839 = vadd.f32 %v835, %v838
    %vm840 = vweird.f32 %v383
    %vm841 = vweird.f32 %v835
    %vm842 = vmor %vm840, %vm841
    %v843 = vsel %vm842, %v835, %v839
    %v844 = vand.u32 2147483647, %v383
    %vm845 = vcmp.eq.f32.partialorder %v844, 8.507059e+37
    %v846 = vand.u32 %v383, 2147483648
    %v847 = vor.u32 1.1754944e-38, %v846
    %v848 = vsel %vm845, %v847, %v843
    %v849 = vmul.f32 1.0, %v848
    %v850 = vrcp.pop %v384
    %v851 = vmul.f32 %v384, %v850
    %v852 = vsub.f32 1.0, %v851
    %v853 = vmul.f32 %v850, %v852
    %v854 = vadd.f32 %v850, %v853
    %vm855 = vweird.f32 %v384
    %vm856 = vweird.f32 %v850
    %vm857 = vmor %vm855, %vm856
    %v858 = vsel %vm857, %v850, %v854
    %v859 = vand.u32 2147483647, %v384
    %vm860 = vcmp.eq.f32.partialorder %v859, 8.507059e+37
    %v861 = vand.u32 %v384, 2147483648
    %v862 = vor.u32 1.1754944e-38, %v861
    %v863 = vsel %vm860, %v862, %v858
    %v864 = vmul.f32 1.0, %v863
    %v865 = vmul.f32 %v178, %v399
    %v866 = vmul.f32 %v180, %v414
    %v867 = vmul.f32 %v183, %v429
    %v868 = vmul.f32 %v185, %v444
    %v869 = vmul.f32 %v188, %v459
    %v870 = vmul.f32 %v190, %v474
    %v871 = vmul.f32 %v193, %v489
    %v872 = vmul.f32 %v195, %v504
    %v873 = vmul.f32 %v198, %v519
    %v874 = vmul.f32 %v200, %v534
    %v875 = vmul.f32 %v203, %v549
    %v876 = vmul.f32 %v205, %v564
    %v877 = vmul.f32 %v208, %v579
    %v878 = vmul.f32 %v210, %v594
    %v879 = vmul.f32 %v213, %v609
    %v880 = vmul.f32 %v215, %v624
    %v881 = vmul.f32 %v218, %v639
    %v882 = vmul.f32 %v220, %v654
    %v883 = vmul.f32 %v223, %v669
    %v884 = vmul.f32 %v225, %v684
    %v885 = vmul.f32 %v228, %v699
    %v886 = vmul.f32 %v230, %v714
    %v887 = vmul.f32 %v233, %v729
    %v888 = vmul.f32 %v235, %v744
    %v889 = vmul.f32 %v238, %v759
    %v890 = vmul.f32 %v240, %v774
    %v891 = vmul.f32 %v243, %v789
    %v892 = vmul.f32 %v245, %v804
    %v893 = vmul.f32 %v248, %v819
    %v894 = vmul.f32 %v250, %v834
    %v895 = vmul.f32 %v253, %v849
    %v896 = vmul.f32 %v255, %v864
    %v897 = vpack.c.bf16 %v865, %v865
    %v898 = vpack.c.bf16 %v866, %v866
    %v899 = vpack.c.bf16 %v867, %v867
    %v900 = vpack.c.bf16 %v868, %v868
    %v901 = vpack.c.bf16 %v869, %v869
    %v902 = vpack.c.bf16 %v870, %v870
    %v903 = vpack.c.bf16 %v871, %v871
    %v904 = vpack.c.bf16 %v872, %v872
    %v905 = vpack.c.bf16 %v873, %v873
    %v906 = vpack.c.bf16 %v874, %v874
    %v907 = vpack.c.bf16 %v875, %v875
    %v908 = vpack.c.bf16 %v876, %v876
    %v909 = vpack.c.bf16 %v877, %v877
    %v910 = vpack.c.bf16 %v878, %v878
    %v911 = vpack.c.bf16 %v879, %v879
    %v912 = vpack.c.bf16 %v880, %v880
    %v913 = vpack.c.bf16 %v881, %v881
    %v914 = vpack.c.bf16 %v882, %v882
    %v915 = vpack.c.bf16 %v883, %v883
    %v916 = vpack.c.bf16 %v884, %v884
    %v917 = vpack.c.bf16 %v885, %v885
    %v918 = vpack.c.bf16 %v886, %v886
    %v919 = vpack.c.bf16 %v887, %v887
    %v920 = vpack.c.bf16 %v888, %v888
    %v921 = vpack.c.bf16 %v889, %v889
    %v922 = vpack.c.bf16 %v890, %v890
    %v923 = vpack.c.bf16 %v891, %v891
    %v924 = vpack.c.bf16 %v892, %v892
    %v925 = vpack.c.bf16 %v893, %v893
    %v926 = vpack.c.bf16 %v894, %v894
    %v927 = vpack.c.bf16 %v895, %v895
    %v928 = vpack.c.bf16 %v896, %v896
    %929 = vst [vmem:[#allocation2] sm:$0xf] %v897
    %930 = vst [vmem:[#allocation2 + $0x4] sm:$0xf] %v898
    %931 = vst [vmem:[#allocation2 + $0x8] sm:$0xf] %v899
    %932 = vst [vmem:[#allocation2 + $0xc] sm:$0xf] %v900
    %933 = vst [vmem:[#allocation2 + $0x10] sm:$0xf] %v901
    %934 = vst [vmem:[#allocation2 + $0x14] sm:$0xf] %v902
    %935 = vst [vmem:[#allocation2 + $0x18] sm:$0xf] %v903
    %936 = vst [vmem:[#allocation2 + $0x1c] sm:$0xf] %v904
    %937 = vst [vmem:[#allocation2 + $0x20] sm:$0xf] %v905
    %938 = vst [vmem:[#allocation2 + $0x24] sm:$0xf] %v906
    %939 = vst [vmem:[#allocation2 + $0x28] sm:$0xf] %v907
    %940 = vst [vmem:[#allocation2 + $0x2c] sm:$0xf] %v908
    %941 = vst [vmem:[#allocation2 + $0x30] sm:$0xf] %v909
    %942 = vst [vmem:[#allocation2 + $0x34] sm:$0xf] %v910
    %943 = vst [vmem:[#allocation2 + $0x38] sm:$0xf] %v911
    %944 = vst [vmem:[#allocation2 + $0x3c] sm:$0xf] %v912
    %945 = vst [vmem:[#allocation2 + $0x40] sm:$0xf] %v913
    %946 = vst [vmem:[#allocation2 + $0x44] sm:$0xf] %v914
    %947 = vst [vmem:[#allocation2 + $0x48] sm:$0xf] %v915
    %948 = vst [vmem:[#allocation2 + $0x4c] sm:$0xf] %v916
    %949 = vst [vmem:[#allocation2 + $0x50] sm:$0xf] %v917
    %950 = vst [vmem:[#allocation2 + $0x54] sm:$0xf] %v918
    %951 = vst [vmem:[#allocation2 + $0x58] sm:$0xf] %v919
    %952 = vst [vmem:[#allocation2 + $0x5c] sm:$0xf] %v920
    %953 = vst [vmem:[#allocation2 + $0x60] sm:$0xf] %v921
    %954 = vst [vmem:[#allocation2 + $0x64] sm:$0xf] %v922
    %955 = vst [vmem:[#allocation2 + $0x68] sm:$0xf] %v923
    %956 = vst [vmem:[#allocation2 + $0x6c] sm:$0xf] %v924
    %957 = vst [vmem:[#allocation2 + $0x70] sm:$0xf] %v925
    %958 = vst [vmem:[#allocation2 + $0x74] sm:$0xf] %v926
    %959 = vst [vmem:[#allocation2 + $0x78] sm:$0xf] %v927
    %960 = vst [vmem:[#allocation2 + $0x7c] sm:$0xf] %v928
    %v961 = vld [vmem:[%s4] sm:$0xff]
    %v962 = vld [vmem:[%s4 + $0x8] sm:$0xff]
    %v963 = vld [vmem:[%s4 + $0x10] sm:$0xff]
    %v964 = vld [vmem:[%s4 + $0x18] sm:$0xff]
    %v965 = vld [vmem:[%s4 + $0x20] sm:$0xff]
    %v966 = vld [vmem:[%s4 + $0x28] sm:$0xff]
    %v967 = vld [vmem:[%s4 + $0x30] sm:$0xff]
    %v968 = vld [vmem:[%s4 + $0x38] sm:$0xff]
    %v969 = vld [vmem:[%s4 + $0x40] sm:$0xff]
    %v970 = vld [vmem:[%s4 + $0x48] sm:$0xff]
    %v971 = vld [vmem:[%s4 + $0x50] sm:$0xff]
    %v972 = vld [vmem:[%s4 + $0x58] sm:$0xff]
    %v973 = vld [vmem:[%s4 + $0x60] sm:$0xff]
    %v974 = vld [vmem:[%s4 + $0x68] sm:$0xff]
    %v975 = vld [vmem:[%s4 + $0x70] sm:$0xff]
    %v976 = vld [vmem:[%s4 + $0x78] sm:$0xff]
    %v977 = vpack.c.bf16 %v962, %v961
    %v978 = vpack.c.bf16 %v964, %v963
    %v979 = vpack.c.bf16 %v966, %v965
    %v980 = vpack.c.bf16 %v968, %v967
    %v981 = vpack.c.bf16 %v970, %v969
    %v982 = vpack.c.bf16 %v972, %v971
    %v983 = vpack.c.bf16 %v974, %v973
    %v984 = vpack.c.bf16 %v976, %v975
    %v985 = vld [vmem:[%s5] sm:$0x1]
    %v987 = vperm.slane %v985, 0
    %v1021 = vunpack.c.l.b16 %v897
    %v1022 = vunpack.c.l.b16 %v898
    %v1023 = vunpack.c.l.b16 %v899
    %v1024 = vunpack.c.l.b16 %v900
    %v1025 = vunpack.c.l.b16 %v901
    %v1026 = vunpack.c.l.b16 %v902
    %v1027 = vunpack.c.l.b16 %v903
    %v1028 = vunpack.c.l.b16 %v904
    %v1029 = vunpack.c.l.b16 %v905
    %v1030 = vunpack.c.l.b16 %v906
    %v1031 = vunpack.c.l.b16 %v907
    %v1032 = vunpack.c.l.b16 %v908
    %v1033 = vunpack.c.l.b16 %v909
    %v1034 = vunpack.c.l.b16 %v910
    %v1035 = vunpack.c.l.b16 %v911
    %v1036 = vunpack.c.l.b16 %v912
    %v1037 = vunpack.c.l.b16 %v913
    %v1038 = vunpack.c.l.b16 %v914
    %v1039 = vunpack.c.l.b16 %v915
    %v1040 = vunpack.c.l.b16 %v916
    %v1041 = vunpack.c.l.b16 %v917
    %v1042 = vunpack.c.l.b16 %v918
    %v1043 = vunpack.c.l.b16 %v919
    %v1044 = vunpack.c.l.b16 %v920
    %v1045 = vunpack.c.l.b16 %v921
    %v1046 = vunpack.c.l.b16 %v922
    %v1047 = vunpack.c.l.b16 %v923
    %v1048 = vunpack.c.l.b16 %v924
    %v1049 = vunpack.c.l.b16 %v925
    %v1050 = vunpack.c.l.b16 %v926
    %v1051 = vunpack.c.l.b16 %v927
    %v1052 = vunpack.c.l.b16 %v928
    %v1053 = vpack.c.b16 %v1022, %v1021
    %v1054 = vpack.c.b16 %v1024, %v1023
    %v1055 = vpack.c.b16 %v1026, %v1025
    %v1056 = vpack.c.b16 %v1028, %v1027
    %v1057 = vpack.c.b16 %v1030, %v1029
    %v1058 = vpack.c.b16 %v1032, %v1031
    %v1059 = vpack.c.b16 %v1034, %v1033
    %v1060 = vpack.c.b16 %v1036, %v1035
    %v1061 = vpack.c.b16 %v1038, %v1037
    %v1062 = vpack.c.b16 %v1040, %v1039
    %v1063 = vpack.c.b16 %v1042, %v1041
    %v1064 = vpack.c.b16 %v1044, %v1043
    %v1065 = vpack.c.b16 %v1046, %v1045
    %v1066 = vpack.c.b16 %v1048, %v1047
    %v1067 = vpack.c.b16 %v1050, %v1049
    %v1068 = vpack.c.b16 %v1052, %v1051
    %1085 = vmatpush.bf16.msra.mxu0 %v984
    %1086 = vmatpush.bf16.msra.mxu0 %v983
    %1087 = vmatpush.bf16.msra.mxu0 %v982
    %1088 = vmatpush.bf16.msra.mxu0 %v981
    %1089 = vmatpush.bf16.msra.mxu0 %v980
    %1090 = vmatpush.bf16.msra.mxu0 %v979
    %1091 = vmatpush.bf16.msra.mxu0 %v978
    %1092 = vmatpush.bf16.msra.mxu0 %v977
    %1093 = vmatmul.bf16.gmra.mxu0 %v1053
    %v1094 = vpop.f32.mrf.mxu0
    %v1095 = vadd.f32 %v987, %v1094
    %v1096 = vpop.f32.mrf.mxu0
    %v1097 = vadd.f32 %v987, %v1096
    %1098 = vmatmul.bf16.gmra.mxu0 %v1054
    %v1099 = vpop.f32.mrf.mxu0
    %v1100 = vadd.f32 %v987, %v1099
    %v1101 = vpop.f32.mrf.mxu0
    %v1102 = vadd.f32 %v987, %v1101
    %1103 = vmatmul.bf16.gmra.mxu0 %v1055
    %v1104 = vpop.f32.mrf.mxu0
    %v1105 = vadd.f32 %v987, %v1104
    %v1106 = vpop.f32.mrf.mxu0
    %v1107 = vadd.f32 %v987, %v1106
    %1108 = vmatmul.bf16.gmra.mxu0 %v1056
    %v1109 = vpop.f32.mrf.mxu0
    %v1110 = vadd.f32 %v987, %v1109
    %v1111 = vpop.f32.mrf.mxu0
    %v1112 = vadd.f32 %v987, %v1111
    %1113 = vmatmul.bf16.gmra.mxu0 %v1057
    %v1114 = vpop.f32.mrf.mxu0
    %v1115 = vadd.f32 %v987, %v1114
    %v1116 = vpop.f32.mrf.mxu0
    %v1117 = vadd.f32 %v987, %v1116
    %1118 = vmatmul.bf16.gmra.mxu0 %v1058
    %v1119 = vpop.f32.mrf.mxu0
    %v1120 = vadd.f32 %v987, %v1119
    %v1121 = vpop.f32.mrf.mxu0
    %v1122 = vadd.f32 %v987, %v1121
    %1123 = vmatmul.bf16.gmra.mxu0 %v1059
    %v1124 = vpop.f32.mrf.mxu0
    %v1125 = vadd.f32 %v987, %v1124
    %v1126 = vpop.f32.mrf.mxu0
    %v1127 = vadd.f32 %v987, %v1126
    %1128 = vmatmul.bf16.gmra.mxu0 %v1060
    %v1129 = vpop.f32.mrf.mxu0
    %v1130 = vadd.f32 %v987, %v1129
    %v1131 = vpop.f32.mrf.mxu0
    %v1132 = vadd.f32 %v987, %v1131
    %1133 = vmatmul.bf16.gmra.mxu0 %v1061
    %v1134 = vpop.f32.mrf.mxu0
    %v1135 = vadd.f32 %v987, %v1134
    %v1136 = vpop.f32.mrf.mxu0
    %v1137 = vadd.f32 %v987, %v1136
    %1138 = vmatmul.bf16.gmra.mxu0 %v1062
    %v1139 = vpop.f32.mrf.mxu0
    %v1140 = vadd.f32 %v987, %v1139
    %v1141 = vpop.f32.mrf.mxu0
    %v1142 = vadd.f32 %v987, %v1141
    %1143 = vmatmul.bf16.gmra.mxu0 %v1063
    %v1144 = vpop.f32.mrf.mxu0
    %v1145 = vadd.f32 %v987, %v1144
    %v1146 = vpop.f32.mrf.mxu0
    %v1147 = vadd.f32 %v987, %v1146
    %1148 = vmatmul.bf16.gmra.mxu0 %v1064
    %v1149 = vpop.f32.mrf.mxu0
    %v1150 = vadd.f32 %v987, %v1149
    %v1151 = vpop.f32.mrf.mxu0
    %v1152 = vadd.f32 %v987, %v1151
    %1153 = vmatmul.bf16.gmra.mxu0 %v1065
    %v1154 = vpop.f32.mrf.mxu0
    %v1155 = vadd.f32 %v987, %v1154
    %v1156 = vpop.f32.mrf.mxu0
    %v1157 = vadd.f32 %v987, %v1156
    %1158 = vmatmul.bf16.gmra.mxu0 %v1066
    %v1159 = vpop.f32.mrf.mxu0
    %v1160 = vadd.f32 %v987, %v1159
    %v1161 = vpop.f32.mrf.mxu0
    %v1162 = vadd.f32 %v987, %v1161
    %1163 = vmatmul.bf16.gmra.mxu0 %v1067
    %v1164 = vpop.f32.mrf.mxu0
    %v1165 = vadd.f32 %v987, %v1164
    %v1166 = vpop.f32.mrf.mxu0
    %v1167 = vadd.f32 %v987, %v1166
    %1168 = vmatmul.bf16.gmra.mxu0 %v1068
    %v1169 = vpop.f32.mrf.mxu0
    %v1170 = vadd.f32 %v987, %v1169
    %v1171 = vpop.f32.mrf.mxu0
    %v1172 = vadd.f32 %v987, %v1171
    %1173 = vdwg.mxu0
    %v1174 = vxor.u32 %v1095, 2147483648
    %v1175 = vxor.u32 %v1097, 2147483648
    %v1176 = vxor.u32 %v1100, 2147483648
    %v1177 = vxor.u32 %v1102, 2147483648
    %v1178 = vxor.u32 %v1105, 2147483648
    %v1179 = vxor.u32 %v1107, 2147483648
    %v1180 = vxor.u32 %v1110, 2147483648
    %v1181 = vxor.u32 %v1112, 2147483648
    %v1182 = vxor.u32 %v1115, 2147483648
    %v1183 = vxor.u32 %v1117, 2147483648
    %v1184 = vxor.u32 %v1120, 2147483648
    %v1185 = vxor.u32 %v1122, 2147483648
    %v1186 = vxor.u32 %v1125, 2147483648
    %v1187 = vxor.u32 %v1127, 2147483648
    %v1188 = vxor.u32 %v1130, 2147483648
    %v1189 = vxor.u32 %v1132, 2147483648
    %v1190 = vxor.u32 %v1135, 2147483648
    %v1191 = vxor.u32 %v1137, 2147483648
    %v1192 = vxor.u32 %v1140, 2147483648
    %v1193 = vxor.u32 %v1142, 2147483648
    %v1194 = vxor.u32 %v1145, 2147483648
    %v1195 = vxor.u32 %v1147, 2147483648
    %v1196 = vxor.u32 %v1150, 2147483648
    %v1197 = vxor.u32 %v1152, 2147483648
    %v1198 = vxor.u32 %v1155, 2147483648
    %v1199 = vxor.u32 %v1157, 2147483648
    %v1200 = vxor.u32 %v1160, 2147483648
    %v1201 = vxor.u32 %v1162, 2147483648
    %v1202 = vxor.u32 %v1165, 2147483648
    %v1203 = vxor.u32 %v1167, 2147483648
    %v1204 = vxor.u32 %v1170, 2147483648
    %v1205 = vxor.u32 %v1172, 2147483648
    %v1206 = vmul.f32 %v1174, 1.442695
    %v1207 = vpow.pop %v1206
    %v1208 = vmul.f32 %v1175, 1.442695
    %v1209 = vpow.pop %v1208
    %v1210 = vmul.f32 %v1176, 1.442695
    %v1211 = vpow.pop %v1210
    %v1212 = vmul.f32 %v1177, 1.442695
    %v1213 = vpow.pop %v1212
    %v1214 = vmul.f32 %v1178, 1.442695
    %v1215 = vpow.pop %v1214
    %v1216 = vmul.f32 %v1179, 1.442695
    %v1217 = vpow.pop %v1216
    %v1218 = vmul.f32 %v1180, 1.442695
    %v1219 = vpow.pop %v1218
    %v1220 = vmul.f32 %v1181, 1.442695
    %v1221 = vpow.pop %v1220
    %v1222 = vmul.f32 %v1182, 1.442695
    %v1223 = vpow.pop %v1222
    %v1224 = vmul.f32 %v1183, 1.442695
    %v1225 = vpow.pop %v1224
    %v1226 = vmul.f32 %v1184, 1.442695
    %v1227 = vpow.pop %v1226
    %v1228 = vmul.f32 %v1185, 1.442695
    %v1229 = vpow.pop %v1228
    %v1230 = vmul.f32 %v1186, 1.442695
    %v1231 = vpow.pop %v1230
    %v1232 = vmul.f32 %v1187, 1.442695
    %v1233 = vpow.pop %v1232
    %v1234 = vmul.f32 %v1188, 1.442695
    %v1235 = vpow.pop %v1234
    %v1236 = vmul.f32 %v1189, 1.442695
    %v1237 = vpow.pop %v1236
    %v1238 = vmul.f32 %v1190, 1.442695
    %v1239 = vpow.pop %v1238
    %v1240 = vmul.f32 %v1191, 1.442695
    %v1241 = vpow.pop %v1240
    %v1242 = vmul.f32 %v1192, 1.442695
    %v1243 = vpow.pop %v1242
    %v1244 = vmul.f32 %v1193, 1.442695
    %v1245 = vpow.pop %v1244
    %v1246 = vmul.f32 %v1194, 1.442695
    %v1247 = vpow.pop %v1246
    %v1248 = vmul.f32 %v1195, 1.442695
    %v1249 = vpow.pop %v1248
    %v1250 = vmul.f32 %v1196, 1.442695
    %v1251 = vpow.pop %v1250
    %v1252 = vmul.f32 %v1197, 1.442695
    %v1253 = vpow.pop %v1252
    %v1254 = vmul.f32 %v1198, 1.442695
    %v1255 = vpow.pop %v1254
    %v1256 = vmul.f32 %v1199, 1.442695
    %v1257 = vpow.pop %v1256
    %v1258 = vmul.f32 %v1200, 1.442695
    %v1259 = vpow.pop %v1258
    %v1260 = vmul.f32 %v1201, 1.442695
    %v1261 = vpow.pop %v1260
    %v1262 = vmul.f32 %v1202, 1.442695
    %v1263 = vpow.pop %v1262
    %v1264 = vmul.f32 %v1203, 1.442695
    %v1265 = vpow.pop %v1264
    %v1266 = vmul.f32 %v1204, 1.442695
    %v1267 = vpow.pop %v1266
    %v1268 = vmul.f32 %v1205, 1.442695
    %v1269 = vpow.pop %v1268
    %v1270 = vadd.f32 %v1207, 1.0
    %v1271 = vadd.f32 %v1209, 1.0
    %v1272 = vadd.f32 %v1211, 1.0
    %v1273 = vadd.f32 %v1213, 1.0
    %v1274 = vadd.f32 %v1215, 1.0
    %v1275 = vadd.f32 %v1217, 1.0
    %v1276 = vadd.f32 %v1219, 1.0
    %v1277 = vadd.f32 %v1221, 1.0
    %v1278 = vadd.f32 %v1223, 1.0
    %v1279 = vadd.f32 %v1225, 1.0
    %v1280 = vadd.f32 %v1227, 1.0
    %v1281 = vadd.f32 %v1229, 1.0
    %v1282 = vadd.f32 %v1231, 1.0
    %v1283 = vadd.f32 %v1233, 1.0
    %v1284 = vadd.f32 %v1235, 1.0
    %v1285 = vadd.f32 %v1237, 1.0
    %v1286 = vadd.f32 %v1239, 1.0
    %v1287 = vadd.f32 %v1241, 1.0
    %v1288 = vadd.f32 %v1243, 1.0
    %v1289 = vadd.f32 %v1245, 1.0
    %v1290 = vadd.f32 %v1247, 1.0
    %v1291 = vadd.f32 %v1249, 1.0
    %v1292 = vadd.f32 %v1251, 1.0
    %v1293 = vadd.f32 %v1253, 1.0
    %v1294 = vadd.f32 %v1255, 1.0
    %v1295 = vadd.f32 %v1257, 1.0
    %v1296 = vadd.f32 %v1259, 1.0
    %v1297 = vadd.f32 %v1261, 1.0
    %v1298 = vadd.f32 %v1263, 1.0
    %v1299 = vadd.f32 %v1265, 1.0
    %v1300 = vadd.f32 %v1267, 1.0
    %v1301 = vadd.f32 %v1269, 1.0
    %v1302 = vrcp.pop %v1270
    %v1303 = vmul.f32 %v1270, %v1302
    %v1304 = vsub.f32 1.0, %v1303
    %v1305 = vmul.f32 %v1302, %v1304
    %v1306 = vadd.f32 %v1302, %v1305
    %vm1307 = vweird.f32 %v1270
    %vm1308 = vweird.f32 %v1302
    %vm1309 = vmor %vm1307, %vm1308
    %v1310 = vsel %vm1309, %v1302, %v1306
    %v1311 = vand.u32 2147483647, %v1270
    %vm1312 = vcmp.eq.f32.partialorder %v1311, 8.507059e+37
    %v1313 = vand.u32 %v1270, 2147483648
    %v1314 = vor.u32 1.1754944e-38, %v1313
    %v1315 = vsel %vm1312, %v1314, %v1310
    %v1316 = vmul.f32 1.0, %v1315
    %v1317 = vrcp.pop %v1271
    %v1318 = vmul.f32 %v1271, %v1317
    %v1319 = vsub.f32 1.0, %v1318
    %v1320 = vmul.f32 %v1317, %v1319
    %v1321 = vadd.f32 %v1317, %v1320
    %vm1322 = vweird.f32 %v1271
    %vm1323 = vweird.f32 %v1317
    %vm1324 = vmor %vm1322, %vm1323
    %v1325 = vsel %vm1324, %v1317, %v1321
    %v1326 = vand.u32 2147483647, %v1271
    %vm1327 = vcmp.eq.f32.partialorder %v1326, 8.507059e+37
    %v1328 = vand.u32 %v1271, 2147483648
    %v1329 = vor.u32 1.1754944e-38, %v1328
    %v1330 = vsel %vm1327, %v1329, %v1325
    %v1331 = vmul.f32 1.0, %v1330
    %v1332 = vrcp.pop %v1272
    %v1333 = vmul.f32 %v1272, %v1332
    %v1334 = vsub.f32 1.0, %v1333
    %v1335 = vmul.f32 %v1332, %v1334
    %v1336 = vadd.f32 %v1332, %v1335
    %vm1337 = vweird.f32 %v1272
    %vm1338 = vweird.f32 %v1332
    %vm1339 = vmor %vm1337, %vm1338
    %v1340 = vsel %vm1339, %v1332, %v1336
    %v1341 = vand.u32 2147483647, %v1272
    %vm1342 = vcmp.eq.f32.partialorder %v1341, 8.507059e+37
    %v1343 = vand.u32 %v1272, 2147483648
    %v1344 = vor.u32 1.1754944e-38, %v1343
    %v1345 = vsel %vm1342, %v1344, %v1340
    %v1346 = vmul.f32 1.0, %v1345
    %v1347 = vrcp.pop %v1273
    %v1348 = vmul.f32 %v1273, %v1347
    %v1349 = vsub.f32 1.0, %v1348
    %v1350 = vmul.f32 %v1347, %v1349
    %v1351 = vadd.f32 %v1347, %v1350
    %vm1352 = vweird.f32 %v1273
    %vm1353 = vweird.f32 %v1347
    %vm1354 = vmor %vm1352, %vm1353
    %v1355 = vsel %vm1354, %v1347, %v1351
    %v1356 = vand.u32 2147483647, %v1273
    %vm1357 = vcmp.eq.f32.partialorder %v1356, 8.507059e+37
    %v1358 = vand.u32 %v1273, 2147483648
    %v1359 = vor.u32 1.1754944e-38, %v1358
    %v1360 = vsel %vm1357, %v1359, %v1355
    %v1361 = vmul.f32 1.0, %v1360
    %v1362 = vrcp.pop %v1274
    %v1363 = vmul.f32 %v1274, %v1362
    %v1364 = vsub.f32 1.0, %v1363
    %v1365 = vmul.f32 %v1362, %v1364
    %v1366 = vadd.f32 %v1362, %v1365
    %vm1367 = vweird.f32 %v1274
    %vm1368 = vweird.f32 %v1362
    %vm1369 = vmor %vm1367, %vm1368
    %v1370 = vsel %vm1369, %v1362, %v1366
    %v1371 = vand.u32 2147483647, %v1274
    %vm1372 = vcmp.eq.f32.partialorder %v1371, 8.507059e+37
    %v1373 = vand.u32 %v1274, 2147483648
    %v1374 = vor.u32 1.1754944e-38, %v1373
    %v1375 = vsel %vm1372, %v1374, %v1370
    %v1376 = vmul.f32 1.0, %v1375
    %v1377 = vrcp.pop %v1275
    %v1378 = vmul.f32 %v1275, %v1377
    %v1379 = vsub.f32 1.0, %v1378
    %v1380 = vmul.f32 %v1377, %v1379
    %v1381 = vadd.f32 %v1377, %v1380
    %vm1382 = vweird.f32 %v1275
    %vm1383 = vweird.f32 %v1377
    %vm1384 = vmor %vm1382, %vm1383
    %v1385 = vsel %vm1384, %v1377, %v1381
    %v1386 = vand.u32 2147483647, %v1275
    %vm1387 = vcmp.eq.f32.partialorder %v1386, 8.507059e+37
    %v1388 = vand.u32 %v1275, 2147483648
    %v1389 = vor.u32 1.1754944e-38, %v1388
    %v1390 = vsel %vm1387, %v1389, %v1385
    %v1391 = vmul.f32 1.0, %v1390
    %v1392 = vrcp.pop %v1276
    %v1393 = vmul.f32 %v1276, %v1392
    %v1394 = vsub.f32 1.0, %v1393
    %v1395 = vmul.f32 %v1392, %v1394
    %v1396 = vadd.f32 %v1392, %v1395
    %vm1397 = vweird.f32 %v1276
    %vm1398 = vweird.f32 %v1392
    %vm1399 = vmor %vm1397, %vm1398
    %v1400 = vsel %vm1399, %v1392, %v1396
    %v1401 = vand.u32 2147483647, %v1276
    %vm1402 = vcmp.eq.f32.partialorder %v1401, 8.507059e+37
    %v1403 = vand.u32 %v1276, 2147483648
    %v1404 = vor.u32 1.1754944e-38, %v1403
    %v1405 = vsel %vm1402, %v1404, %v1400
    %v1406 = vmul.f32 1.0, %v1405
    %v1407 = vrcp.pop %v1277
    %v1408 = vmul.f32 %v1277, %v1407
    %v1409 = vsub.f32 1.0, %v1408
    %v1410 = vmul.f32 %v1407, %v1409
    %v1411 = vadd.f32 %v1407, %v1410
    %vm1412 = vweird.f32 %v1277
    %vm1413 = vweird.f32 %v1407
    %vm1414 = vmor %vm1412, %vm1413
    %v1415 = vsel %vm1414, %v1407, %v1411
    %v1416 = vand.u32 2147483647, %v1277
    %vm1417 = vcmp.eq.f32.partialorder %v1416, 8.507059e+37
    %v1418 = vand.u32 %v1277, 2147483648
    %v1419 = vor.u32 1.1754944e-38, %v1418
    %v1420 = vsel %vm1417, %v1419, %v1415
    %v1421 = vmul.f32 1.0, %v1420
    %v1422 = vrcp.pop %v1278
    %v1423 = vmul.f32 %v1278, %v1422
    %v1424 = vsub.f32 1.0, %v1423
    %v1425 = vmul.f32 %v1422, %v1424
    %v1426 = vadd.f32 %v1422, %v1425
    %vm1427 = vweird.f32 %v1278
    %vm1428 = vweird.f32 %v1422
    %vm1429 = vmor %vm1427, %vm1428
    %v1430 = vsel %vm1429, %v1422, %v1426
    %v1431 = vand.u32 2147483647, %v1278
    %vm1432 = vcmp.eq.f32.partialorder %v1431, 8.507059e+37
    %v1433 = vand.u32 %v1278, 2147483648
    %v1434 = vor.u32 1.1754944e-38, %v1433
    %v1435 = vsel %vm1432, %v1434, %v1430
    %v1436 = vmul.f32 1.0, %v1435
    %v1437 = vrcp.pop %v1279
    %v1438 = vmul.f32 %v1279, %v1437
    %v1439 = vsub.f32 1.0, %v1438
    %v1440 = vmul.f32 %v1437, %v1439
    %v1441 = vadd.f32 %v1437, %v1440
    %vm1442 = vweird.f32 %v1279
    %vm1443 = vweird.f32 %v1437
    %vm1444 = vmor %vm1442, %vm1443
    %v1445 = vsel %vm1444, %v1437, %v1441
    %v1446 = vand.u32 2147483647, %v1279
    %vm1447 = vcmp.eq.f32.partialorder %v1446, 8.507059e+37
    %v1448 = vand.u32 %v1279, 2147483648
    %v1449 = vor.u32 1.1754944e-38, %v1448
    %v1450 = vsel %vm1447, %v1449, %v1445
    %v1451 = vmul.f32 1.0, %v1450
    %v1452 = vrcp.pop %v1280
    %v1453 = vmul.f32 %v1280, %v1452
    %v1454 = vsub.f32 1.0, %v1453
    %v1455 = vmul.f32 %v1452, %v1454
    %v1456 = vadd.f32 %v1452, %v1455
    %vm1457 = vweird.f32 %v1280
    %vm1458 = vweird.f32 %v1452
    %vm1459 = vmor %vm1457, %vm1458
    %v1460 = vsel %vm1459, %v1452, %v1456
    %v1461 = vand.u32 2147483647, %v1280
    %vm1462 = vcmp.eq.f32.partialorder %v1461, 8.507059e+37
    %v1463 = vand.u32 %v1280, 2147483648
    %v1464 = vor.u32 1.1754944e-38, %v1463
    %v1465 = vsel %vm1462, %v1464, %v1460
    %v1466 = vmul.f32 1.0, %v1465
    %v1467 = vrcp.pop %v1281
    %v1468 = vmul.f32 %v1281, %v1467
    %v1469 = vsub.f32 1.0, %v1468
    %v1470 = vmul.f32 %v1467, %v1469
    %v1471 = vadd.f32 %v1467, %v1470
    %vm1472 = vweird.f32 %v1281
    %vm1473 = vweird.f32 %v1467
    %vm1474 = vmor %vm1472, %vm1473
    %v1475 = vsel %vm1474, %v1467, %v1471
    %v1476 = vand.u32 2147483647, %v1281
    %vm1477 = vcmp.eq.f32.partialorder %v1476, 8.507059e+37
    %v1478 = vand.u32 %v1281, 2147483648
    %v1479 = vor.u32 1.1754944e-38, %v1478
    %v1480 = vsel %vm1477, %v1479, %v1475
    %v1481 = vmul.f32 1.0, %v1480
    %v1482 = vrcp.pop %v1282
    %v1483 = vmul.f32 %v1282, %v1482
    %v1484 = vsub.f32 1.0, %v1483
    %v1485 = vmul.f32 %v1482, %v1484
    %v1486 = vadd.f32 %v1482, %v1485
    %vm1487 = vweird.f32 %v1282
    %vm1488 = vweird.f32 %v1482
    %vm1489 = vmor %vm1487, %vm1488
    %v1490 = vsel %vm1489, %v1482, %v1486
    %v1491 = vand.u32 2147483647, %v1282
    %vm1492 = vcmp.eq.f32.partialorder %v1491, 8.507059e+37
    %v1493 = vand.u32 %v1282, 2147483648
    %v1494 = vor.u32 1.1754944e-38, %v1493
    %v1495 = vsel %vm1492, %v1494, %v1490
    %v1496 = vmul.f32 1.0, %v1495
    %v1497 = vrcp.pop %v1283
    %v1498 = vmul.f32 %v1283, %v1497
    %v1499 = vsub.f32 1.0, %v1498
    %v1500 = vmul.f32 %v1497, %v1499
    %v1501 = vadd.f32 %v1497, %v1500
    %vm1502 = vweird.f32 %v1283
    %vm1503 = vweird.f32 %v1497
    %vm1504 = vmor %vm1502, %vm1503
    %v1505 = vsel %vm1504, %v1497, %v1501
    %v1506 = vand.u32 2147483647, %v1283
    %vm1507 = vcmp.eq.f32.partialorder %v1506, 8.507059e+37
    %v1508 = vand.u32 %v1283, 2147483648
    %v1509 = vor.u32 1.1754944e-38, %v1508
    %v1510 = vsel %vm1507, %v1509, %v1505
    %v1511 = vmul.f32 1.0, %v1510
    %v1512 = vrcp.pop %v1284
    %v1513 = vmul.f32 %v1284, %v1512
    %v1514 = vsub.f32 1.0, %v1513
    %v1515 = vmul.f32 %v1512, %v1514
    %v1516 = vadd.f32 %v1512, %v1515
    %vm1517 = vweird.f32 %v1284
    %vm1518 = vweird.f32 %v1512
    %vm1519 = vmor %vm1517, %vm1518
    %v1520 = vsel %vm1519, %v1512, %v1516
    %v1521 = vand.u32 2147483647, %v1284
    %vm1522 = vcmp.eq.f32.partialorder %v1521, 8.507059e+37
    %v1523 = vand.u32 %v1284, 2147483648
    %v1524 = vor.u32 1.1754944e-38, %v1523
    %v1525 = vsel %vm1522, %v1524, %v1520
    %v1526 = vmul.f32 1.0, %v1525
    %v1527 = vrcp.pop %v1285
    %v1528 = vmul.f32 %v1285, %v1527
    %v1529 = vsub.f32 1.0, %v1528
    %v1530 = vmul.f32 %v1527, %v1529
    %v1531 = vadd.f32 %v1527, %v1530
    %vm1532 = vweird.f32 %v1285
    %vm1533 = vweird.f32 %v1527
    %vm1534 = vmor %vm1532, %vm1533
    %v1535 = vsel %vm1534, %v1527, %v1531
    %v1536 = vand.u32 2147483647, %v1285
    %vm1537 = vcmp.eq.f32.partialorder %v1536, 8.507059e+37
    %v1538 = vand.u32 %v1285, 2147483648
    %v1539 = vor.u32 1.1754944e-38, %v1538
    %v1540 = vsel %vm1537, %v1539, %v1535
    %v1541 = vmul.f32 1.0, %v1540
    %v1542 = vrcp.pop %v1286
    %v1543 = vmul.f32 %v1286, %v1542
    %v1544 = vsub.f32 1.0, %v1543
    %v1545 = vmul.f32 %v1542, %v1544
    %v1546 = vadd.f32 %v1542, %v1545
    %vm1547 = vweird.f32 %v1286
    %vm1548 = vweird.f32 %v1542
    %vm1549 = vmor %vm1547, %vm1548
    %v1550 = vsel %vm1549, %v1542, %v1546
    %v1551 = vand.u32 2147483647, %v1286
    %vm1552 = vcmp.eq.f32.partialorder %v1551, 8.507059e+37
    %v1553 = vand.u32 %v1286, 2147483648
    %v1554 = vor.u32 1.1754944e-38, %v1553
    %v1555 = vsel %vm1552, %v1554, %v1550
    %v1556 = vmul.f32 1.0, %v1555
    %v1557 = vrcp.pop %v1287
    %v1558 = vmul.f32 %v1287, %v1557
    %v1559 = vsub.f32 1.0, %v1558
    %v1560 = vmul.f32 %v1557, %v1559
    %v1561 = vadd.f32 %v1557, %v1560
    %vm1562 = vweird.f32 %v1287
    %vm1563 = vweird.f32 %v1557
    %vm1564 = vmor %vm1562, %vm1563
    %v1565 = vsel %vm1564, %v1557, %v1561
    %v1566 = vand.u32 2147483647, %v1287
    %vm1567 = vcmp.eq.f32.partialorder %v1566, 8.507059e+37
    %v1568 = vand.u32 %v1287, 2147483648
    %v1569 = vor.u32 1.1754944e-38, %v1568
    %v1570 = vsel %vm1567, %v1569, %v1565
    %v1571 = vmul.f32 1.0, %v1570
    %v1572 = vrcp.pop %v1288
    %v1573 = vmul.f32 %v1288, %v1572
    %v1574 = vsub.f32 1.0, %v1573
    %v1575 = vmul.f32 %v1572, %v1574
    %v1576 = vadd.f32 %v1572, %v1575
    %vm1577 = vweird.f32 %v1288
    %vm1578 = vweird.f32 %v1572
    %vm1579 = vmor %vm1577, %vm1578
    %v1580 = vsel %vm1579, %v1572, %v1576
    %v1581 = vand.u32 2147483647, %v1288
    %vm1582 = vcmp.eq.f32.partialorder %v1581, 8.507059e+37
    %v1583 = vand.u32 %v1288, 2147483648
    %v1584 = vor.u32 1.1754944e-38, %v1583
    %v1585 = vsel %vm1582, %v1584, %v1580
    %v1586 = vmul.f32 1.0, %v1585
    %v1587 = vrcp.pop %v1289
    %v1588 = vmul.f32 %v1289, %v1587
    %v1589 = vsub.f32 1.0, %v1588
    %v1590 = vmul.f32 %v1587, %v1589
    %v1591 = vadd.f32 %v1587, %v1590
    %vm1592 = vweird.f32 %v1289
    %vm1593 = vweird.f32 %v1587
    %vm1594 = vmor %vm1592, %vm1593
    %v1595 = vsel %vm1594, %v1587, %v1591
    %v1596 = vand.u32 2147483647, %v1289
    %vm1597 = vcmp.eq.f32.partialorder %v1596, 8.507059e+37
    %v1598 = vand.u32 %v1289, 2147483648
    %v1599 = vor.u32 1.1754944e-38, %v1598
    %v1600 = vsel %vm1597, %v1599, %v1595
    %v1601 = vmul.f32 1.0, %v1600
    %v1602 = vrcp.pop %v1290
    %v1603 = vmul.f32 %v1290, %v1602
    %v1604 = vsub.f32 1.0, %v1603
    %v1605 = vmul.f32 %v1602, %v1604
    %v1606 = vadd.f32 %v1602, %v1605
    %vm1607 = vweird.f32 %v1290
    %vm1608 = vweird.f32 %v1602
    %vm1609 = vmor %vm1607, %vm1608
    %v1610 = vsel %vm1609, %v1602, %v1606
    %v1611 = vand.u32 2147483647, %v1290
    %vm1612 = vcmp.eq.f32.partialorder %v1611, 8.507059e+37
    %v1613 = vand.u32 %v1290, 2147483648
    %v1614 = vor.u32 1.1754944e-38, %v1613
    %v1615 = vsel %vm1612, %v1614, %v1610
    %v1616 = vmul.f32 1.0, %v1615
    %v1617 = vrcp.pop %v1291
    %v1618 = vmul.f32 %v1291, %v1617
    %v1619 = vsub.f32 1.0, %v1618
    %v1620 = vmul.f32 %v1617, %v1619
    %v1621 = vadd.f32 %v1617, %v1620
    %vm1622 = vweird.f32 %v1291
    %vm1623 = vweird.f32 %v1617
    %vm1624 = vmor %vm1622, %vm1623
    %v1625 = vsel %vm1624, %v1617, %v1621
    %v1626 = vand.u32 2147483647, %v1291
    %vm1627 = vcmp.eq.f32.partialorder %v1626, 8.507059e+37
    %v1628 = vand.u32 %v1291, 2147483648
    %v1629 = vor.u32 1.1754944e-38, %v1628
    %v1630 = vsel %vm1627, %v1629, %v1625
    %v1631 = vmul.f32 1.0, %v1630
    %v1632 = vrcp.pop %v1292
    %v1633 = vmul.f32 %v1292, %v1632
    %v1634 = vsub.f32 1.0, %v1633
    %v1635 = vmul.f32 %v1632, %v1634
    %v1636 = vadd.f32 %v1632, %v1635
    %vm1637 = vweird.f32 %v1292
    %vm1638 = vweird.f32 %v1632
    %vm1639 = vmor %vm1637, %vm1638
    %v1640 = vsel %vm1639, %v1632, %v1636
    %v1641 = vand.u32 2147483647, %v1292
    %vm1642 = vcmp.eq.f32.partialorder %v1641, 8.507059e+37
    %v1643 = vand.u32 %v1292, 2147483648
    %v1644 = vor.u32 1.1754944e-38, %v1643
    %v1645 = vsel %vm1642, %v1644, %v1640
    %v1646 = vmul.f32 1.0, %v1645
    %v1647 = vrcp.pop %v1293
    %v1648 = vmul.f32 %v1293, %v1647
    %v1649 = vsub.f32 1.0, %v1648
    %v1650 = vmul.f32 %v1647, %v1649
    %v1651 = vadd.f32 %v1647, %v1650
    %vm1652 = vweird.f32 %v1293
    %vm1653 = vweird.f32 %v1647
    %vm1654 = vmor %vm1652, %vm1653
    %v1655 = vsel %vm1654, %v1647, %v1651
    %v1656 = vand.u32 2147483647, %v1293
    %vm1657 = vcmp.eq.f32.partialorder %v1656, 8.507059e+37
    %v1658 = vand.u32 %v1293, 2147483648
    %v1659 = vor.u32 1.1754944e-38, %v1658
    %v1660 = vsel %vm1657, %v1659, %v1655
    %v1661 = vmul.f32 1.0, %v1660
    %v1662 = vrcp.pop %v1294
    %v1663 = vmul.f32 %v1294, %v1662
    %v1664 = vsub.f32 1.0, %v1663
    %v1665 = vmul.f32 %v1662, %v1664
    %v1666 = vadd.f32 %v1662, %v1665
    %vm1667 = vweird.f32 %v1294
    %vm1668 = vweird.f32 %v1662
    %vm1669 = vmor %vm1667, %vm1668
    %v1670 = vsel %vm1669, %v1662, %v1666
    %v1671 = vand.u32 2147483647, %v1294
    %vm1672 = vcmp.eq.f32.partialorder %v1671, 8.507059e+37
    %v1673 = vand.u32 %v1294, 2147483648
    %v1674 = vor.u32 1.1754944e-38, %v1673
    %v1675 = vsel %vm1672, %v1674, %v1670
    %v1676 = vmul.f32 1.0, %v1675
    %v1677 = vrcp.pop %v1295
    %v1678 = vmul.f32 %v1295, %v1677
    %v1679 = vsub.f32 1.0, %v1678
    %v1680 = vmul.f32 %v1677, %v1679
    %v1681 = vadd.f32 %v1677, %v1680
    %vm1682 = vweird.f32 %v1295
    %vm1683 = vweird.f32 %v1677
    %vm1684 = vmor %vm1682, %vm1683
    %v1685 = vsel %vm1684, %v1677, %v1681
    %v1686 = vand.u32 2147483647, %v1295
    %vm1687 = vcmp.eq.f32.partialorder %v1686, 8.507059e+37
    %v1688 = vand.u32 %v1295, 2147483648
    %v1689 = vor.u32 1.1754944e-38, %v1688
    %v1690 = vsel %vm1687, %v1689, %v1685
    %v1691 = vmul.f32 1.0, %v1690
    %v1692 = vrcp.pop %v1296
    %v1693 = vmul.f32 %v1296, %v1692
    %v1694 = vsub.f32 1.0, %v1693
    %v1695 = vmul.f32 %v1692, %v1694
    %v1696 = vadd.f32 %v1692, %v1695
    %vm1697 = vweird.f32 %v1296
    %vm1698 = vweird.f32 %v1692
    %vm1699 = vmor %vm1697, %vm1698
    %v1700 = vsel %vm1699, %v1692, %v1696
    %v1701 = vand.u32 2147483647, %v1296
    %vm1702 = vcmp.eq.f32.partialorder %v1701, 8.507059e+37
    %v1703 = vand.u32 %v1296, 2147483648
    %v1704 = vor.u32 1.1754944e-38, %v1703
    %v1705 = vsel %vm1702, %v1704, %v1700
    %v1706 = vmul.f32 1.0, %v1705
    %v1707 = vrcp.pop %v1297
    %v1708 = vmul.f32 %v1297, %v1707
    %v1709 = vsub.f32 1.0, %v1708
    %v1710 = vmul.f32 %v1707, %v1709
    %v1711 = vadd.f32 %v1707, %v1710
    %vm1712 = vweird.f32 %v1297
    %vm1713 = vweird.f32 %v1707
    %vm1714 = vmor %vm1712, %vm1713
    %v1715 = vsel %vm1714, %v1707, %v1711
    %v1716 = vand.u32 2147483647, %v1297
    %vm1717 = vcmp.eq.f32.partialorder %v1716, 8.507059e+37
    %v1718 = vand.u32 %v1297, 2147483648
    %v1719 = vor.u32 1.1754944e-38, %v1718
    %v1720 = vsel %vm1717, %v1719, %v1715
    %v1721 = vmul.f32 1.0, %v1720
    %v1722 = vrcp.pop %v1298
    %v1723 = vmul.f32 %v1298, %v1722
    %v1724 = vsub.f32 1.0, %v1723
    %v1725 = vmul.f32 %v1722, %v1724
    %v1726 = vadd.f32 %v1722, %v1725
    %vm1727 = vweird.f32 %v1298
    %vm1728 = vweird.f32 %v1722
    %vm1729 = vmor %vm1727, %vm1728
    %v1730 = vsel %vm1729, %v1722, %v1726
    %v1731 = vand.u32 2147483647, %v1298
    %vm1732 = vcmp.eq.f32.partialorder %v1731, 8.507059e+37
    %v1733 = vand.u32 %v1298, 2147483648
    %v1734 = vor.u32 1.1754944e-38, %v1733
    %v1735 = vsel %vm1732, %v1734, %v1730
    %v1736 = vmul.f32 1.0, %v1735
    %v1737 = vrcp.pop %v1299
    %v1738 = vmul.f32 %v1299, %v1737
    %v1739 = vsub.f32 1.0, %v1738
    %v1740 = vmul.f32 %v1737, %v1739
    %v1741 = vadd.f32 %v1737, %v1740
    %vm1742 = vweird.f32 %v1299
    %vm1743 = vweird.f32 %v1737
    %vm1744 = vmor %vm1742, %vm1743
    %v1745 = vsel %vm1744, %v1737, %v1741
    %v1746 = vand.u32 2147483647, %v1299
    %vm1747 = vcmp.eq.f32.partialorder %v1746, 8.507059e+37
    %v1748 = vand.u32 %v1299, 2147483648
    %v1749 = vor.u32 1.1754944e-38, %v1748
    %v1750 = vsel %vm1747, %v1749, %v1745
    %v1751 = vmul.f32 1.0, %v1750
    %v1752 = vrcp.pop %v1300
    %v1753 = vmul.f32 %v1300, %v1752
    %v1754 = vsub.f32 1.0, %v1753
    %v1755 = vmul.f32 %v1752, %v1754
    %v1756 = vadd.f32 %v1752, %v1755
    %vm1757 = vweird.f32 %v1300
    %vm1758 = vweird.f32 %v1752
    %vm1759 = vmor %vm1757, %vm1758
    %v1760 = vsel %vm1759, %v1752, %v1756
    %v1761 = vand.u32 2147483647, %v1300
    %vm1762 = vcmp.eq.f32.partialorder %v1761, 8.507059e+37
    %v1763 = vand.u32 %v1300, 2147483648
    %v1764 = vor.u32 1.1754944e-38, %v1763
    %v1765 = vsel %vm1762, %v1764, %v1760
    %v1766 = vmul.f32 1.0, %v1765
    %v1767 = vrcp.pop %v1301
    %v1768 = vmul.f32 %v1301, %v1767
    %v1769 = vsub.f32 1.0, %v1768
    %v1770 = vmul.f32 %v1767, %v1769
    %v1771 = vadd.f32 %v1767, %v1770
    %vm1772 = vweird.f32 %v1301
    %vm1773 = vweird.f32 %v1767
    %vm1774 = vmor %vm1772, %vm1773
    %v1775 = vsel %vm1774, %v1767, %v1771
    %v1776 = vand.u32 2147483647, %v1301
    %vm1777 = vcmp.eq.f32.partialorder %v1776, 8.507059e+37
    %v1778 = vand.u32 %v1301, 2147483648
    %v1779 = vor.u32 1.1754944e-38, %v1778
    %v1780 = vsel %vm1777, %v1779, %v1775
    %v1781 = vmul.f32 1.0, %v1780
    %v1782 = vmul.f32 %v1095, %v1316
    %v1783 = vmul.f32 %v1097, %v1331
    %v1784 = vmul.f32 %v1100, %v1346
    %v1785 = vmul.f32 %v1102, %v1361
    %v1786 = vmul.f32 %v1105, %v1376
    %v1787 = vmul.f32 %v1107, %v1391
    %v1788 = vmul.f32 %v1110, %v1406
    %v1789 = vmul.f32 %v1112, %v1421
    %v1790 = vmul.f32 %v1115, %v1436
    %v1791 = vmul.f32 %v1117, %v1451
    %v1792 = vmul.f32 %v1120, %v1466
    %v1793 = vmul.f32 %v1122, %v1481
    %v1794 = vmul.f32 %v1125, %v1496
    %v1795 = vmul.f32 %v1127, %v1511
    %v1796 = vmul.f32 %v1130, %v1526
    %v1797 = vmul.f32 %v1132, %v1541
    %v1798 = vmul.f32 %v1135, %v1556
    %v1799 = vmul.f32 %v1137, %v1571
    %v1800 = vmul.f32 %v1140, %v1586
    %v1801 = vmul.f32 %v1142, %v1601
    %v1802 = vmul.f32 %v1145, %v1616
    %v1803 = vmul.f32 %v1147, %v1631
    %v1804 = vmul.f32 %v1150, %v1646
    %v1805 = vmul.f32 %v1152, %v1661
    %v1806 = vmul.f32 %v1155, %v1676
    %v1807 = vmul.f32 %v1157, %v1691
    %v1808 = vmul.f32 %v1160, %v1706
    %v1809 = vmul.f32 %v1162, %v1721
    %v1810 = vmul.f32 %v1165, %v1736
    %v1811 = vmul.f32 %v1167, %v1751
    %v1812 = vmul.f32 %v1170, %v1766
    %v1813 = vmul.f32 %v1172, %v1781
    %v1814 = vld [vmem:[%s1] sm:$0xff]
    %v1815 = vld [vmem:[%s1 + $0x8] sm:$0xff]
    %v1816 = vld [vmem:[%s1 + $0x10] sm:$0xff]
    %v1817 = vld [vmem:[%s1 + $0x18] sm:$0xff]
    %v1818 = vld [vmem:[%s1 + $0x20] sm:$0xff]
    %v1819 = vld [vmem:[%s1 + $0x28] sm:$0xff]
    %v1820 = vld [vmem:[%s1 + $0x30] sm:$0xff]
    %v1821 = vld [vmem:[%s1 + $0x38] sm:$0xff]
    %v1822 = vld [vmem:[%s1 + $0x40] sm:$0xff]
    %v1823 = vld [vmem:[%s1 + $0x48] sm:$0xff]
    %v1824 = vld [vmem:[%s1 + $0x50] sm:$0xff]
    %v1825 = vld [vmem:[%s1 + $0x58] sm:$0xff]
    %v1826 = vld [vmem:[%s1 + $0x60] sm:$0xff]
    %v1827 = vld [vmem:[%s1 + $0x68] sm:$0xff]
    %v1828 = vld [vmem:[%s1 + $0x70] sm:$0xff]
    %v1829 = vld [vmem:[%s1 + $0x78] sm:$0xff]
    %v1830 = vld [vmem:[%s1 + $0x80] sm:$0xff]
    %v1831 = vld [vmem:[%s1 + $0x88] sm:$0xff]
    %v1832 = vld [vmem:[%s1 + $0x90] sm:$0xff]
    %v1833 = vld [vmem:[%s1 + $0x98] sm:$0xff]
    %v1834 = vld [vmem:[%s1 + $0xa0] sm:$0xff]
    %v1835 = vld [vmem:[%s1 + $0xa8] sm:$0xff]
    %v1836 = vld [vmem:[%s1 + $0xb0] sm:$0xff]
    %v1837 = vld [vmem:[%s1 + $0xb8] sm:$0xff]
    %v1838 = vld [vmem:[%s1 + $0xc0] sm:$0xff]
    %v1839 = vld [vmem:[%s1 + $0xc8] sm:$0xff]
    %v1840 = vld [vmem:[%s1 + $0xd0] sm:$0xff]
    %v1841 = vld [vmem:[%s1 + $0xd8] sm:$0xff]
    %v1842 = vld [vmem:[%s1 + $0xe0] sm:$0xff]
    %v1843 = vld [vmem:[%s1 + $0xe8] sm:$0xff]
    %v1844 = vld [vmem:[%s1 + $0xf0] sm:$0xff]
    %v1845 = vld [vmem:[%s1 + $0xf8] sm:$0xff]
    %v1846 = vld [vmem:[%s6] sm:$0xff]
    %v1847 = vld [vmem:[%s6 + $0x8] sm:$0x1]
    %v1848 = vrot.slane %v1782, 7
    %v1849 = vrot.slane %v1783, 7
    %v1850 = vrot.slane %v1784, 7
    %v1851 = vrot.slane %v1785, 7
    %v1852 = vrot.slane %v1786, 7
    %v1853 = vrot.slane %v1787, 7
    %v1854 = vrot.slane %v1788, 7
    %v1855 = vrot.slane %v1789, 7
    %v1856 = vrot.slane %v1790, 7
    %v1857 = vrot.slane %v1791, 7
    %v1858 = vrot.slane %v1792, 7
    %v1859 = vrot.slane %v1793, 7
    %v1860 = vrot.slane %v1794, 7
    %v1861 = vrot.slane %v1795, 7
    %v1862 = vrot.slane %v1796, 7
    %v1863 = vrot.slane %v1797, 7
    %v1864 = vrot.slane %v1798, 7
    %v1865 = vrot.slane %v1799, 7
    %v1866 = vrot.slane %v1800, 7
    %v1867 = vrot.slane %v1801, 7
    %v1868 = vrot.slane %v1802, 7
    %v1869 = vrot.slane %v1803, 7
    %v1870 = vrot.slane %v1804, 7
    %v1871 = vrot.slane %v1805, 7
    %v1872 = vrot.slane %v1806, 7
    %v1873 = vrot.slane %v1807, 7
    %v1874 = vrot.slane %v1808, 7
    %v1875 = vrot.slane %v1809, 7
    %v1876 = vrot.slane %v1810, 7
    %v1877 = vrot.slane %v1811, 7
    %v1878 = vrot.slane %v1812, 7
    %v1879 = vrot.slane %v1813, 7
    %v1880 = vlaneseq
    %v1881 = vshrl.u32 %v1880, 7
    %vm1882 = vcmp.lt.s32.totalorder %v1881, 1
    %v1883 = vsel %vm1882, %v1878, %v1879
    %v1884 = vsel %vm1882, %v1877, %v1878
    %v1885 = vsel %vm1882, %v1876, %v1877
    %v1886 = vsel %vm1882, %v1875, %v1876
    %v1887 = vsel %vm1882, %v1874, %v1875
    %v1888 = vsel %vm1882, %v1873, %v1874
    %v1889 = vsel %vm1882, %v1872, %v1873
    %v1890 = vsel %vm1882, %v1871, %v1872
    %v1891 = vsel %vm1882, %v1870, %v1871
    %v1892 = vsel %vm1882, %v1869, %v1870
    %v1893 = vsel %vm1882, %v1868, %v1869
    %v1894 = vsel %vm1882, %v1867, %v1868
    %v1895 = vsel %vm1882, %v1866, %v1867
    %v1896 = vsel %vm1882, %v1865, %v1866
    %v1897 = vsel %vm1882, %v1864, %v1865
    %v1898 = vsel %vm1882, %v1863, %v1864
    %v1899 = vsel %vm1882, %v1862, %v1863
    %v1900 = vsel %vm1882, %v1861, %v1862
    %v1901 = vsel %vm1882, %v1860, %v1861
    %v1902 = vsel %vm1882, %v1859, %v1860
    %v1903 = vsel %vm1882, %v1858, %v1859
    %v1904 = vsel %vm1882, %v1857, %v1858
    %v1905 = vsel %vm1882, %v1856, %v1857
    %v1906 = vsel %vm1882, %v1855, %v1856
    %v1907 = vsel %vm1882, %v1854, %v1855
    %v1908 = vsel %vm1882, %v1853, %v1854
    %v1909 = vsel %vm1882, %v1852, %v1853
    %v1910 = vsel %vm1882, %v1851, %v1852
    %v1911 = vsel %vm1882, %v1850, %v1851
    %v1912 = vsel %vm1882, %v1849, %v1850
    %v1913 = vsel %vm1882, %v1848, %v1849
    %v1914 = vsel %vm1882, %v1879, %v1848
    %1947 = vrot.lane.b32.xlu0 %v1814, 126
    %v1948 = vpop.permute.xlu0 %1947
    %1949 = vrot.lane.b32.xlu0 %v1815, 126
    %v1950 = vpop.permute.xlu0 %1949
    %1951 = vrot.lane.b32.xlu0 %v1816, 126
    %v1952 = vpop.permute.xlu0 %1951
    %1953 = vrot.lane.b32.xlu0 %v1817, 126
    %v1954 = vpop.permute.xlu0 %1953
    %1955 = vrot.lane.b32.xlu0 %v1818, 126
    %v1956 = vpop.permute.xlu0 %1955
    %1957 = vrot.lane.b32.xlu0 %v1819, 126
    %v1958 = vpop.permute.xlu0 %1957
    %1959 = vrot.lane.b32.xlu0 %v1820, 126
    %v1960 = vpop.permute.xlu0 %1959
    %1961 = vrot.lane.b32.xlu0 %v1821, 126
    %v1962 = vpop.permute.xlu0 %1961
    %1963 = vrot.lane.b32.xlu0 %v1822, 126
    %v1964 = vpop.permute.xlu0 %1963
    %1965 = vrot.lane.b32.xlu0 %v1823, 126
    %v1966 = vpop.permute.xlu0 %1965
    %1967 = vrot.lane.b32.xlu0 %v1824, 126
    %v1968 = vpop.permute.xlu0 %1967
    %1969 = vrot.lane.b32.xlu0 %v1825, 126
    %v1970 = vpop.permute.xlu0 %1969
    %1971 = vrot.lane.b32.xlu0 %v1826, 126
    %v1972 = vpop.permute.xlu0 %1971
    %1973 = vrot.lane.b32.xlu0 %v1827, 126
    %v1974 = vpop.permute.xlu0 %1973
    %1975 = vrot.lane.b32.xlu0 %v1828, 126
    %v1976 = vpop.permute.xlu0 %1975
    %1977 = vrot.lane.b32.xlu0 %v1829, 126
    %v1978 = vpop.permute.xlu0 %1977
    %1979 = vrot.lane.b32.xlu0 %v1830, 126
    %v1980 = vpop.permute.xlu0 %1979
    %1981 = vrot.lane.b32.xlu0 %v1831, 126
    %v1982 = vpop.permute.xlu0 %1981
    %1983 = vrot.lane.b32.xlu0 %v1832, 126
    %v1984 = vpop.permute.xlu0 %1983
    %1985 = vrot.lane.b32.xlu0 %v1833, 126
    %v1986 = vpop.permute.xlu0 %1985
    %1987 = vrot.lane.b32.xlu0 %v1834, 126
    %v1988 = vpop.permute.xlu0 %1987
    %1989 = vrot.lane.b32.xlu0 %v1835, 126
    %v1990 = vpop.permute.xlu0 %1989
    %1991 = vrot.lane.b32.xlu0 %v1836, 126
    %v1992 = vpop.permute.xlu0 %1991
    %1993 = vrot.lane.b32.xlu0 %v1837, 126
    %v1994 = vpop.permute.xlu0 %1993
    %1995 = vrot.lane.b32.xlu0 %v1838, 126
    %v1996 = vpop.permute.xlu0 %1995
    %1997 = vrot.lane.b32.xlu0 %v1839, 126
    %v1998 = vpop.permute.xlu0 %1997
    %1999 = vrot.lane.b32.xlu0 %v1840, 126
    %v2000 = vpop.permute.xlu0 %1999
    %2001 = vrot.lane.b32.xlu0 %v1841, 126
    %v2002 = vpop.permute.xlu0 %2001
    %2003 = vrot.lane.b32.xlu0 %v1842, 126
    %v2004 = vpop.permute.xlu0 %2003
    %2005 = vrot.lane.b32.xlu0 %v1843, 126
    %v2006 = vpop.permute.xlu0 %2005
    %2007 = vrot.lane.b32.xlu0 %v1844, 126
    %v2008 = vpop.permute.xlu0 %2007
    %2009 = vrot.lane.b32.xlu0 %v1845, 126
    %v2010 = vpop.permute.xlu0 %2009
    %v2043 = vmul.f32 %v1814, %v1948
    %v2044 = vmul.f32 %v1815, %v1950
    %v2045 = vmul.f32 %v1816, %v1952
    %v2046 = vmul.f32 %v1817, %v1954
    %v2047 = vmul.f32 %v1818, %v1956
    %v2048 = vmul.f32 %v1819, %v1958
    %v2049 = vmul.f32 %v1820, %v1960
    %v2050 = vmul.f32 %v1821, %v1962
    %v2051 = vmul.f32 %v1822, %v1964
    %v2052 = vmul.f32 %v1823, %v1966
    %v2053 = vmul.f32 %v1824, %v1968
    %v2054 = vmul.f32 %v1825, %v1970
    %v2055 = vmul.f32 %v1826, %v1972
    %v2056 = vmul.f32 %v1827, %v1974
    %v2057 = vmul.f32 %v1828, %v1976
    %v2058 = vmul.f32 %v1829, %v1978
    %v2059 = vmul.f32 %v1830, %v1980
    %v2060 = vmul.f32 %v1831, %v1982
    %v2061 = vmul.f32 %v1832, %v1984
    %v2062 = vmul.f32 %v1833, %v1986
    %v2063 = vmul.f32 %v1834, %v1988
    %v2064 = vmul.f32 %v1835, %v1990
    %v2065 = vmul.f32 %v1836, %v1992
    %v2066 = vmul.f32 %v1837, %v1994
    %v2067 = vmul.f32 %v1838, %v1996
    %v2068 = vmul.f32 %v1839, %v1998
    %v2069 = vmul.f32 %v1840, %v2000
    %v2070 = vmul.f32 %v1841, %v2002
    %v2071 = vmul.f32 %v1842, %v2004
    %v2072 = vmul.f32 %v1843, %v2006
    %v2073 = vmul.f32 %v1844, %v2008
    %v2074 = vmul.f32 %v1845, %v2010
    %2076 = vset.pattern.permute.xlu0 0
    %2077 = vperm.xlu0 %2076, %v2043
    %v2078 = vpop.permute.xlu0 %2077
    %2081 = vset.pattern.permute.xlu0 0
    %2082 = vperm.xlu0 %2081, %v2044
    %v2083 = vpop.permute.xlu0 %2082
    %2086 = vset.pattern.permute.xlu0 0
    %2087 = vperm.xlu0 %2086, %v2045
    %v2088 = vpop.permute.xlu0 %2087
    %2091 = vset.pattern.permute.xlu0 0
    %2092 = vperm.xlu0 %2091, %v2046
    %v2093 = vpop.permute.xlu0 %2092
    %2096 = vset.pattern.permute.xlu0 0
    %2097 = vperm.xlu0 %2096, %v2047
    %v2098 = vpop.permute.xlu0 %2097
    %2101 = vset.pattern.permute.xlu0 0
    %2102 = vperm.xlu0 %2101, %v2048
    %v2103 = vpop.permute.xlu0 %2102
    %2106 = vset.pattern.permute.xlu0 0
    %2107 = vperm.xlu0 %2106, %v2049
    %v2108 = vpop.permute.xlu0 %2107
    %2111 = vset.pattern.permute.xlu0 0
    %2112 = vperm.xlu0 %2111, %v2050
    %v2113 = vpop.permute.xlu0 %2112
    %2116 = vset.pattern.permute.xlu0 0
    %2117 = vperm.xlu0 %2116, %v2051
    %v2118 = vpop.permute.xlu0 %2117
    %2121 = vset.pattern.permute.xlu0 0
    %2122 = vperm.xlu0 %2121, %v2052
    %v2123 = vpop.permute.xlu0 %2122
    %2126 = vset.pattern.permute.xlu0 0
    %2127 = vperm.xlu0 %2126, %v2053
    %v2128 = vpop.permute.xlu0 %2127
    %2131 = vset.pattern.permute.xlu0 0
    %2132 = vperm.xlu0 %2131, %v2054
    %v2133 = vpop.permute.xlu0 %2132
    %2136 = vset.pattern.permute.xlu0 0
    %2137 = vperm.xlu0 %2136, %v2055
    %v2138 = vpop.permute.xlu0 %2137
    %2141 = vset.pattern.permute.xlu0 0
    %2142 = vperm.xlu0 %2141, %v2056
    %v2143 = vpop.permute.xlu0 %2142
    %2146 = vset.pattern.permute.xlu0 0
    %2147 = vperm.xlu0 %2146, %v2057
    %v2148 = vpop.permute.xlu0 %2147
    %2151 = vset.pattern.permute.xlu0 0
    %2152 = vperm.xlu0 %2151, %v2058
    %v2153 = vpop.permute.xlu0 %2152
    %2156 = vset.pattern.permute.xlu0 0
    %2157 = vperm.xlu0 %2156, %v2059
    %v2158 = vpop.permute.xlu0 %2157
    %2161 = vset.pattern.permute.xlu0 0
    %2162 = vperm.xlu0 %2161, %v2060
    %v2163 = vpop.permute.xlu0 %2162
    %2166 = vset.pattern.permute.xlu0 0
    %2167 = vperm.xlu0 %2166, %v2061
    %v2168 = vpop.permute.xlu0 %2167
    %2171 = vset.pattern.permute.xlu0 0
    %2172 = vperm.xlu0 %2171, %v2062
    %v2173 = vpop.permute.xlu0 %2172
    %2176 = vset.pattern.permute.xlu0 0
    %2177 = vperm.xlu0 %2176, %v2063
    %v2178 = vpop.permute.xlu0 %2177
    %2181 = vset.pattern.permute.xlu0 0
    %2182 = vperm.xlu0 %2181, %v2064
    %v2183 = vpop.permute.xlu0 %2182
    %2186 = vset.pattern.permute.xlu0 0
    %2187 = vperm.xlu0 %2186, %v2065
    %v2188 = vpop.permute.xlu0 %2187
    %2191 = vset.pattern.permute.xlu0 0
    %2192 = vperm.xlu0 %2191, %v2066
    %v2193 = vpop.permute.xlu0 %2192
    %2196 = vset.pattern.permute.xlu0 0
    %2197 = vperm.xlu0 %2196, %v2067
    %v2198 = vpop.permute.xlu0 %2197
    %2201 = vset.pattern.permute.xlu0 0
    %2202 = vperm.xlu0 %2201, %v2068
    %v2203 = vpop.permute.xlu0 %2202
    %2206 = vset.pattern.permute.xlu0 0
    %2207 = vperm.xlu0 %2206, %v2069
    %v2208 = vpop.permute.xlu0 %2207
    %2211 = vset.pattern.permute.xlu0 0
    %2212 = vperm.xlu0 %2211, %v2070
    %v2213 = vpop.permute.xlu0 %2212
    %2216 = vset.pattern.permute.xlu0 0
    %2217 = vperm.xlu0 %2216, %v2071
    %v2218 = vpop.permute.xlu0 %2217
    %2221 = vset.pattern.permute.xlu0 0
    %2222 = vperm.xlu0 %2221, %v2072
    %v2223 = vpop.permute.xlu0 %2222
    %2226 = vset.pattern.permute.xlu0 0
    %2227 = vperm.xlu0 %2226, %v2073
    %v2228 = vpop.permute.xlu0 %2227
    %2231 = vset.pattern.permute.xlu0 0
    %2232 = vperm.xlu0 %2231, %v2074
    %v2233 = vpop.permute.xlu0 %2232
    %v2235 = vmul.f32 %v1884, %v2078
    %v2236 = vmul.f32 %v1883, %v2083
    %v2237 = vmul.f32 %v1914, %v2088
    %v2238 = vmul.f32 %v1913, %v2093
    %v2239 = vmul.f32 %v1912, %v2098
    %v2240 = vmul.f32 %v1911, %v2103
    %v2241 = vmul.f32 %v1910, %v2108
    %v2242 = vmul.f32 %v1909, %v2113
    %v2243 = vmul.f32 %v1908, %v2118
    %v2244 = vmul.f32 %v1907, %v2123
    %v2245 = vmul.f32 %v1906, %v2128
    %v2246 = vmul.f32 %v1905, %v2133
    %v2247 = vmul.f32 %v1904, %v2138
    %v2248 = vmul.f32 %v1903, %v2143
    %v2249 = vmul.f32 %v1902, %v2148
    %v2250 = vmul.f32 %v1901, %v2153
    %v2251 = vmul.f32 %v1900, %v2158
    %v2252 = vmul.f32 %v1899, %v2163
    %v2253 = vmul.f32 %v1898, %v2168
    %v2254 = vmul.f32 %v1897, %v2173
    %v2255 = vmul.f32 %v1896, %v2178
    %v2256 = vmul.f32 %v1895, %v2183
    %v2257 = vmul.f32 %v1894, %v2188
    %v2258 = vmul.f32 %v1893, %v2193
    %v2259 = vmul.f32 %v1892, %v2198
    %v2260 = vmul.f32 %v1891, %v2203
    %v2261 = vmul.f32 %v1890, %v2208
    %v2262 = vmul.f32 %v1889, %v2213
    %v2263 = vmul.f32 %v1888, %v2218
    %v2264 = vmul.f32 %v1887, %v2223
    %v2265 = vmul.f32 %v1886, %v2228
    %v2266 = vmul.f32 %v1885, %v2233
    %v2267 = vperm.slane %v1846, 0
    %v2268 = vmul.f32 %v2235, %v2267
    %v2269 = vmul.f32 %v2236, %v2267
    %v2270 = vmul.f32 %v2237, %v2267
    %v2271 = vmul.f32 %v2238, %v2267
    %v2272 = vmul.f32 %v2239, %v2267
    %v2273 = vmul.f32 %v2240, %v2267
    %v2274 = vmul.f32 %v2241, %v2267
    %v2275 = vmul.f32 %v2242, %v2267
    %v2276 = vmul.f32 %v2243, %v2267
    %v2277 = vmul.f32 %v2244, %v2267
    %v2278 = vmul.f32 %v2245, %v2267
    %v2279 = vmul.f32 %v2246, %v2267
    %v2280 = vmul.f32 %v2247, %v2267
    %v2281 = vmul.f32 %v2248, %v2267
    %v2282 = vmul.f32 %v2249, %v2267
    %v2283 = vmul.f32 %v2250, %v2267
    %v2284 = vmul.f32 %v2251, %v2267
    %v2285 = vmul.f32 %v2252, %v2267
    %v2286 = vmul.f32 %v2253, %v2267
    %v2287 = vmul.f32 %v2254, %v2267
    %v2288 = vmul.f32 %v2255, %v2267
    %v2289 = vmul.f32 %v2256, %v2267
    %v2290 = vmul.f32 %v2257, %v2267
    %v2291 = vmul.f32 %v2258, %v2267
    %v2292 = vmul.f32 %v2259, %v2267
    %v2293 = vmul.f32 %v2260, %v2267
    %v2294 = vmul.f32 %v2261, %v2267
    %v2295 = vmul.f32 %v2262, %v2267
    %v2296 = vmul.f32 %v2263, %v2267
    %v2297 = vmul.f32 %v2264, %v2267
    %v2298 = vmul.f32 %v2265, %v2267
    %v2299 = vmul.f32 %v2266, %v2267
    %v2300 = vadd.f32 %v2268, 0.0
    %v2301 = vadd.f32 %v2269, 0.0
    %v2302 = vadd.f32 %v2270, 0.0
    %v2303 = vadd.f32 %v2271, 0.0
    %v2304 = vadd.f32 %v2272, 0.0
    %v2305 = vadd.f32 %v2273, 0.0
    %v2306 = vadd.f32 %v2274, 0.0
    %v2307 = vadd.f32 %v2275, 0.0
    %v2308 = vadd.f32 %v2276, 0.0
    %v2309 = vadd.f32 %v2277, 0.0
    %v2310 = vadd.f32 %v2278, 0.0
    %v2311 = vadd.f32 %v2279, 0.0
    %v2312 = vadd.f32 %v2280, 0.0
    %v2313 = vadd.f32 %v2281, 0.0
    %v2314 = vadd.f32 %v2282, 0.0
    %v2315 = vadd.f32 %v2283, 0.0
    %v2316 = vadd.f32 %v2284, 0.0
    %v2317 = vadd.f32 %v2285, 0.0
    %v2318 = vadd.f32 %v2286, 0.0
    %v2319 = vadd.f32 %v2287, 0.0
    %v2320 = vadd.f32 %v2288, 0.0
    %v2321 = vadd.f32 %v2289, 0.0
    %v2322 = vadd.f32 %v2290, 0.0
    %v2323 = vadd.f32 %v2291, 0.0
    %v2324 = vadd.f32 %v2292, 0.0
    %v2325 = vadd.f32 %v2293, 0.0
    %v2326 = vadd.f32 %v2294, 0.0
    %v2327 = vadd.f32 %v2295, 0.0
    %v2328 = vadd.f32 %v2296, 0.0
    %v2329 = vadd.f32 %v2297, 0.0
    %v2330 = vadd.f32 %v2298, 0.0
    %v2331 = vadd.f32 %v2299, 0.0
    %2332 = vset.pattern.permute.xlu0 0
    %2333 = vperm.xlu0 %2332, %v1814
    %v2334 = vpop.permute.xlu0 %2333
    %2336 = vset.pattern.permute.xlu0 0
    %2337 = vperm.xlu0 %2336, %v1815
    %v2338 = vpop.permute.xlu0 %2337
    %2340 = vset.pattern.permute.xlu0 0
    %2341 = vperm.xlu0 %2340, %v1816
    %v2342 = vpop.permute.xlu0 %2341
    %2344 = vset.pattern.permute.xlu0 0
    %2345 = vperm.xlu0 %2344, %v1817
    %v2346 = vpop.permute.xlu0 %2345
    %2348 = vset.pattern.permute.xlu0 0
    %2349 = vperm.xlu0 %2348, %v1818
    %v2350 = vpop.permute.xlu0 %2349
    %2352 = vset.pattern.permute.xlu0 0
    %2353 = vperm.xlu0 %2352, %v1819
    %v2354 = vpop.permute.xlu0 %2353
    %2356 = vset.pattern.permute.xlu0 0
    %2357 = vperm.xlu0 %2356, %v1820
    %v2358 = vpop.permute.xlu0 %2357
    %2360 = vset.pattern.permute.xlu0 0
    %2361 = vperm.xlu0 %2360, %v1821
    %v2362 = vpop.permute.xlu0 %2361
    %2364 = vset.pattern.permute.xlu0 0
    %2365 = vperm.xlu0 %2364, %v1822
    %v2366 = vpop.permute.xlu0 %2365
    %2368 = vset.pattern.permute.xlu0 0
    %2369 = vperm.xlu0 %2368, %v1823
    %v2370 = vpop.permute.xlu0 %2369
    %2372 = vset.pattern.permute.xlu0 0
    %2373 = vperm.xlu0 %2372, %v1824
    %v2374 = vpop.permute.xlu0 %2373
    %2376 = vset.pattern.permute.xlu0 0
    %2377 = vperm.xlu0 %2376, %v1825
    %v2378 = vpop.permute.xlu0 %2377
    %2380 = vset.pattern.permute.xlu0 0
    %2381 = vperm.xlu0 %2380, %v1826
    %v2382 = vpop.permute.xlu0 %2381
    %2384 = vset.pattern.permute.xlu0 0
    %2385 = vperm.xlu0 %2384, %v1827
    %v2386 = vpop.permute.xlu0 %2385
    %2388 = vset.pattern.permute.xlu0 0
    %2389 = vperm.xlu0 %2388, %v1828
    %v2390 = vpop.permute.xlu0 %2389
    %2392 = vset.pattern.permute.xlu0 0
    %2393 = vperm.xlu0 %2392, %v1829
    %v2394 = vpop.permute.xlu0 %2393
    %2396 = vset.pattern.permute.xlu0 0
    %2397 = vperm.xlu0 %2396, %v1830
    %v2398 = vpop.permute.xlu0 %2397
    %2400 = vset.pattern.permute.xlu0 0
    %2401 = vperm.xlu0 %2400, %v1831
    %v2402 = vpop.permute.xlu0 %2401
    %2404 = vset.pattern.permute.xlu0 0
    %2405 = vperm.xlu0 %2404, %v1832
    %v2406 = vpop.permute.xlu0 %2405
    %2408 = vset.pattern.permute.xlu0 0
    %2409 = vperm.xlu0 %2408, %v1833
    %v2410 = vpop.permute.xlu0 %2409
    %2412 = vset.pattern.permute.xlu0 0
    %2413 = vperm.xlu0 %2412, %v1834
    %v2414 = vpop.permute.xlu0 %2413
    %2416 = vset.pattern.permute.xlu0 0
    %2417 = vperm.xlu0 %2416, %v1835
    %v2418 = vpop.permute.xlu0 %2417
    %2420 = vset.pattern.permute.xlu0 0
    %2421 = vperm.xlu0 %2420, %v1836
    %v2422 = vpop.permute.xlu0 %2421
    %2424 = vset.pattern.permute.xlu0 0
    %2425 = vperm.xlu0 %2424, %v1837
    %v2426 = vpop.permute.xlu0 %2425
    %2428 = vset.pattern.permute.xlu0 0
    %2429 = vperm.xlu0 %2428, %v1838
    %v2430 = vpop.permute.xlu0 %2429
    %2432 = vset.pattern.permute.xlu0 0
    %2433 = vperm.xlu0 %2432, %v1839
    %v2434 = vpop.permute.xlu0 %2433
    %2436 = vset.pattern.permute.xlu0 0
    %2437 = vperm.xlu0 %2436, %v1840
    %v2438 = vpop.permute.xlu0 %2437
    %2440 = vset.pattern.permute.xlu0 0
    %2441 = vperm.xlu0 %2440, %v1841
    %v2442 = vpop.permute.xlu0 %2441
    %2444 = vset.pattern.permute.xlu0 0
    %2445 = vperm.xlu0 %2444, %v1842
    %v2446 = vpop.permute.xlu0 %2445
    %2448 = vset.pattern.permute.xlu0 0
    %2449 = vperm.xlu0 %2448, %v1843
    %v2450 = vpop.permute.xlu0 %2449
    %2452 = vset.pattern.permute.xlu0 0
    %2453 = vperm.xlu0 %2452, %v1844
    %v2454 = vpop.permute.xlu0 %2453
    %2456 = vset.pattern.permute.xlu0 0
    %2457 = vperm.xlu0 %2456, %v1845
    %v2458 = vpop.permute.xlu0 %2457
    %v2460 = vmul.f32 %v1812, %v2334
    %v2461 = vmul.f32 %v1813, %v2338
    %v2462 = vmul.f32 %v1782, %v2342
    %v2463 = vmul.f32 %v1783, %v2346
    %v2464 = vmul.f32 %v1784, %v2350
    %v2465 = vmul.f32 %v1785, %v2354
    %v2466 = vmul.f32 %v1786, %v2358
    %v2467 = vmul.f32 %v1787, %v2362
    %v2468 = vmul.f32 %v1788, %v2366
    %v2469 = vmul.f32 %v1789, %v2370
    %v2470 = vmul.f32 %v1790, %v2374
    %v2471 = vmul.f32 %v1791, %v2378
    %v2472 = vmul.f32 %v1792, %v2382
    %v2473 = vmul.f32 %v1793, %v2386
    %v2474 = vmul.f32 %v1794, %v2390
    %v2475 = vmul.f32 %v1795, %v2394
    %v2476 = vmul.f32 %v1796, %v2398
    %v2477 = vmul.f32 %v1797, %v2402
    %v2478 = vmul.f32 %v1798, %v2406
    %v2479 = vmul.f32 %v1799, %v2410
    %v2480 = vmul.f32 %v1800, %v2414
    %v2481 = vmul.f32 %v1801, %v2418
    %v2482 = vmul.f32 %v1802, %v2422
    %v2483 = vmul.f32 %v1803, %v2426
    %v2484 = vmul.f32 %v1804, %v2430
    %v2485 = vmul.f32 %v1805, %v2434
    %v2486 = vmul.f32 %v1806, %v2438
    %v2487 = vmul.f32 %v1807, %v2442
    %v2488 = vmul.f32 %v1808, %v2446
    %v2489 = vmul.f32 %v1809, %v2450
    %v2490 = vmul.f32 %v1810, %v2454
    %v2491 = vmul.f32 %v1811, %v2458
    %v2492 = vperm.slane %v1846, 1
    %v2493 = vmul.f32 %v2460, %v2492
    %v2494 = vmul.f32 %v2461, %v2492
    %v2495 = vmul.f32 %v2462, %v2492
    %v2496 = vmul.f32 %v2463, %v2492
    %v2497 = vmul.f32 %v2464, %v2492
    %v2498 = vmul.f32 %v2465, %v2492
    %v2499 = vmul.f32 %v2466, %v2492
    %v2500 = vmul.f32 %v2467, %v2492
    %v2501 = vmul.f32 %v2468, %v2492
    %v2502 = vmul.f32 %v2469, %v2492
    %v2503 = vmul.f32 %v2470, %v2492
    %v2504 = vmul.f32 %v2471, %v2492
    %v2505 = vmul.f32 %v2472, %v2492
    %v2506 = vmul.f32 %v2473, %v2492
    %v2507 = vmul.f32 %v2474, %v2492
    %v2508 = vmul.f32 %v2475, %v2492
    %v2509 = vmul.f32 %v2476, %v2492
    %v2510 = vmul.f32 %v2477, %v2492
    %v2511 = vmul.f32 %v2478, %v2492
    %v2512 = vmul.f32 %v2479, %v2492
    %v2513 = vmul.f32 %v2480, %v2492
    %v2514 = vmul.f32 %v2481, %v2492
    %v2515 = vmul.f32 %v2482, %v2492
    %v2516 = vmul.f32 %v2483, %v2492
    %v2517 = vmul.f32 %v2484, %v2492
    %v2518 = vmul.f32 %v2485, %v2492
    %v2519 = vmul.f32 %v2486, %v2492
    %v2520 = vmul.f32 %v2487, %v2492
    %v2521 = vmul.f32 %v2488, %v2492
    %v2522 = vmul.f32 %v2489, %v2492
    %v2523 = vmul.f32 %v2490, %v2492
    %v2524 = vmul.f32 %v2491, %v2492
    %v2525 = vadd.f32 %v2300, %v2493
    %v2526 = vadd.f32 %v2301, %v2494
    %v2527 = vadd.f32 %v2302, %v2495
    %v2528 = vadd.f32 %v2303, %v2496
    %v2529 = vadd.f32 %v2304, %v2497
    %v2530 = vadd.f32 %v2305, %v2498
    %v2531 = vadd.f32 %v2306, %v2499
    %v2532 = vadd.f32 %v2307, %v2500
    %v2533 = vadd.f32 %v2308, %v2501
    %v2534 = vadd.f32 %v2309, %v2502
    %v2535 = vadd.f32 %v2310, %v2503
    %v2536 = vadd.f32 %v2311, %v2504
    %v2537 = vadd.f32 %v2312, %v2505
    %v2538 = vadd.f32 %v2313, %v2506
    %v2539 = vadd.f32 %v2314, %v2507
    %v2540 = vadd.f32 %v2315, %v2508
    %v2541 = vadd.f32 %v2316, %v2509
    %v2542 = vadd.f32 %v2317, %v2510
    %v2543 = vadd.f32 %v2318, %v2511
    %v2544 = vadd.f32 %v2319, %v2512
    %v2545 = vadd.f32 %v2320, %v2513
    %v2546 = vadd.f32 %v2321, %v2514
    %v2547 = vadd.f32 %v2322, %v2515
    %v2548 = vadd.f32 %v2323, %v2516
    %v2549 = vadd.f32 %v2324, %v2517
    %v2550 = vadd.f32 %v2325, %v2518
    %v2551 = vadd.f32 %v2326, %v2519
    %v2552 = vadd.f32 %v2327, %v2520
    %v2553 = vadd.f32 %v2328, %v2521
    %v2554 = vadd.f32 %v2329, %v2522
    %v2555 = vadd.f32 %v2330, %v2523
    %v2556 = vadd.f32 %v2331, %v2524
    %v2557 = vrot.slane %v1782, 1
    %v2558 = vrot.slane %v1783, 1
    %v2559 = vrot.slane %v1784, 1
    %v2560 = vrot.slane %v1785, 1
    %v2561 = vrot.slane %v1786, 1
    %v2562 = vrot.slane %v1787, 1
    %v2563 = vrot.slane %v1788, 1
    %v2564 = vrot.slane %v1789, 1
    %v2565 = vrot.slane %v1790, 1
    %v2566 = vrot.slane %v1791, 1
    %v2567 = vrot.slane %v1792, 1
    %v2568 = vrot.slane %v1793, 1
    %v2569 = vrot.slane %v1794, 1
    %v2570 = vrot.slane %v1795, 1
    %v2571 = vrot.slane %v1796, 1
    %v2572 = vrot.slane %v1797, 1
    %v2573 = vrot.slane %v1798, 1
    %v2574 = vrot.slane %v1799, 1
    %v2575 = vrot.slane %v1800, 1
    %v2576 = vrot.slane %v1801, 1
    %v2577 = vrot.slane %v1802, 1
    %v2578 = vrot.slane %v1803, 1
    %v2579 = vrot.slane %v1804, 1
    %v2580 = vrot.slane %v1805, 1
    %v2581 = vrot.slane %v1806, 1
    %v2582 = vrot.slane %v1807, 1
    %v2583 = vrot.slane %v1808, 1
    %v2584 = vrot.slane %v1809, 1
    %v2585 = vrot.slane %v1810, 1
    %v2586 = vrot.slane %v1811, 1
    %v2587 = vrot.slane %v1812, 1
    %v2588 = vrot.slane %v1813, 1
    %vm2589 = vcmp.lt.s32.totalorder %v1881, 7
    %v2590 = vsel %vm2589, %v2587, %v2588
    %v2591 = vsel %vm2589, %v2586, %v2587
    %v2592 = vsel %vm2589, %v2585, %v2586
    %v2593 = vsel %vm2589, %v2584, %v2585
    %v2594 = vsel %vm2589, %v2583, %v2584
    %v2595 = vsel %vm2589, %v2582, %v2583
    %v2596 = vsel %vm2589, %v2581, %v2582
    %v2597 = vsel %vm2589, %v2580, %v2581
    %v2598 = vsel %vm2589, %v2579, %v2580
    %v2599 = vsel %vm2589, %v2578, %v2579
    %v2600 = vsel %vm2589, %v2577, %v2578
    %v2601 = vsel %vm2589, %v2576, %v2577
    %v2602 = vsel %vm2589, %v2575, %v2576
    %v2603 = vsel %vm2589, %v2574, %v2575
    %v2604 = vsel %vm2589, %v2573, %v2574
    %v2605 = vsel %vm2589, %v2572, %v2573
    %v2606 = vsel %vm2589, %v2571, %v2572
    %v2607 = vsel %vm2589, %v2570, %v2571
    %v2608 = vsel %vm2589, %v2569, %v2570
    %v2609 = vsel %vm2589, %v2568, %v2569
    %v2610 = vsel %vm2589, %v2567, %v2568
    %v2611 = vsel %vm2589, %v2566, %v2567
    %v2612 = vsel %vm2589, %v2565, %v2566
    %v2613 = vsel %vm2589, %v2564, %v2565
    %v2614 = vsel %vm2589, %v2563, %v2564
    %v2615 = vsel %vm2589, %v2562, %v2563
    %v2616 = vsel %vm2589, %v2561, %v2562
    %v2617 = vsel %vm2589, %v2560, %v2561
    %v2618 = vsel %vm2589, %v2559, %v2560
    %v2619 = vsel %vm2589, %v2558, %v2559
    %v2620 = vsel %vm2589, %v2557, %v2558
    %v2621 = vsel %vm2589, %v2588, %v2557
    %2622 = vrot.lane.b32.xlu0 %v1814, 125
    %v2623 = vpop.permute.xlu0 %2622
    %2624 = vrot.lane.b32.xlu0 %v1815, 125
    %v2625 = vpop.permute.xlu0 %2624
    %2626 = vrot.lane.b32.xlu0 %v1816, 125
    %v2627 = vpop.permute.xlu0 %2626
    %2628 = vrot.lane.b32.xlu0 %v1817, 125
    %v2629 = vpop.permute.xlu0 %2628
    %2630 = vrot.lane.b32.xlu0 %v1818, 125
    %v2631 = vpop.permute.xlu0 %2630
    %2632 = vrot.lane.b32.xlu0 %v1819, 125
    %v2633 = vpop.permute.xlu0 %2632
    %2634 = vrot.lane.b32.xlu0 %v1820, 125
    %v2635 = vpop.permute.xlu0 %2634
    %2636 = vrot.lane.b32.xlu0 %v1821, 125
    %v2637 = vpop.permute.xlu0 %2636
    %2638 = vrot.lane.b32.xlu0 %v1822, 125
    %v2639 = vpop.permute.xlu0 %2638
    %2640 = vrot.lane.b32.xlu0 %v1823, 125
    %v2641 = vpop.permute.xlu0 %2640
    %2642 = vrot.lane.b32.xlu0 %v1824, 125
    %v2643 = vpop.permute.xlu0 %2642
    %2644 = vrot.lane.b32.xlu0 %v1825, 125
    %v2645 = vpop.permute.xlu0 %2644
    %2646 = vrot.lane.b32.xlu0 %v1826, 125
    %v2647 = vpop.permute.xlu0 %2646
    %2648 = vrot.lane.b32.xlu0 %v1827, 125
    %v2649 = vpop.permute.xlu0 %2648
    %2650 = vrot.lane.b32.xlu0 %v1828, 125
    %v2651 = vpop.permute.xlu0 %2650
    %2652 = vrot.lane.b32.xlu0 %v1829, 125
    %v2653 = vpop.permute.xlu0 %2652
    %2654 = vrot.lane.b32.xlu0 %v1830, 125
    %v2655 = vpop.permute.xlu0 %2654
    %2656 = vrot.lane.b32.xlu0 %v1831, 125
    %v2657 = vpop.permute.xlu0 %2656
    %2658 = vrot.lane.b32.xlu0 %v1832, 125
    %v2659 = vpop.permute.xlu0 %2658
    %2660 = vrot.lane.b32.xlu0 %v1833, 125
    %v2661 = vpop.permute.xlu0 %2660
    %2662 = vrot.lane.b32.xlu0 %v1834, 125
    %v2663 = vpop.permute.xlu0 %2662
    %2664 = vrot.lane.b32.xlu0 %v1835, 125
    %v2665 = vpop.permute.xlu0 %2664
    %2666 = vrot.lane.b32.xlu0 %v1836, 125
    %v2667 = vpop.permute.xlu0 %2666
    %2668 = vrot.lane.b32.xlu0 %v1837, 125
    %v2669 = vpop.permute.xlu0 %2668
    %2670 = vrot.lane.b32.xlu0 %v1838, 125
    %v2671 = vpop.permute.xlu0 %2670
    %2672 = vrot.lane.b32.xlu0 %v1839, 125
    %v2673 = vpop.permute.xlu0 %2672
    %2674 = vrot.lane.b32.xlu0 %v1840, 125
    %v2675 = vpop.permute.xlu0 %2674
    %2676 = vrot.lane.b32.xlu0 %v1841, 125
    %v2677 = vpop.permute.xlu0 %2676
    %2678 = vrot.lane.b32.xlu0 %v1842, 125
    %v2679 = vpop.permute.xlu0 %2678
    %2680 = vrot.lane.b32.xlu0 %v1843, 125
    %v2681 = vpop.permute.xlu0 %2680
    %2682 = vrot.lane.b32.xlu0 %v1844, 125
    %v2683 = vpop.permute.xlu0 %2682
    %2684 = vrot.lane.b32.xlu0 %v1845, 125
    %v2685 = vpop.permute.xlu0 %2684
    %v2718 = vmul.f32 %v1814, %v2623
    %v2719 = vmul.f32 %v1815, %v2625
    %v2720 = vmul.f32 %v1816, %v2627
    %v2721 = vmul.f32 %v1817, %v2629
    %v2722 = vmul.f32 %v1818, %v2631
    %v2723 = vmul.f32 %v1819, %v2633
    %v2724 = vmul.f32 %v1820, %v2635
    %v2725 = vmul.f32 %v1821, %v2637
    %v2726 = vmul.f32 %v1822, %v2639
    %v2727 = vmul.f32 %v1823, %v2641
    %v2728 = vmul.f32 %v1824, %v2643
    %v2729 = vmul.f32 %v1825, %v2645
    %v2730 = vmul.f32 %v1826, %v2647
    %v2731 = vmul.f32 %v1827, %v2649
    %v2732 = vmul.f32 %v1828, %v2651
    %v2733 = vmul.f32 %v1829, %v2653
    %v2734 = vmul.f32 %v1830, %v2655
    %v2735 = vmul.f32 %v1831, %v2657
    %v2736 = vmul.f32 %v1832, %v2659
    %v2737 = vmul.f32 %v1833, %v2661
    %v2738 = vmul.f32 %v1834, %v2663
    %v2739 = vmul.f32 %v1835, %v2665
    %v2740 = vmul.f32 %v1836, %v2667
    %v2741 = vmul.f32 %v1837, %v2669
    %v2742 = vmul.f32 %v1838, %v2671
    %v2743 = vmul.f32 %v1839, %v2673
    %v2744 = vmul.f32 %v1840, %v2675
    %v2745 = vmul.f32 %v1841, %v2677
    %v2746 = vmul.f32 %v1842, %v2679
    %v2747 = vmul.f32 %v1843, %v2681
    %v2748 = vmul.f32 %v1844, %v2683
    %v2749 = vmul.f32 %v1845, %v2685
    %2751 = vset.pattern.permute.xlu0 0
    %2752 = vperm.xlu0 %2751, %v2718
    %v2753 = vpop.permute.xlu0 %2752
    %2756 = vset.pattern.permute.xlu0 0
    %2757 = vperm.xlu0 %2756, %v2719
    %v2758 = vpop.permute.xlu0 %2757
    %2761 = vset.pattern.permute.xlu0 0
    %2762 = vperm.xlu0 %2761, %v2720
    %v2763 = vpop.permute.xlu0 %2762
    %2766 = vset.pattern.permute.xlu0 0
    %2767 = vperm.xlu0 %2766, %v2721
    %v2768 = vpop.permute.xlu0 %2767
    %2771 = vset.pattern.permute.xlu0 0
    %2772 = vperm.xlu0 %2771, %v2722
    %v2773 = vpop.permute.xlu0 %2772
    %2776 = vset.pattern.permute.xlu0 0
    %2777 = vperm.xlu0 %2776, %v2723
    %v2778 = vpop.permute.xlu0 %2777
    %2781 = vset.pattern.permute.xlu0 0
    %2782 = vperm.xlu0 %2781, %v2724
    %v2783 = vpop.permute.xlu0 %2782
    %2786 = vset.pattern.permute.xlu0 0
    %2787 = vperm.xlu0 %2786, %v2725
    %v2788 = vpop.permute.xlu0 %2787
    %2791 = vset.pattern.permute.xlu0 0
    %2792 = vperm.xlu0 %2791, %v2726
    %v2793 = vpop.permute.xlu0 %2792
    %2796 = vset.pattern.permute.xlu0 0
    %2797 = vperm.xlu0 %2796, %v2727
    %v2798 = vpop.permute.xlu0 %2797
    %2801 = vset.pattern.permute.xlu0 0
    %2802 = vperm.xlu0 %2801, %v2728
    %v2803 = vpop.permute.xlu0 %2802
    %2806 = vset.pattern.permute.xlu0 0
    %2807 = vperm.xlu0 %2806, %v2729
    %v2808 = vpop.permute.xlu0 %2807
    %2811 = vset.pattern.permute.xlu0 0
    %2812 = vperm.xlu0 %2811, %v2730
    %v2813 = vpop.permute.xlu0 %2812
    %2816 = vset.pattern.permute.xlu0 0
    %2817 = vperm.xlu0 %2816, %v2731
    %v2818 = vpop.permute.xlu0 %2817
    %2821 = vset.pattern.permute.xlu0 0
    %2822 = vperm.xlu0 %2821, %v2732
    %v2823 = vpop.permute.xlu0 %2822
    %2826 = vset.pattern.permute.xlu0 0
    %2827 = vperm.xlu0 %2826, %v2733
    %v2828 = vpop.permute.xlu0 %2827
    %2831 = vset.pattern.permute.xlu0 0
    %2832 = vperm.xlu0 %2831, %v2734
    %v2833 = vpop.permute.xlu0 %2832
    %2836 = vset.pattern.permute.xlu0 0
    %2837 = vperm.xlu0 %2836, %v2735
    %v2838 = vpop.permute.xlu0 %2837
    %2841 = vset.pattern.permute.xlu0 0
    %2842 = vperm.xlu0 %2841, %v2736
    %v2843 = vpop.permute.xlu0 %2842
    %2846 = vset.pattern.permute.xlu0 0
    %2847 = vperm.xlu0 %2846, %v2737
    %v2848 = vpop.permute.xlu0 %2847
    %2851 = vset.pattern.permute.xlu0 0
    %2852 = vperm.xlu0 %2851, %v2738
    %v2853 = vpop.permute.xlu0 %2852
    %2856 = vset.pattern.permute.xlu0 0
    %2857 = vperm.xlu0 %2856, %v2739
    %v2858 = vpop.permute.xlu0 %2857
    %2861 = vset.pattern.permute.xlu0 0
    %2862 = vperm.xlu0 %2861, %v2740
    %v2863 = vpop.permute.xlu0 %2862
    %2866 = vset.pattern.permute.xlu0 0
    %2867 = vperm.xlu0 %2866, %v2741
    %v2868 = vpop.permute.xlu0 %2867
    %2871 = vset.pattern.permute.xlu0 0
    %2872 = vperm.xlu0 %2871, %v2742
    %v2873 = vpop.permute.xlu0 %2872
    %2876 = vset.pattern.permute.xlu0 0
    %2877 = vperm.xlu0 %2876, %v2743
    %v2878 = vpop.permute.xlu0 %2877
    %2881 = vset.pattern.permute.xlu0 0
    %2882 = vperm.xlu0 %2881, %v2744
    %v2883 = vpop.permute.xlu0 %2882
    %2886 = vset.pattern.permute.xlu0 0
    %2887 = vperm.xlu0 %2886, %v2745
    %v2888 = vpop.permute.xlu0 %2887
    %2891 = vset.pattern.permute.xlu0 0
    %2892 = vperm.xlu0 %2891, %v2746
    %v2893 = vpop.permute.xlu0 %2892
    %2896 = vset.pattern.permute.xlu0 0
    %2897 = vperm.xlu0 %2896, %v2747
    %v2898 = vpop.permute.xlu0 %2897
    %2901 = vset.pattern.permute.xlu0 0
    %2902 = vperm.xlu0 %2901, %v2748
    %v2903 = vpop.permute.xlu0 %2902
    %2906 = vset.pattern.permute.xlu0 0
    %2907 = vperm.xlu0 %2906, %v2749
    %v2908 = vpop.permute.xlu0 %2907
    %v2910 = vmul.f32 %v2590, %v2753
    %v2911 = vmul.f32 %v2621, %v2758
    %v2912 = vmul.f32 %v2620, %v2763
    %v2913 = vmul.f32 %v2619, %v2768
    %v2914 = vmul.f32 %v2618, %v2773
    %v2915 = vmul.f32 %v2617, %v2778
    %v2916 = vmul.f32 %v2616, %v2783
    %v2917 = vmul.f32 %v2615, %v2788
    %v2918 = vmul.f32 %v2614, %v2793
    %v2919 = vmul.f32 %v2613, %v2798
    %v2920 = vmul.f32 %v2612, %v2803
    %v2921 = vmul.f32 %v2611, %v2808
    %v2922 = vmul.f32 %v2610, %v2813
    %v2923 = vmul.f32 %v2609, %v2818
    %v2924 = vmul.f32 %v2608, %v2823
    %v2925 = vmul.f32 %v2607, %v2828
    %v2926 = vmul.f32 %v2606, %v2833
    %v2927 = vmul.f32 %v2605, %v2838
    %v2928 = vmul.f32 %v2604, %v2843
    %v2929 = vmul.f32 %v2603, %v2848
    %v2930 = vmul.f32 %v2602, %v2853
    %v2931 = vmul.f32 %v2601, %v2858
    %v2932 = vmul.f32 %v2600, %v2863
    %v2933 = vmul.f32 %v2599, %v2868
    %v2934 = vmul.f32 %v2598, %v2873
    %v2935 = vmul.f32 %v2597, %v2878
    %v2936 = vmul.f32 %v2596, %v2883
    %v2937 = vmul.f32 %v2595, %v2888
    %v2938 = vmul.f32 %v2594, %v2893
    %v2939 = vmul.f32 %v2593, %v2898
    %v2940 = vmul.f32 %v2592, %v2903
    %v2941 = vmul.f32 %v2591, %v2908
    %v2942 = vperm.slane %v1846, 2
    %v2943 = vmul.f32 %v2910, %v2942
    %v2944 = vmul.f32 %v2911, %v2942
    %v2945 = vmul.f32 %v2912, %v2942
    %v2946 = vmul.f32 %v2913, %v2942
    %v2947 = vmul.f32 %v2914, %v2942
    %v2948 = vmul.f32 %v2915, %v2942
    %v2949 = vmul.f32 %v2916, %v2942
    %v2950 = vmul.f32 %v2917, %v2942
    %v2951 = vmul.f32 %v2918, %v2942
    %v2952 = vmul.f32 %v2919, %v2942
    %v2953 = vmul.f32 %v2920, %v2942
    %v2954 = vmul.f32 %v2921, %v2942
    %v2955 = vmul.f32 %v2922, %v2942
    %v2956 = vmul.f32 %v2923, %v2942
    %v2957 = vmul.f32 %v2924, %v2942
    %v2958 = vmul.f32 %v2925, %v2942
    %v2959 = vmul.f32 %v2926, %v2942
    %v2960 = vmul.f32 %v2927, %v2942
    %v2961 = vmul.f32 %v2928, %v2942
    %v2962 = vmul.f32 %v2929, %v2942
    %v2963 = vmul.f32 %v2930, %v2942
    %v2964 = vmul.f32 %v2931, %v2942
    %v2965 = vmul.f32 %v2932, %v2942
    %v2966 = vmul.f32 %v2933, %v2942
    %v2967 = vmul.f32 %v2934, %v2942
    %v2968 = vmul.f32 %v2935, %v2942
    %v2969 = vmul.f32 %v2936, %v2942
    %v2970 = vmul.f32 %v2937, %v2942
    %v2971 = vmul.f32 %v2938, %v2942
    %v2972 = vmul.f32 %v2939, %v2942
    %v2973 = vmul.f32 %v2940, %v2942
    %v2974 = vmul.f32 %v2941, %v2942
    %v2975 = vadd.f32 %v2525, %v2943
    %v2976 = vadd.f32 %v2526, %v2944
    %v2977 = vadd.f32 %v2527, %v2945
    %v2978 = vadd.f32 %v2528, %v2946
    %v2979 = vadd.f32 %v2529, %v2947
    %v2980 = vadd.f32 %v2530, %v2948
    %v2981 = vadd.f32 %v2531, %v2949
    %v2982 = vadd.f32 %v2532, %v2950
    %v2983 = vadd.f32 %v2533, %v2951
    %v2984 = vadd.f32 %v2534, %v2952
    %v2985 = vadd.f32 %v2535, %v2953
    %v2986 = vadd.f32 %v2536, %v2954
    %v2987 = vadd.f32 %v2537, %v2955
    %v2988 = vadd.f32 %v2538, %v2956
    %v2989 = vadd.f32 %v2539, %v2957
    %v2990 = vadd.f32 %v2540, %v2958
    %v2991 = vadd.f32 %v2541, %v2959
    %v2992 = vadd.f32 %v2542, %v2960
    %v2993 = vadd.f32 %v2543, %v2961
    %v2994 = vadd.f32 %v2544, %v2962
    %v2995 = vadd.f32 %v2545, %v2963
    %v2996 = vadd.f32 %v2546, %v2964
    %v2997 = vadd.f32 %v2547, %v2965
    %v2998 = vadd.f32 %v2548, %v2966
    %v2999 = vadd.f32 %v2549, %v2967
    %v3000 = vadd.f32 %v2550, %v2968
    %v3001 = vadd.f32 %v2551, %v2969
    %v3002 = vadd.f32 %v2552, %v2970
    %v3003 = vadd.f32 %v2553, %v2971
    %v3004 = vadd.f32 %v2554, %v2972
    %v3005 = vadd.f32 %v2555, %v2973
    %v3006 = vadd.f32 %v2556, %v2974
    %3007 = vset.pattern.permute.xlu0 2
    %3008 = vperm.xlu0 %3007, %v1814
    %v3009 = vpop.permute.xlu0 %3008
    %3011 = vset.pattern.permute.xlu0 2
    %3012 = vperm.xlu0 %3011, %v1815
    %v3013 = vpop.permute.xlu0 %3012
    %3015 = vset.pattern.permute.xlu0 2
    %3016 = vperm.xlu0 %3015, %v1816
    %v3017 = vpop.permute.xlu0 %3016
    %3019 = vset.pattern.permute.xlu0 2
    %3020 = vperm.xlu0 %3019, %v1817
    %v3021 = vpop.permute.xlu0 %3020
    %3023 = vset.pattern.permute.xlu0 2
    %3024 = vperm.xlu0 %3023, %v1818
    %v3025 = vpop.permute.xlu0 %3024
    %3027 = vset.pattern.permute.xlu0 2
    %3028 = vperm.xlu0 %3027, %v1819
    %v3029 = vpop.permute.xlu0 %3028
    %3031 = vset.pattern.permute.xlu0 2
    %3032 = vperm.xlu0 %3031, %v1820
    %v3033 = vpop.permute.xlu0 %3032
    %3035 = vset.pattern.permute.xlu0 2
    %3036 = vperm.xlu0 %3035, %v1821
    %v3037 = vpop.permute.xlu0 %3036
    %3039 = vset.pattern.permute.xlu0 2
    %3040 = vperm.xlu0 %3039, %v1822
    %v3041 = vpop.permute.xlu0 %3040
    %3043 = vset.pattern.permute.xlu0 2
    %3044 = vperm.xlu0 %3043, %v1823
    %v3045 = vpop.permute.xlu0 %3044
    %3047 = vset.pattern.permute.xlu0 2
    %3048 = vperm.xlu0 %3047, %v1824
    %v3049 = vpop.permute.xlu0 %3048
    %3051 = vset.pattern.permute.xlu0 2
    %3052 = vperm.xlu0 %3051, %v1825
    %v3053 = vpop.permute.xlu0 %3052
    %3055 = vset.pattern.permute.xlu0 2
    %3056 = vperm.xlu0 %3055, %v1826
    %v3057 = vpop.permute.xlu0 %3056
    %3059 = vset.pattern.permute.xlu0 2
    %3060 = vperm.xlu0 %3059, %v1827
    %v3061 = vpop.permute.xlu0 %3060
    %3063 = vset.pattern.permute.xlu0 2
    %3064 = vperm.xlu0 %3063, %v1828
    %v3065 = vpop.permute.xlu0 %3064
    %3067 = vset.pattern.permute.xlu0 2
    %3068 = vperm.xlu0 %3067, %v1829
    %v3069 = vpop.permute.xlu0 %3068
    %3071 = vset.pattern.permute.xlu0 2
    %3072 = vperm.xlu0 %3071, %v1830
    %v3073 = vpop.permute.xlu0 %3072
    %3075 = vset.pattern.permute.xlu0 2
    %3076 = vperm.xlu0 %3075, %v1831
    %v3077 = vpop.permute.xlu0 %3076
    %3079 = vset.pattern.permute.xlu0 2
    %3080 = vperm.xlu0 %3079, %v1832
    %v3081 = vpop.permute.xlu0 %3080
    %3083 = vset.pattern.permute.xlu0 2
    %3084 = vperm.xlu0 %3083, %v1833
    %v3085 = vpop.permute.xlu0 %3084
    %3087 = vset.pattern.permute.xlu0 2
    %3088 = vperm.xlu0 %3087, %v1834
    %v3089 = vpop.permute.xlu0 %3088
    %3091 = vset.pattern.permute.xlu0 2
    %3092 = vperm.xlu0 %3091, %v1835
    %v3093 = vpop.permute.xlu0 %3092
    %3095 = vset.pattern.permute.xlu0 2
    %3096 = vperm.xlu0 %3095, %v1836
    %v3097 = vpop.permute.xlu0 %3096
    %3099 = vset.pattern.permute.xlu0 2
    %3100 = vperm.xlu0 %3099, %v1837
    %v3101 = vpop.permute.xlu0 %3100
    %3103 = vset.pattern.permute.xlu0 2
    %3104 = vperm.xlu0 %3103, %v1838
    %v3105 = vpop.permute.xlu0 %3104
    %3107 = vset.pattern.permute.xlu0 2
    %3108 = vperm.xlu0 %3107, %v1839
    %v3109 = vpop.permute.xlu0 %3108
    %3111 = vset.pattern.permute.xlu0 2
    %3112 = vperm.xlu0 %3111, %v1840
    %v3113 = vpop.permute.xlu0 %3112
    %3115 = vset.pattern.permute.xlu0 2
    %3116 = vperm.xlu0 %3115, %v1841
    %v3117 = vpop.permute.xlu0 %3116
    %3119 = vset.pattern.permute.xlu0 2
    %3120 = vperm.xlu0 %3119, %v1842
    %v3121 = vpop.permute.xlu0 %3120
    %3123 = vset.pattern.permute.xlu0 2
    %3124 = vperm.xlu0 %3123, %v1843
    %v3125 = vpop.permute.xlu0 %3124
    %3127 = vset.pattern.permute.xlu0 2
    %3128 = vperm.xlu0 %3127, %v1844
    %v3129 = vpop.permute.xlu0 %3128
    %3131 = vset.pattern.permute.xlu0 2
    %3132 = vperm.xlu0 %3131, %v1845
    %v3133 = vpop.permute.xlu0 %3132
    %v3135 = vmul.f32 %v1914, %v3009
    %v3136 = vmul.f32 %v1913, %v3013
    %v3137 = vmul.f32 %v1912, %v3017
    %v3138 = vmul.f32 %v1911, %v3021
    %v3139 = vmul.f32 %v1910, %v3025
    %v3140 = vmul.f32 %v1909, %v3029
    %v3141 = vmul.f32 %v1908, %v3033
    %v3142 = vmul.f32 %v1907, %v3037
    %v3143 = vmul.f32 %v1906, %v3041
    %v3144 = vmul.f32 %v1905, %v3045
    %v3145 = vmul.f32 %v1904, %v3049
    %v3146 = vmul.f32 %v1903, %v3053
    %v3147 = vmul.f32 %v1902, %v3057
    %v3148 = vmul.f32 %v1901, %v3061
    %v3149 = vmul.f32 %v1900, %v3065
    %v3150 = vmul.f32 %v1899, %v3069
    %v3151 = vmul.f32 %v1898, %v3073
    %v3152 = vmul.f32 %v1897, %v3077
    %v3153 = vmul.f32 %v1896, %v3081
    %v3154 = vmul.f32 %v1895, %v3085
    %v3155 = vmul.f32 %v1894, %v3089
    %v3156 = vmul.f32 %v1893, %v3093
    %v3157 = vmul.f32 %v1892, %v3097
    %v3158 = vmul.f32 %v1891, %v3101
    %v3159 = vmul.f32 %v1890, %v3105
    %v3160 = vmul.f32 %v1889, %v3109
    %v3161 = vmul.f32 %v1888, %v3113
    %v3162 = vmul.f32 %v1887, %v3117
    %v3163 = vmul.f32 %v1886, %v3121
    %v3164 = vmul.f32 %v1885, %v3125
    %v3165 = vmul.f32 %v1884, %v3129
    %v3166 = vmul.f32 %v1883, %v3133
    %v3167 = vperm.slane %v1846, 3
    %v3168 = vmul.f32 %v3135, %v3167
    %v3169 = vmul.f32 %v3136, %v3167
    %v3170 = vmul.f32 %v3137, %v3167
    %v3171 = vmul.f32 %v3138, %v3167
    %v3172 = vmul.f32 %v3139, %v3167
    %v3173 = vmul.f32 %v3140, %v3167
    %v3174 = vmul.f32 %v3141, %v3167
    %v3175 = vmul.f32 %v3142, %v3167
    %v3176 = vmul.f32 %v3143, %v3167
    %v3177 = vmul.f32 %v3144, %v3167
    %v3178 = vmul.f32 %v3145, %v3167
    %v3179 = vmul.f32 %v3146, %v3167
    %v3180 = vmul.f32 %v3147, %v3167
    %v3181 = vmul.f32 %v3148, %v3167
    %v3182 = vmul.f32 %v3149, %v3167
    %v3183 = vmul.f32 %v3150, %v3167
    %v3184 = vmul.f32 %v3151, %v3167
    %v3185 = vmul.f32 %v3152, %v3167
    %v3186 = vmul.f32 %v3153, %v3167
    %v3187 = vmul.f32 %v3154, %v3167
    %v3188 = vmul.f32 %v3155, %v3167
    %v3189 = vmul.f32 %v3156, %v3167
    %v3190 = vmul.f32 %v3157, %v3167
    %v3191 = vmul.f32 %v3158, %v3167
    %v3192 = vmul.f32 %v3159, %v3167
    %v3193 = vmul.f32 %v3160, %v3167
    %v3194 = vmul.f32 %v3161, %v3167
    %v3195 = vmul.f32 %v3162, %v3167
    %v3196 = vmul.f32 %v3163, %v3167
    %v3197 = vmul.f32 %v3164, %v3167
    %v3198 = vmul.f32 %v3165, %v3167
    %v3199 = vmul.f32 %v3166, %v3167
    %v3200 = vadd.f32 %v2975, %v3168
    %v3201 = vadd.f32 %v2976, %v3169
    %v3202 = vadd.f32 %v2977, %v3170
    %v3203 = vadd.f32 %v2978, %v3171
    %v3204 = vadd.f32 %v2979, %v3172
    %v3205 = vadd.f32 %v2980, %v3173
    %v3206 = vadd.f32 %v2981, %v3174
    %v3207 = vadd.f32 %v2982, %v3175
    %v3208 = vadd.f32 %v2983, %v3176
    %v3209 = vadd.f32 %v2984, %v3177
    %v3210 = vadd.f32 %v2985, %v3178
    %v3211 = vadd.f32 %v2986, %v3179
    %v3212 = vadd.f32 %v2987, %v3180
    %v3213 = vadd.f32 %v2988, %v3181
    %v3214 = vadd.f32 %v2989, %v3182
    %v3215 = vadd.f32 %v2990, %v3183
    %v3216 = vadd.f32 %v2991, %v3184
    %v3217 = vadd.f32 %v2992, %v3185
    %v3218 = vadd.f32 %v2993, %v3186
    %v3219 = vadd.f32 %v2994, %v3187
    %v3220 = vadd.f32 %v2995, %v3188
    %v3221 = vadd.f32 %v2996, %v3189
    %v3222 = vadd.f32 %v2997, %v3190
    %v3223 = vadd.f32 %v2998, %v3191
    %v3224 = vadd.f32 %v2999, %v3192
    %v3225 = vadd.f32 %v3000, %v3193
    %v3226 = vadd.f32 %v3001, %v3194
    %v3227 = vadd.f32 %v3002, %v3195
    %v3228 = vadd.f32 %v3003, %v3196
    %v3229 = vadd.f32 %v3004, %v3197
    %v3230 = vadd.f32 %v3005, %v3198
    %v3231 = vadd.f32 %v3006, %v3199
    %v3232 = vperm.slane %v1846, 4
    %v3233 = vmul.f32 %v1782, %v3232
    %v3234 = vmul.f32 %v1783, %v3232
    %v3235 = vmul.f32 %v1784, %v3232
    %v3236 = vmul.f32 %v1785, %v3232
    %v3237 = vmul.f32 %v1786, %v3232
    %v3238 = vmul.f32 %v1787, %v3232
    %v3239 = vmul.f32 %v1788, %v3232
    %v3240 = vmul.f32 %v1789, %v3232
    %v3241 = vmul.f32 %v1790, %v3232
    %v3242 = vmul.f32 %v1791, %v3232
    %v3243 = vmul.f32 %v1792, %v3232
    %v3244 = vmul.f32 %v1793, %v3232
    %v3245 = vmul.f32 %v1794, %v3232
    %v3246 = vmul.f32 %v1795, %v3232
    %v3247 = vmul.f32 %v1796, %v3232
    %v3248 = vmul.f32 %v1797, %v3232
    %v3249 = vmul.f32 %v1798, %v3232
    %v3250 = vmul.f32 %v1799, %v3232
    %v3251 = vmul.f32 %v1800, %v3232
    %v3252 = vmul.f32 %v1801, %v3232
    %v3253 = vmul.f32 %v1802, %v3232
    %v3254 = vmul.f32 %v1803, %v3232
    %v3255 = vmul.f32 %v1804, %v3232
    %v3256 = vmul.f32 %v1805, %v3232
    %v3257 = vmul.f32 %v1806, %v3232
    %v3258 = vmul.f32 %v1807, %v3232
    %v3259 = vmul.f32 %v1808, %v3232
    %v3260 = vmul.f32 %v1809, %v3232
    %v3261 = vmul.f32 %v1810, %v3232
    %v3262 = vmul.f32 %v1811, %v3232
    %v3263 = vmul.f32 %v1812, %v3232
    %v3264 = vmul.f32 %v1813, %v3232
    %v3265 = vadd.f32 %v3200, %v3233
    %v3266 = vadd.f32 %v3201, %v3234
    %v3267 = vadd.f32 %v3202, %v3235
    %v3268 = vadd.f32 %v3203, %v3236
    %v3269 = vadd.f32 %v3204, %v3237
    %v3270 = vadd.f32 %v3205, %v3238
    %v3271 = vadd.f32 %v3206, %v3239
    %v3272 = vadd.f32 %v3207, %v3240
    %v3273 = vadd.f32 %v3208, %v3241
    %v3274 = vadd.f32 %v3209, %v3242
    %v3275 = vadd.f32 %v3210, %v3243
    %v3276 = vadd.f32 %v3211, %v3244
    %v3277 = vadd.f32 %v3212, %v3245
    %v3278 = vadd.f32 %v3213, %v3246
    %v3279 = vadd.f32 %v3214, %v3247
    %v3280 = vadd.f32 %v3215, %v3248
    %v3281 = vadd.f32 %v3216, %v3249
    %v3282 = vadd.f32 %v3217, %v3250
    %v3283 = vadd.f32 %v3218, %v3251
    %v3284 = vadd.f32 %v3219, %v3252
    %v3285 = vadd.f32 %v3220, %v3253
    %v3286 = vadd.f32 %v3221, %v3254
    %v3287 = vadd.f32 %v3222, %v3255
    %v3288 = vadd.f32 %v3223, %v3256
    %v3289 = vadd.f32 %v3224, %v3257
    %v3290 = vadd.f32 %v3225, %v3258
    %v3291 = vadd.f32 %v3226, %v3259
    %v3292 = vadd.f32 %v3227, %v3260
    %v3293 = vadd.f32 %v3228, %v3261
    %v3294 = vadd.f32 %v3229, %v3262
    %v3295 = vadd.f32 %v3230, %v3263
    %v3296 = vadd.f32 %v3231, %v3264
    %3297 = vset.pattern.permute.xlu0 3
    %3298 = vperm.xlu0 %3297, %v1814
    %v3299 = vpop.permute.xlu0 %3298
    %3301 = vset.pattern.permute.xlu0 3
    %3302 = vperm.xlu0 %3301, %v1815
    %v3303 = vpop.permute.xlu0 %3302
    %3305 = vset.pattern.permute.xlu0 3
    %3306 = vperm.xlu0 %3305, %v1816
    %v3307 = vpop.permute.xlu0 %3306
    %3309 = vset.pattern.permute.xlu0 3
    %3310 = vperm.xlu0 %3309, %v1817
    %v3311 = vpop.permute.xlu0 %3310
    %3313 = vset.pattern.permute.xlu0 3
    %3314 = vperm.xlu0 %3313, %v1818
    %v3315 = vpop.permute.xlu0 %3314
    %3317 = vset.pattern.permute.xlu0 3
    %3318 = vperm.xlu0 %3317, %v1819
    %v3319 = vpop.permute.xlu0 %3318
    %3321 = vset.pattern.permute.xlu0 3
    %3322 = vperm.xlu0 %3321, %v1820
    %v3323 = vpop.permute.xlu0 %3322
    %3325 = vset.pattern.permute.xlu0 3
    %3326 = vperm.xlu0 %3325, %v1821
    %v3327 = vpop.permute.xlu0 %3326
    %3329 = vset.pattern.permute.xlu0 3
    %3330 = vperm.xlu0 %3329, %v1822
    %v3331 = vpop.permute.xlu0 %3330
    %3333 = vset.pattern.permute.xlu0 3
    %3334 = vperm.xlu0 %3333, %v1823
    %v3335 = vpop.permute.xlu0 %3334
    %3337 = vset.pattern.permute.xlu0 3
    %3338 = vperm.xlu0 %3337, %v1824
    %v3339 = vpop.permute.xlu0 %3338
    %3341 = vset.pattern.permute.xlu0 3
    %3342 = vperm.xlu0 %3341, %v1825
    %v3343 = vpop.permute.xlu0 %3342
    %3345 = vset.pattern.permute.xlu0 3
    %3346 = vperm.xlu0 %3345, %v1826
    %v3347 = vpop.permute.xlu0 %3346
    %3349 = vset.pattern.permute.xlu0 3
    %3350 = vperm.xlu0 %3349, %v1827
    %v3351 = vpop.permute.xlu0 %3350
    %3353 = vset.pattern.permute.xlu0 3
    %3354 = vperm.xlu0 %3353, %v1828
    %v3355 = vpop.permute.xlu0 %3354
    %3357 = vset.pattern.permute.xlu0 3
    %3358 = vperm.xlu0 %3357, %v1829
    %v3359 = vpop.permute.xlu0 %3358
    %3361 = vset.pattern.permute.xlu0 3
    %3362 = vperm.xlu0 %3361, %v1830
    %v3363 = vpop.permute.xlu0 %3362
    %3365 = vset.pattern.permute.xlu0 3
    %3366 = vperm.xlu0 %3365, %v1831
    %v3367 = vpop.permute.xlu0 %3366
    %3369 = vset.pattern.permute.xlu0 3
    %3370 = vperm.xlu0 %3369, %v1832
    %v3371 = vpop.permute.xlu0 %3370
    %3373 = vset.pattern.permute.xlu0 3
    %3374 = vperm.xlu0 %3373, %v1833
    %v3375 = vpop.permute.xlu0 %3374
    %3377 = vset.pattern.permute.xlu0 3
    %3378 = vperm.xlu0 %3377, %v1834
    %v3379 = vpop.permute.xlu0 %3378
    %3381 = vset.pattern.permute.xlu0 3
    %3382 = vperm.xlu0 %3381, %v1835
    %v3383 = vpop.permute.xlu0 %3382
    %3385 = vset.pattern.permute.xlu0 3
    %3386 = vperm.xlu0 %3385, %v1836
    %v3387 = vpop.permute.xlu0 %3386
    %3389 = vset.pattern.permute.xlu0 3
    %3390 = vperm.xlu0 %3389, %v1837
    %v3391 = vpop.permute.xlu0 %3390
    %3393 = vset.pattern.permute.xlu0 3
    %3394 = vperm.xlu0 %3393, %v1838
    %v3395 = vpop.permute.xlu0 %3394
    %3397 = vset.pattern.permute.xlu0 3
    %3398 = vperm.xlu0 %3397, %v1839
    %v3399 = vpop.permute.xlu0 %3398
    %3401 = vset.pattern.permute.xlu0 3
    %3402 = vperm.xlu0 %3401, %v1840
    %v3403 = vpop.permute.xlu0 %3402
    %3405 = vset.pattern.permute.xlu0 3
    %3406 = vperm.xlu0 %3405, %v1841
    %v3407 = vpop.permute.xlu0 %3406
    %3409 = vset.pattern.permute.xlu0 3
    %3410 = vperm.xlu0 %3409, %v1842
    %v3411 = vpop.permute.xlu0 %3410
    %3413 = vset.pattern.permute.xlu0 3
    %3414 = vperm.xlu0 %3413, %v1843
    %v3415 = vpop.permute.xlu0 %3414
    %3417 = vset.pattern.permute.xlu0 3
    %3418 = vperm.xlu0 %3417, %v1844
    %v3419 = vpop.permute.xlu0 %3418
    %3421 = vset.pattern.permute.xlu0 3
    %3422 = vperm.xlu0 %3421, %v1845
    %v3423 = vpop.permute.xlu0 %3422
    %v3425 = vmul.f32 %v2620, %v3299
    %v3426 = vmul.f32 %v2619, %v3303
    %v3427 = vmul.f32 %v2618, %v3307
    %v3428 = vmul.f32 %v2617, %v3311
    %v3429 = vmul.f32 %v2616, %v3315
    %v3430 = vmul.f32 %v2615, %v3319
    %v3431 = vmul.f32 %v2614, %v3323
    %v3432 = vmul.f32 %v2613, %v3327
    %v3433 = vmul.f32 %v2612, %v3331
    %v3434 = vmul.f32 %v2611, %v3335
    %v3435 = vmul.f32 %v2610, %v3339
    %v3436 = vmul.f32 %v2609, %v3343
    %v3437 = vmul.f32 %v2608, %v3347
    %v3438 = vmul.f32 %v2607, %v3351
    %v3439 = vmul.f32 %v2606, %v3355
    %v3440 = vmul.f32 %v2605, %v3359
    %v3441 = vmul.f32 %v2604, %v3363
    %v3442 = vmul.f32 %v2603, %v3367
    %v3443 = vmul.f32 %v2602, %v3371
    %v3444 = vmul.f32 %v2601, %v3375
    %v3445 = vmul.f32 %v2600, %v3379
    %v3446 = vmul.f32 %v2599, %v3383
    %v3447 = vmul.f32 %v2598, %v3387
    %v3448 = vmul.f32 %v2597, %v3391
    %v3449 = vmul.f32 %v2596, %v3395
    %v3450 = vmul.f32 %v2595, %v3399
    %v3451 = vmul.f32 %v2594, %v3403
    %v3452 = vmul.f32 %v2593, %v3407
    %v3453 = vmul.f32 %v2592, %v3411
    %v3454 = vmul.f32 %v2591, %v3415
    %v3455 = vmul.f32 %v2590, %v3419
    %v3456 = vmul.f32 %v2621, %v3423
    %v3457 = vperm.slane %v1846, 5
    %v3458 = vmul.f32 %v3425, %v3457
    %v3459 = vmul.f32 %v3426, %v3457
    %v3460 = vmul.f32 %v3427, %v3457
    %v3461 = vmul.f32 %v3428, %v3457
    %v3462 = vmul.f32 %v3429, %v3457
    %v3463 = vmul.f32 %v3430, %v3457
    %v3464 = vmul.f32 %v3431, %v3457
    %v3465 = vmul.f32 %v3432, %v3457
    %v3466 = vmul.f32 %v3433, %v3457
    %v3467 = vmul.f32 %v3434, %v3457
    %v3468 = vmul.f32 %v3435, %v3457
    %v3469 = vmul.f32 %v3436, %v3457
    %v3470 = vmul.f32 %v3437, %v3457
    %v3471 = vmul.f32 %v3438, %v3457
    %v3472 = vmul.f32 %v3439, %v3457
    %v3473 = vmul.f32 %v3440, %v3457
    %v3474 = vmul.f32 %v3441, %v3457
    %v3475 = vmul.f32 %v3442, %v3457
    %v3476 = vmul.f32 %v3443, %v3457
    %v3477 = vmul.f32 %v3444, %v3457
    %v3478 = vmul.f32 %v3445, %v3457
    %v3479 = vmul.f32 %v3446, %v3457
    %v3480 = vmul.f32 %v3447, %v3457
    %v3481 = vmul.f32 %v3448, %v3457
    %v3482 = vmul.f32 %v3449, %v3457
    %v3483 = vmul.f32 %v3450, %v3457
    %v3484 = vmul.f32 %v3451, %v3457
    %v3485 = vmul.f32 %v3452, %v3457
    %v3486 = vmul.f32 %v3453, %v3457
    %v3487 = vmul.f32 %v3454, %v3457
    %v3488 = vmul.f32 %v3455, %v3457
    %v3489 = vmul.f32 %v3456, %v3457
    %v3490 = vadd.f32 %v3265, %v3458
    %v3491 = vadd.f32 %v3266, %v3459
    %v3492 = vadd.f32 %v3267, %v3460
    %v3493 = vadd.f32 %v3268, %v3461
    %v3494 = vadd.f32 %v3269, %v3462
    %v3495 = vadd.f32 %v3270, %v3463
    %v3496 = vadd.f32 %v3271, %v3464
    %v3497 = vadd.f32 %v3272, %v3465
    %v3498 = vadd.f32 %v3273, %v3466
    %v3499 = vadd.f32 %v3274, %v3467
    %v3500 = vadd.f32 %v3275, %v3468
    %v3501 = vadd.f32 %v3276, %v3469
    %v3502 = vadd.f32 %v3277, %v3470
    %v3503 = vadd.f32 %v3278, %v3471
    %v3504 = vadd.f32 %v3279, %v3472
    %v3505 = vadd.f32 %v3280, %v3473
    %v3506 = vadd.f32 %v3281, %v3474
    %v3507 = vadd.f32 %v3282, %v3475
    %v3508 = vadd.f32 %v3283, %v3476
    %v3509 = vadd.f32 %v3284, %v3477
    %v3510 = vadd.f32 %v3285, %v3478
    %v3511 = vadd.f32 %v3286, %v3479
    %v3512 = vadd.f32 %v3287, %v3480
    %v3513 = vadd.f32 %v3288, %v3481
    %v3514 = vadd.f32 %v3289, %v3482
    %v3515 = vadd.f32 %v3290, %v3483
    %v3516 = vadd.f32 %v3291, %v3484
    %v3517 = vadd.f32 %v3292, %v3485
    %v3518 = vadd.f32 %v3293, %v3486
    %v3519 = vadd.f32 %v3294, %v3487
    %v3520 = vadd.f32 %v3295, %v3488
    %v3521 = vadd.f32 %v3296, %v3489
    %3522 = vrot.lane.b32.xlu0 %v1814, 127
    %v3523 = vpop.permute.xlu0 %3522
    %3524 = vrot.lane.b32.xlu0 %v1815, 127
    %v3525 = vpop.permute.xlu0 %3524
    %3526 = vrot.lane.b32.xlu0 %v1816, 127
    %v3527 = vpop.permute.xlu0 %3526
    %3528 = vrot.lane.b32.xlu0 %v1817, 127
    %v3529 = vpop.permute.xlu0 %3528
    %3530 = vrot.lane.b32.xlu0 %v1818, 127
    %v3531 = vpop.permute.xlu0 %3530
    %3532 = vrot.lane.b32.xlu0 %v1819, 127
    %v3533 = vpop.permute.xlu0 %3532
    %3534 = vrot.lane.b32.xlu0 %v1820, 127
    %v3535 = vpop.permute.xlu0 %3534
    %3536 = vrot.lane.b32.xlu0 %v1821, 127
    %v3537 = vpop.permute.xlu0 %3536
    %3538 = vrot.lane.b32.xlu0 %v1822, 127
    %v3539 = vpop.permute.xlu0 %3538
    %3540 = vrot.lane.b32.xlu0 %v1823, 127
    %v3541 = vpop.permute.xlu0 %3540
    %3542 = vrot.lane.b32.xlu0 %v1824, 127
    %v3543 = vpop.permute.xlu0 %3542
    %3544 = vrot.lane.b32.xlu0 %v1825, 127
    %v3545 = vpop.permute.xlu0 %3544
    %3546 = vrot.lane.b32.xlu0 %v1826, 127
    %v3547 = vpop.permute.xlu0 %3546
    %3548 = vrot.lane.b32.xlu0 %v1827, 127
    %v3549 = vpop.permute.xlu0 %3548
    %3550 = vrot.lane.b32.xlu0 %v1828, 127
    %v3551 = vpop.permute.xlu0 %3550
    %3552 = vrot.lane.b32.xlu0 %v1829, 127
    %v3553 = vpop.permute.xlu0 %3552
    %3554 = vrot.lane.b32.xlu0 %v1830, 127
    %v3555 = vpop.permute.xlu0 %3554
    %3556 = vrot.lane.b32.xlu0 %v1831, 127
    %v3557 = vpop.permute.xlu0 %3556
    %3558 = vrot.lane.b32.xlu0 %v1832, 127
    %v3559 = vpop.permute.xlu0 %3558
    %3560 = vrot.lane.b32.xlu0 %v1833, 127
    %v3561 = vpop.permute.xlu0 %3560
    %3562 = vrot.lane.b32.xlu0 %v1834, 127
    %v3563 = vpop.permute.xlu0 %3562
    %3564 = vrot.lane.b32.xlu0 %v1835, 127
    %v3565 = vpop.permute.xlu0 %3564
    %3566 = vrot.lane.b32.xlu0 %v1836, 127
    %v3567 = vpop.permute.xlu0 %3566
    %3568 = vrot.lane.b32.xlu0 %v1837, 127
    %v3569 = vpop.permute.xlu0 %3568
    %3570 = vrot.lane.b32.xlu0 %v1838, 127
    %v3571 = vpop.permute.xlu0 %3570
    %3572 = vrot.lane.b32.xlu0 %v1839, 127
    %v3573 = vpop.permute.xlu0 %3572
    %3574 = vrot.lane.b32.xlu0 %v1840, 127
    %v3575 = vpop.permute.xlu0 %3574
    %3576 = vrot.lane.b32.xlu0 %v1841, 127
    %v3577 = vpop.permute.xlu0 %3576
    %3578 = vrot.lane.b32.xlu0 %v1842, 127
    %v3579 = vpop.permute.xlu0 %3578
    %3580 = vrot.lane.b32.xlu0 %v1843, 127
    %v3581 = vpop.permute.xlu0 %3580
    %3582 = vrot.lane.b32.xlu0 %v1844, 127
    %v3583 = vpop.permute.xlu0 %3582
    %3584 = vrot.lane.b32.xlu0 %v1845, 127
    %v3585 = vpop.permute.xlu0 %3584
    %v3618 = vmul.f32 %v1814, %v3523
    %v3619 = vmul.f32 %v1815, %v3525
    %v3620 = vmul.f32 %v1816, %v3527
    %v3621 = vmul.f32 %v1817, %v3529
    %v3622 = vmul.f32 %v1818, %v3531
    %v3623 = vmul.f32 %v1819, %v3533
    %v3624 = vmul.f32 %v1820, %v3535
    %v3625 = vmul.f32 %v1821, %v3537
    %v3626 = vmul.f32 %v1822, %v3539
    %v3627 = vmul.f32 %v1823, %v3541
    %v3628 = vmul.f32 %v1824, %v3543
    %v3629 = vmul.f32 %v1825, %v3545
    %v3630 = vmul.f32 %v1826, %v3547
    %v3631 = vmul.f32 %v1827, %v3549
    %v3632 = vmul.f32 %v1828, %v3551
    %v3633 = vmul.f32 %v1829, %v3553
    %v3634 = vmul.f32 %v1830, %v3555
    %v3635 = vmul.f32 %v1831, %v3557
    %v3636 = vmul.f32 %v1832, %v3559
    %v3637 = vmul.f32 %v1833, %v3561
    %v3638 = vmul.f32 %v1834, %v3563
    %v3639 = vmul.f32 %v1835, %v3565
    %v3640 = vmul.f32 %v1836, %v3567
    %v3641 = vmul.f32 %v1837, %v3569
    %v3642 = vmul.f32 %v1838, %v3571
    %v3643 = vmul.f32 %v1839, %v3573
    %v3644 = vmul.f32 %v1840, %v3575
    %v3645 = vmul.f32 %v1841, %v3577
    %v3646 = vmul.f32 %v1842, %v3579
    %v3647 = vmul.f32 %v1843, %v3581
    %v3648 = vmul.f32 %v1844, %v3583
    %v3649 = vmul.f32 %v1845, %v3585
    %3651 = vset.pattern.permute.xlu0 1
    %3652 = vperm.xlu0 %3651, %v3618
    %v3653 = vpop.permute.xlu0 %3652
    %3656 = vset.pattern.permute.xlu0 1
    %3657 = vperm.xlu0 %3656, %v3619
    %v3658 = vpop.permute.xlu0 %3657
    %3661 = vset.pattern.permute.xlu0 1
    %3662 = vperm.xlu0 %3661, %v3620
    %v3663 = vpop.permute.xlu0 %3662
    %3666 = vset.pattern.permute.xlu0 1
    %3667 = vperm.xlu0 %3666, %v3621
    %v3668 = vpop.permute.xlu0 %3667
    %3671 = vset.pattern.permute.xlu0 1
    %3672 = vperm.xlu0 %3671, %v3622
    %v3673 = vpop.permute.xlu0 %3672
    %3676 = vset.pattern.permute.xlu0 1
    %3677 = vperm.xlu0 %3676, %v3623
    %v3678 = vpop.permute.xlu0 %3677
    %3681 = vset.pattern.permute.xlu0 1
    %3682 = vperm.xlu0 %3681, %v3624
    %v3683 = vpop.permute.xlu0 %3682
    %3686 = vset.pattern.permute.xlu0 1
    %3687 = vperm.xlu0 %3686, %v3625
    %v3688 = vpop.permute.xlu0 %3687
    %3691 = vset.pattern.permute.xlu0 1
    %3692 = vperm.xlu0 %3691, %v3626
    %v3693 = vpop.permute.xlu0 %3692
    %3696 = vset.pattern.permute.xlu0 1
    %3697 = vperm.xlu0 %3696, %v3627
    %v3698 = vpop.permute.xlu0 %3697
    %3701 = vset.pattern.permute.xlu0 1
    %3702 = vperm.xlu0 %3701, %v3628
    %v3703 = vpop.permute.xlu0 %3702
    %3706 = vset.pattern.permute.xlu0 1
    %3707 = vperm.xlu0 %3706, %v3629
    %v3708 = vpop.permute.xlu0 %3707
    %3711 = vset.pattern.permute.xlu0 1
    %3712 = vperm.xlu0 %3711, %v3630
    %v3713 = vpop.permute.xlu0 %3712
    %3716 = vset.pattern.permute.xlu0 1
    %3717 = vperm.xlu0 %3716, %v3631
    %v3718 = vpop.permute.xlu0 %3717
    %3721 = vset.pattern.permute.xlu0 1
    %3722 = vperm.xlu0 %3721, %v3632
    %v3723 = vpop.permute.xlu0 %3722
    %3726 = vset.pattern.permute.xlu0 1
    %3727 = vperm.xlu0 %3726, %v3633
    %v3728 = vpop.permute.xlu0 %3727
    %3731 = vset.pattern.permute.xlu0 1
    %3732 = vperm.xlu0 %3731, %v3634
    %v3733 = vpop.permute.xlu0 %3732
    %3736 = vset.pattern.permute.xlu0 1
    %3737 = vperm.xlu0 %3736, %v3635
    %v3738 = vpop.permute.xlu0 %3737
    %3741 = vset.pattern.permute.xlu0 1
    %3742 = vperm.xlu0 %3741, %v3636
    %v3743 = vpop.permute.xlu0 %3742
    %3746 = vset.pattern.permute.xlu0 1
    %3747 = vperm.xlu0 %3746, %v3637
    %v3748 = vpop.permute.xlu0 %3747
    %3751 = vset.pattern.permute.xlu0 1
    %3752 = vperm.xlu0 %3751, %v3638
    %v3753 = vpop.permute.xlu0 %3752
    %3756 = vset.pattern.permute.xlu0 1
    %3757 = vperm.xlu0 %3756, %v3639
    %v3758 = vpop.permute.xlu0 %3757
    %3761 = vset.pattern.permute.xlu0 1
    %3762 = vperm.xlu0 %3761, %v3640
    %v3763 = vpop.permute.xlu0 %3762
    %3766 = vset.pattern.permute.xlu0 1
    %3767 = vperm.xlu0 %3766, %v3641
    %v3768 = vpop.permute.xlu0 %3767
    %3771 = vset.pattern.permute.xlu0 1
    %3772 = vperm.xlu0 %3771, %v3642
    %v3773 = vpop.permute.xlu0 %3772
    %3776 = vset.pattern.permute.xlu0 1
    %3777 = vperm.xlu0 %3776, %v3643
    %v3778 = vpop.permute.xlu0 %3777
    %3781 = vset.pattern.permute.xlu0 1
    %3782 = vperm.xlu0 %3781, %v3644
    %v3783 = vpop.permute.xlu0 %3782
    %3786 = vset.pattern.permute.xlu0 1
    %3787 = vperm.xlu0 %3786, %v3645
    %v3788 = vpop.permute.xlu0 %3787
    %3791 = vset.pattern.permute.xlu0 1
    %3792 = vperm.xlu0 %3791, %v3646
    %v3793 = vpop.permute.xlu0 %3792
    %3796 = vset.pattern.permute.xlu0 1
    %3797 = vperm.xlu0 %3796, %v3647
    %v3798 = vpop.permute.xlu0 %3797
    %3801 = vset.pattern.permute.xlu0 1
    %3802 = vperm.xlu0 %3801, %v3648
    %v3803 = vpop.permute.xlu0 %3802
    %3806 = vset.pattern.permute.xlu0 1
    %3807 = vperm.xlu0 %3806, %v3649
    %v3808 = vpop.permute.xlu0 %3807
    %v3810 = vmul.f32 %v1912, %v3653
    %v3811 = vmul.f32 %v1911, %v3658
    %v3812 = vmul.f32 %v1910, %v3663
    %v3813 = vmul.f32 %v1909, %v3668
    %v3814 = vmul.f32 %v1908, %v3673
    %v3815 = vmul.f32 %v1907, %v3678
    %v3816 = vmul.f32 %v1906, %v3683
    %v3817 = vmul.f32 %v1905, %v3688
    %v3818 = vmul.f32 %v1904, %v3693
    %v3819 = vmul.f32 %v1903, %v3698
    %v3820 = vmul.f32 %v1902, %v3703
    %v3821 = vmul.f32 %v1901, %v3708
    %v3822 = vmul.f32 %v1900, %v3713
    %v3823 = vmul.f32 %v1899, %v3718
    %v3824 = vmul.f32 %v1898, %v3723
    %v3825 = vmul.f32 %v1897, %v3728
    %v3826 = vmul.f32 %v1896, %v3733
    %v3827 = vmul.f32 %v1895, %v3738
    %v3828 = vmul.f32 %v1894, %v3743
    %v3829 = vmul.f32 %v1893, %v3748
    %v3830 = vmul.f32 %v1892, %v3753
    %v3831 = vmul.f32 %v1891, %v3758
    %v3832 = vmul.f32 %v1890, %v3763
    %v3833 = vmul.f32 %v1889, %v3768
    %v3834 = vmul.f32 %v1888, %v3773
    %v3835 = vmul.f32 %v1887, %v3778
    %v3836 = vmul.f32 %v1886, %v3783
    %v3837 = vmul.f32 %v1885, %v3788
    %v3838 = vmul.f32 %v1884, %v3793
    %v3839 = vmul.f32 %v1883, %v3798
    %v3840 = vmul.f32 %v1914, %v3803
    %v3841 = vmul.f32 %v1913, %v3808
    %v3842 = vperm.slane %v1846, 6
    %v3843 = vmul.f32 %v3810, %v3842
    %v3844 = vmul.f32 %v3811, %v3842
    %v3845 = vmul.f32 %v3812, %v3842
    %v3846 = vmul.f32 %v3813, %v3842
    %v3847 = vmul.f32 %v3814, %v3842
    %v3848 = vmul.f32 %v3815, %v3842
    %v3849 = vmul.f32 %v3816, %v3842
    %v3850 = vmul.f32 %v3817, %v3842
    %v3851 = vmul.f32 %v3818, %v3842
    %v3852 = vmul.f32 %v3819, %v3842
    %v3853 = vmul.f32 %v3820, %v3842
    %v3854 = vmul.f32 %v3821, %v3842
    %v3855 = vmul.f32 %v3822, %v3842
    %v3856 = vmul.f32 %v3823, %v3842
    %v3857 = vmul.f32 %v3824, %v3842
    %v3858 = vmul.f32 %v3825, %v3842
    %v3859 = vmul.f32 %v3826, %v3842
    %v3860 = vmul.f32 %v3827, %v3842
    %v3861 = vmul.f32 %v3828, %v3842
    %v3862 = vmul.f32 %v3829, %v3842
    %v3863 = vmul.f32 %v3830, %v3842
    %v3864 = vmul.f32 %v3831, %v3842
    %v3865 = vmul.f32 %v3832, %v3842
    %v3866 = vmul.f32 %v3833, %v3842
    %v3867 = vmul.f32 %v3834, %v3842
    %v3868 = vmul.f32 %v3835, %v3842
    %v3869 = vmul.f32 %v3836, %v3842
    %v3870 = vmul.f32 %v3837, %v3842
    %v3871 = vmul.f32 %v3838, %v3842
    %v3872 = vmul.f32 %v3839, %v3842
    %v3873 = vmul.f32 %v3840, %v3842
    %v3874 = vmul.f32 %v3841, %v3842
    %v3875 = vadd.f32 %v3490, %v3843
    %v3876 = vadd.f32 %v3491, %v3844
    %v3877 = vadd.f32 %v3492, %v3845
    %v3878 = vadd.f32 %v3493, %v3846
    %v3879 = vadd.f32 %v3494, %v3847
    %v3880 = vadd.f32 %v3495, %v3848
    %v3881 = vadd.f32 %v3496, %v3849
    %v3882 = vadd.f32 %v3497, %v3850
    %v3883 = vadd.f32 %v3498, %v3851
    %v3884 = vadd.f32 %v3499, %v3852
    %v3885 = vadd.f32 %v3500, %v3853
    %v3886 = vadd.f32 %v3501, %v3854
    %v3887 = vadd.f32 %v3502, %v3855
    %v3888 = vadd.f32 %v3503, %v3856
    %v3889 = vadd.f32 %v3504, %v3857
    %v3890 = vadd.f32 %v3505, %v3858
    %v3891 = vadd.f32 %v3506, %v3859
    %v3892 = vadd.f32 %v3507, %v3860
    %v3893 = vadd.f32 %v3508, %v3861
    %v3894 = vadd.f32 %v3509, %v3862
    %v3895 = vadd.f32 %v3510, %v3863
    %v3896 = vadd.f32 %v3511, %v3864
    %v3897 = vadd.f32 %v3512, %v3865
    %v3898 = vadd.f32 %v3513, %v3866
    %v3899 = vadd.f32 %v3514, %v3867
    %v3900 = vadd.f32 %v3515, %v3868
    %v3901 = vadd.f32 %v3516, %v3869
    %v3902 = vadd.f32 %v3517, %v3870
    %v3903 = vadd.f32 %v3518, %v3871
    %v3904 = vadd.f32 %v3519, %v3872
    %v3905 = vadd.f32 %v3520, %v3873
    %v3906 = vadd.f32 %v3521, %v3874
    %3907 = vset.pattern.permute.xlu0 1
    %3908 = vperm.xlu0 %3907, %v1814
    %v3909 = vpop.permute.xlu0 %3908
    %3911 = vset.pattern.permute.xlu0 1
    %3912 = vperm.xlu0 %3911, %v1815
    %v3913 = vpop.permute.xlu0 %3912
    %3915 = vset.pattern.permute.xlu0 1
    %3916 = vperm.xlu0 %3915, %v1816
    %v3917 = vpop.permute.xlu0 %3916
    %3919 = vset.pattern.permute.xlu0 1
    %3920 = vperm.xlu0 %3919, %v1817
    %v3921 = vpop.permute.xlu0 %3920
    %3923 = vset.pattern.permute.xlu0 1
    %3924 = vperm.xlu0 %3923, %v1818
    %v3925 = vpop.permute.xlu0 %3924
    %3927 = vset.pattern.permute.xlu0 1
    %3928 = vperm.xlu0 %3927, %v1819
    %v3929 = vpop.permute.xlu0 %3928
    %3931 = vset.pattern.permute.xlu0 1
    %3932 = vperm.xlu0 %3931, %v1820
    %v3933 = vpop.permute.xlu0 %3932
    %3935 = vset.pattern.permute.xlu0 1
    %3936 = vperm.xlu0 %3935, %v1821
    %v3937 = vpop.permute.xlu0 %3936
    %3939 = vset.pattern.permute.xlu0 1
    %3940 = vperm.xlu0 %3939, %v1822
    %v3941 = vpop.permute.xlu0 %3940
    %3943 = vset.pattern.permute.xlu0 1
    %3944 = vperm.xlu0 %3943, %v1823
    %v3945 = vpop.permute.xlu0 %3944
    %3947 = vset.pattern.permute.xlu0 1
    %3948 = vperm.xlu0 %3947, %v1824
    %v3949 = vpop.permute.xlu0 %3948
    %3951 = vset.pattern.permute.xlu0 1
    %3952 = vperm.xlu0 %3951, %v1825
    %v3953 = vpop.permute.xlu0 %3952
    %3955 = vset.pattern.permute.xlu0 1
    %3956 = vperm.xlu0 %3955, %v1826
    %v3957 = vpop.permute.xlu0 %3956
    %3959 = vset.pattern.permute.xlu0 1
    %3960 = vperm.xlu0 %3959, %v1827
    %v3961 = vpop.permute.xlu0 %3960
    %3963 = vset.pattern.permute.xlu0 1
    %3964 = vperm.xlu0 %3963, %v1828
    %v3965 = vpop.permute.xlu0 %3964
    %3967 = vset.pattern.permute.xlu0 1
    %3968 = vperm.xlu0 %3967, %v1829
    %v3969 = vpop.permute.xlu0 %3968
    %3971 = vset.pattern.permute.xlu0 1
    %3972 = vperm.xlu0 %3971, %v1830
    %v3973 = vpop.permute.xlu0 %3972
    %3975 = vset.pattern.permute.xlu0 1
    %3976 = vperm.xlu0 %3975, %v1831
    %v3977 = vpop.permute.xlu0 %3976
    %3979 = vset.pattern.permute.xlu0 1
    %3980 = vperm.xlu0 %3979, %v1832
    %v3981 = vpop.permute.xlu0 %3980
    %3983 = vset.pattern.permute.xlu0 1
    %3984 = vperm.xlu0 %3983, %v1833
    %v3985 = vpop.permute.xlu0 %3984
    %3987 = vset.pattern.permute.xlu0 1
    %3988 = vperm.xlu0 %3987, %v1834
    %v3989 = vpop.permute.xlu0 %3988
    %3991 = vset.pattern.permute.xlu0 1
    %3992 = vperm.xlu0 %3991, %v1835
    %v3993 = vpop.permute.xlu0 %3992
    %3995 = vset.pattern.permute.xlu0 1
    %3996 = vperm.xlu0 %3995, %v1836
    %v3997 = vpop.permute.xlu0 %3996
    %3999 = vset.pattern.permute.xlu0 1
    %4000 = vperm.xlu0 %3999, %v1837
    %v4001 = vpop.permute.xlu0 %4000
    %4003 = vset.pattern.permute.xlu0 1
    %4004 = vperm.xlu0 %4003, %v1838
    %v4005 = vpop.permute.xlu0 %4004
    %4007 = vset.pattern.permute.xlu0 1
    %4008 = vperm.xlu0 %4007, %v1839
    %v4009 = vpop.permute.xlu0 %4008
    %4011 = vset.pattern.permute.xlu0 1
    %4012 = vperm.xlu0 %4011, %v1840
    %v4013 = vpop.permute.xlu0 %4012
    %4015 = vset.pattern.permute.xlu0 1
    %4016 = vperm.xlu0 %4015, %v1841
    %v4017 = vpop.permute.xlu0 %4016
    %4019 = vset.pattern.permute.xlu0 1
    %4020 = vperm.xlu0 %4019, %v1842
    %v4021 = vpop.permute.xlu0 %4020
    %4023 = vset.pattern.permute.xlu0 1
    %4024 = vperm.xlu0 %4023, %v1843
    %v4025 = vpop.permute.xlu0 %4024
    %4027 = vset.pattern.permute.xlu0 1
    %4028 = vperm.xlu0 %4027, %v1844
    %v4029 = vpop.permute.xlu0 %4028
    %4031 = vset.pattern.permute.xlu0 1
    %4032 = vperm.xlu0 %4031, %v1845
    %v4033 = vpop.permute.xlu0 %4032
    %v4035 = vmul.f32 %v1784, %v3909
    %v4036 = vmul.f32 %v1785, %v3913
    %v4037 = vmul.f32 %v1786, %v3917
    %v4038 = vmul.f32 %v1787, %v3921
    %v4039 = vmul.f32 %v1788, %v3925
    %v4040 = vmul.f32 %v1789, %v3929
    %v4041 = vmul.f32 %v1790, %v3933
    %v4042 = vmul.f32 %v1791, %v3937
    %v4043 = vmul.f32 %v1792, %v3941
    %v4044 = vmul.f32 %v1793, %v3945
    %v4045 = vmul.f32 %v1794, %v3949
    %v4046 = vmul.f32 %v1795, %v3953
    %v4047 = vmul.f32 %v1796, %v3957
    %v4048 = vmul.f32 %v1797, %v3961
    %v4049 = vmul.f32 %v1798, %v3965
    %v4050 = vmul.f32 %v1799, %v3969
    %v4051 = vmul.f32 %v1800, %v3973
    %v4052 = vmul.f32 %v1801, %v3977
    %v4053 = vmul.f32 %v1802, %v3981
    %v4054 = vmul.f32 %v1803, %v3985
    %v4055 = vmul.f32 %v1804, %v3989
    %v4056 = vmul.f32 %v1805, %v3993
    %v4057 = vmul.f32 %v1806, %v3997
    %v4058 = vmul.f32 %v1807, %v4001
    %v4059 = vmul.f32 %v1808, %v4005
    %v4060 = vmul.f32 %v1809, %v4009
    %v4061 = vmul.f32 %v1810, %v4013
    %v4062 = vmul.f32 %v1811, %v4017
    %v4063 = vmul.f32 %v1812, %v4021
    %v4064 = vmul.f32 %v1813, %v4025
    %v4065 = vmul.f32 %v1782, %v4029
    %v4066 = vmul.f32 %v1783, %v4033
    %v4067 = vperm.slane %v1846, 7
    %v4068 = vmul.f32 %v4035, %v4067
    %v4069 = vmul.f32 %v4036, %v4067
    %v4070 = vmul.f32 %v4037, %v4067
    %v4071 = vmul.f32 %v4038, %v4067
    %v4072 = vmul.f32 %v4039, %v4067
    %v4073 = vmul.f32 %v4040, %v4067
    %v4074 = vmul.f32 %v4041, %v4067
    %v4075 = vmul.f32 %v4042, %v4067
    %v4076 = vmul.f32 %v4043, %v4067
    %v4077 = vmul.f32 %v4044, %v4067
    %v4078 = vmul.f32 %v4045, %v4067
    %v4079 = vmul.f32 %v4046, %v4067
    %v4080 = vmul.f32 %v4047, %v4067
    %v4081 = vmul.f32 %v4048, %v4067
    %v4082 = vmul.f32 %v4049, %v4067
    %v4083 = vmul.f32 %v4050, %v4067
    %v4084 = vmul.f32 %v4051, %v4067
    %v4085 = vmul.f32 %v4052, %v4067
    %v4086 = vmul.f32 %v4053, %v4067
    %v4087 = vmul.f32 %v4054, %v4067
    %v4088 = vmul.f32 %v4055, %v4067
    %v4089 = vmul.f32 %v4056, %v4067
    %v4090 = vmul.f32 %v4057, %v4067
    %v4091 = vmul.f32 %v4058, %v4067
    %v4092 = vmul.f32 %v4059, %v4067
    %v4093 = vmul.f32 %v4060, %v4067
    %v4094 = vmul.f32 %v4061, %v4067
    %v4095 = vmul.f32 %v4062, %v4067
    %v4096 = vmul.f32 %v4063, %v4067
    %v4097 = vmul.f32 %v4064, %v4067
    %v4098 = vmul.f32 %v4065, %v4067
    %v4099 = vmul.f32 %v4066, %v4067
    %v4100 = vadd.f32 %v3875, %v4068
    %v4101 = vadd.f32 %v3876, %v4069
    %v4102 = vadd.f32 %v3877, %v4070
    %v4103 = vadd.f32 %v3878, %v4071
    %v4104 = vadd.f32 %v3879, %v4072
    %v4105 = vadd.f32 %v3880, %v4073
    %v4106 = vadd.f32 %v3881, %v4074
    %v4107 = vadd.f32 %v3882, %v4075
    %v4108 = vadd.f32 %v3883, %v4076
    %v4109 = vadd.f32 %v3884, %v4077
    %v4110 = vadd.f32 %v3885, %v4078
    %v4111 = vadd.f32 %v3886, %v4079
    %v4112 = vadd.f32 %v3887, %v4080
    %v4113 = vadd.f32 %v3888, %v4081
    %v4114 = vadd.f32 %v3889, %v4082
    %v4115 = vadd.f32 %v3890, %v4083
    %v4116 = vadd.f32 %v3891, %v4084
    %v4117 = vadd.f32 %v3892, %v4085
    %v4118 = vadd.f32 %v3893, %v4086
    %v4119 = vadd.f32 %v3894, %v4087
    %v4120 = vadd.f32 %v3895, %v4088
    %v4121 = vadd.f32 %v3896, %v4089
    %v4122 = vadd.f32 %v3897, %v4090
    %v4123 = vadd.f32 %v3898, %v4091
    %v4124 = vadd.f32 %v3899, %v4092
    %v4125 = vadd.f32 %v3900, %v4093
    %v4126 = vadd.f32 %v3901, %v4094
    %v4127 = vadd.f32 %v3902, %v4095
    %v4128 = vadd.f32 %v3903, %v4096
    %v4129 = vadd.f32 %v3904, %v4097
    %v4130 = vadd.f32 %v3905, %v4098
    %v4131 = vadd.f32 %v3906, %v4099
    %4132 = vset.pattern.permute.xlu0 1
    %4133 = vperm.xlu0 %4132, %v2043
    %v4134 = vpop.permute.xlu0 %4133
    %4136 = vset.pattern.permute.xlu0 1
    %4137 = vperm.xlu0 %4136, %v2044
    %v4138 = vpop.permute.xlu0 %4137
    %4140 = vset.pattern.permute.xlu0 1
    %4141 = vperm.xlu0 %4140, %v2045
    %v4142 = vpop.permute.xlu0 %4141
    %4144 = vset.pattern.permute.xlu0 1
    %4145 = vperm.xlu0 %4144, %v2046
    %v4146 = vpop.permute.xlu0 %4145
    %4148 = vset.pattern.permute.xlu0 1
    %4149 = vperm.xlu0 %4148, %v2047
    %v4150 = vpop.permute.xlu0 %4149
    %4152 = vset.pattern.permute.xlu0 1
    %4153 = vperm.xlu0 %4152, %v2048
    %v4154 = vpop.permute.xlu0 %4153
    %4156 = vset.pattern.permute.xlu0 1
    %4157 = vperm.xlu0 %4156, %v2049
    %v4158 = vpop.permute.xlu0 %4157
    %4160 = vset.pattern.permute.xlu0 1
    %4161 = vperm.xlu0 %4160, %v2050
    %v4162 = vpop.permute.xlu0 %4161
    %4164 = vset.pattern.permute.xlu0 1
    %4165 = vperm.xlu0 %4164, %v2051
    %v4166 = vpop.permute.xlu0 %4165
    %4168 = vset.pattern.permute.xlu0 1
    %4169 = vperm.xlu0 %4168, %v2052
    %v4170 = vpop.permute.xlu0 %4169
    %4172 = vset.pattern.permute.xlu0 1
    %4173 = vperm.xlu0 %4172, %v2053
    %v4174 = vpop.permute.xlu0 %4173
    %4176 = vset.pattern.permute.xlu0 1
    %4177 = vperm.xlu0 %4176, %v2054
    %v4178 = vpop.permute.xlu0 %4177
    %4180 = vset.pattern.permute.xlu0 1
    %4181 = vperm.xlu0 %4180, %v2055
    %v4182 = vpop.permute.xlu0 %4181
    %4184 = vset.pattern.permute.xlu0 1
    %4185 = vperm.xlu0 %4184, %v2056
    %v4186 = vpop.permute.xlu0 %4185
    %4188 = vset.pattern.permute.xlu0 1
    %4189 = vperm.xlu0 %4188, %v2057
    %v4190 = vpop.permute.xlu0 %4189
    %4192 = vset.pattern.permute.xlu0 1
    %4193 = vperm.xlu0 %4192, %v2058
    %v4194 = vpop.permute.xlu0 %4193
    %4196 = vset.pattern.permute.xlu0 1
    %4197 = vperm.xlu0 %4196, %v2059
    %v4198 = vpop.permute.xlu0 %4197
    %4200 = vset.pattern.permute.xlu0 1
    %4201 = vperm.xlu0 %4200, %v2060
    %v4202 = vpop.permute.xlu0 %4201
    %4204 = vset.pattern.permute.xlu0 1
    %4205 = vperm.xlu0 %4204, %v2061
    %v4206 = vpop.permute.xlu0 %4205
    %4208 = vset.pattern.permute.xlu0 1
    %4209 = vperm.xlu0 %4208, %v2062
    %v4210 = vpop.permute.xlu0 %4209
    %4212 = vset.pattern.permute.xlu0 1
    %4213 = vperm.xlu0 %4212, %v2063
    %v4214 = vpop.permute.xlu0 %4213
    %4216 = vset.pattern.permute.xlu0 1
    %4217 = vperm.xlu0 %4216, %v2064
    %v4218 = vpop.permute.xlu0 %4217
    %4220 = vset.pattern.permute.xlu0 1
    %4221 = vperm.xlu0 %4220, %v2065
    %v4222 = vpop.permute.xlu0 %4221
    %4224 = vset.pattern.permute.xlu0 1
    %4225 = vperm.xlu0 %4224, %v2066
    %v4226 = vpop.permute.xlu0 %4225
    %4228 = vset.pattern.permute.xlu0 1
    %4229 = vperm.xlu0 %4228, %v2067
    %v4230 = vpop.permute.xlu0 %4229
    %4232 = vset.pattern.permute.xlu0 1
    %4233 = vperm.xlu0 %4232, %v2068
    %v4234 = vpop.permute.xlu0 %4233
    %4236 = vset.pattern.permute.xlu0 1
    %4237 = vperm.xlu0 %4236, %v2069
    %v4238 = vpop.permute.xlu0 %4237
    %4240 = vset.pattern.permute.xlu0 1
    %4241 = vperm.xlu0 %4240, %v2070
    %v4242 = vpop.permute.xlu0 %4241
    %4244 = vset.pattern.permute.xlu0 1
    %4245 = vperm.xlu0 %4244, %v2071
    %v4246 = vpop.permute.xlu0 %4245
    %4248 = vset.pattern.permute.xlu0 1
    %4249 = vperm.xlu0 %4248, %v2072
    %v4250 = vpop.permute.xlu0 %4249
    %4252 = vset.pattern.permute.xlu0 1
    %4253 = vperm.xlu0 %4252, %v2073
    %v4254 = vpop.permute.xlu0 %4253
    %4256 = vset.pattern.permute.xlu0 1
    %4257 = vperm.xlu0 %4256, %v2074
    %v4258 = vpop.permute.xlu0 %4257
    %v4260 = vmul.f32 %v2618, %v4134
    %v4261 = vmul.f32 %v2617, %v4138
    %v4262 = vmul.f32 %v2616, %v4142
    %v4263 = vmul.f32 %v2615, %v4146
    %v4264 = vmul.f32 %v2614, %v4150
    %v4265 = vmul.f32 %v2613, %v4154
    %v4266 = vmul.f32 %v2612, %v4158
    %v4267 = vmul.f32 %v2611, %v4162
    %v4268 = vmul.f32 %v2610, %v4166
    %v4269 = vmul.f32 %v2609, %v4170
    %v4270 = vmul.f32 %v2608, %v4174
    %v4271 = vmul.f32 %v2607, %v4178
    %v4272 = vmul.f32 %v2606, %v4182
    %v4273 = vmul.f32 %v2605, %v4186
    %v4274 = vmul.f32 %v2604, %v4190
    %v4275 = vmul.f32 %v2603, %v4194
    %v4276 = vmul.f32 %v2602, %v4198
    %v4277 = vmul.f32 %v2601, %v4202
    %v4278 = vmul.f32 %v2600, %v4206
    %v4279 = vmul.f32 %v2599, %v4210
    %v4280 = vmul.f32 %v2598, %v4214
    %v4281 = vmul.f32 %v2597, %v4218
    %v4282 = vmul.f32 %v2596, %v4222
    %v4283 = vmul.f32 %v2595, %v4226
    %v4284 = vmul.f32 %v2594, %v4230
    %v4285 = vmul.f32 %v2593, %v4234
    %v4286 = vmul.f32 %v2592, %v4238
    %v4287 = vmul.f32 %v2591, %v4242
    %v4288 = vmul.f32 %v2590, %v4246
    %v4289 = vmul.f32 %v2621, %v4250
    %v4290 = vmul.f32 %v2620, %v4254
    %v4291 = vmul.f32 %v2619, %v4258
    %v4292 = vperm.slane %v1847, 0
    %v4293 = vmul.f32 %v4260, %v4292
    %v4294 = vmul.f32 %v4261, %v4292
    %v4295 = vmul.f32 %v4262, %v4292
    %v4296 = vmul.f32 %v4263, %v4292
    %v4297 = vmul.f32 %v4264, %v4292
    %v4298 = vmul.f32 %v4265, %v4292
    %v4299 = vmul.f32 %v4266, %v4292
    %v4300 = vmul.f32 %v4267, %v4292
    %v4301 = vmul.f32 %v4268, %v4292
    %v4302 = vmul.f32 %v4269, %v4292
    %v4303 = vmul.f32 %v4270, %v4292
    %v4304 = vmul.f32 %v4271, %v4292
    %v4305 = vmul.f32 %v4272, %v4292
    %v4306 = vmul.f32 %v4273, %v4292
    %v4307 = vmul.f32 %v4274, %v4292
    %v4308 = vmul.f32 %v4275, %v4292
    %v4309 = vmul.f32 %v4276, %v4292
    %v4310 = vmul.f32 %v4277, %v4292
    %v4311 = vmul.f32 %v4278, %v4292
    %v4312 = vmul.f32 %v4279, %v4292
    %v4313 = vmul.f32 %v4280, %v4292
    %v4314 = vmul.f32 %v4281, %v4292
    %v4315 = vmul.f32 %v4282, %v4292
    %v4316 = vmul.f32 %v4283, %v4292
    %v4317 = vmul.f32 %v4284, %v4292
    %v4318 = vmul.f32 %v4285, %v4292
    %v4319 = vmul.f32 %v4286, %v4292
    %v4320 = vmul.f32 %v4287, %v4292
    %v4321 = vmul.f32 %v4288, %v4292
    %v4322 = vmul.f32 %v4289, %v4292
    %v4323 = vmul.f32 %v4290, %v4292
    %v4324 = vmul.f32 %v4291, %v4292
    %v4325 = vadd.f32 %v4100, %v4293
    %v4326 = vadd.f32 %v4101, %v4294
    %v4327 = vadd.f32 %v4102, %v4295
    %v4328 = vadd.f32 %v4103, %v4296
    %v4329 = vadd.f32 %v4104, %v4297
    %v4330 = vadd.f32 %v4105, %v4298
    %v4331 = vadd.f32 %v4106, %v4299
    %v4332 = vadd.f32 %v4107, %v4300
    %v4333 = vadd.f32 %v4108, %v4301
    %v4334 = vadd.f32 %v4109, %v4302
    %v4335 = vadd.f32 %v4110, %v4303
    %v4336 = vadd.f32 %v4111, %v4304
    %v4337 = vadd.f32 %v4112, %v4305
    %v4338 = vadd.f32 %v4113, %v4306
    %v4339 = vadd.f32 %v4114, %v4307
    %v4340 = vadd.f32 %v4115, %v4308
    %v4341 = vadd.f32 %v4116, %v4309
    %v4342 = vadd.f32 %v4117, %v4310
    %v4343 = vadd.f32 %v4118, %v4311
    %v4344 = vadd.f32 %v4119, %v4312
    %v4345 = vadd.f32 %v4120, %v4313
    %v4346 = vadd.f32 %v4121, %v4314
    %v4347 = vadd.f32 %v4122, %v4315
    %v4348 = vadd.f32 %v4123, %v4316
    %v4349 = vadd.f32 %v4124, %v4317
    %v4350 = vadd.f32 %v4125, %v4318
    %v4351 = vadd.f32 %v4126, %v4319
    %v4352 = vadd.f32 %v4127, %v4320
    %v4353 = vadd.f32 %v4128, %v4321
    %v4354 = vadd.f32 %v4129, %v4322
    %v4355 = vadd.f32 %v4130, %v4323
    %v4356 = vadd.f32 %v4131, %v4324
    %v4357 = vld [vmem:[%s7] sm:$0x1]
    %v4359 = vperm.slane %v4357, 0
    %v4361 = vadd.f32 %v4325, %v4359
    %v4362 = vadd.f32 %v4326, %v4359
    %v4363 = vadd.f32 %v4327, %v4359
    %v4364 = vadd.f32 %v4328, %v4359
    %v4365 = vadd.f32 %v4329, %v4359
    %v4366 = vadd.f32 %v4330, %v4359
    %v4367 = vadd.f32 %v4331, %v4359
    %v4368 = vadd.f32 %v4332, %v4359
    %v4369 = vadd.f32 %v4333, %v4359
    %v4370 = vadd.f32 %v4334, %v4359
    %v4371 = vadd.f32 %v4335, %v4359
    %v4372 = vadd.f32 %v4336, %v4359
    %v4373 = vadd.f32 %v4337, %v4359
    %v4374 = vadd.f32 %v4338, %v4359
    %v4375 = vadd.f32 %v4339, %v4359
    %v4376 = vadd.f32 %v4340, %v4359
    %v4377 = vadd.f32 %v4341, %v4359
    %v4378 = vadd.f32 %v4342, %v4359
    %v4379 = vadd.f32 %v4343, %v4359
    %v4380 = vadd.f32 %v4344, %v4359
    %v4381 = vadd.f32 %v4345, %v4359
    %v4382 = vadd.f32 %v4346, %v4359
    %v4383 = vadd.f32 %v4347, %v4359
    %v4384 = vadd.f32 %v4348, %v4359
    %v4385 = vadd.f32 %v4349, %v4359
    %v4386 = vadd.f32 %v4350, %v4359
    %v4387 = vadd.f32 %v4351, %v4359
    %v4388 = vadd.f32 %v4352, %v4359
    %v4389 = vadd.f32 %v4353, %v4359
    %v4390 = vadd.f32 %v4354, %v4359
    %v4391 = vadd.f32 %v4355, %v4359
    %v4392 = vadd.f32 %v4356, %v4359
    %v4393 = vxor.u32 %v4361, 2147483648
    %v4394 = vxor.u32 %v4362, 2147483648
    %v4395 = vxor.u32 %v4363, 2147483648
    %v4396 = vxor.u32 %v4364, 2147483648
    %v4397 = vxor.u32 %v4365, 2147483648
    %v4398 = vxor.u32 %v4366, 2147483648
    %v4399 = vxor.u32 %v4367, 2147483648
    %v4400 = vxor.u32 %v4368, 2147483648
    %v4401 = vxor.u32 %v4369, 2147483648
    %v4402 = vxor.u32 %v4370, 2147483648
    %v4403 = vxor.u32 %v4371, 2147483648
    %v4404 = vxor.u32 %v4372, 2147483648
    %v4405 = vxor.u32 %v4373, 2147483648
    %v4406 = vxor.u32 %v4374, 2147483648
    %v4407 = vxor.u32 %v4375, 2147483648
    %v4408 = vxor.u32 %v4376, 2147483648
    %v4409 = vxor.u32 %v4377, 2147483648
    %v4410 = vxor.u32 %v4378, 2147483648
    %v4411 = vxor.u32 %v4379, 2147483648
    %v4412 = vxor.u32 %v4380, 2147483648
    %v4413 = vxor.u32 %v4381, 2147483648
    %v4414 = vxor.u32 %v4382, 2147483648
    %v4415 = vxor.u32 %v4383, 2147483648
    %v4416 = vxor.u32 %v4384, 2147483648
    %v4417 = vxor.u32 %v4385, 2147483648
    %v4418 = vxor.u32 %v4386, 2147483648
    %v4419 = vxor.u32 %v4387, 2147483648
    %v4420 = vxor.u32 %v4388, 2147483648
    %v4421 = vxor.u32 %v4389, 2147483648
    %v4422 = vxor.u32 %v4390, 2147483648
    %v4423 = vxor.u32 %v4391, 2147483648
    %v4424 = vxor.u32 %v4392, 2147483648
    %v4425 = vmul.f32 %v4393, 1.442695
    %v4426 = vpow.pop %v4425
    %v4427 = vmul.f32 %v4394, 1.442695
    %v4428 = vpow.pop %v4427
    %v4429 = vmul.f32 %v4395, 1.442695
    %v4430 = vpow.pop %v4429
    %v4431 = vmul.f32 %v4396, 1.442695
    %v4432 = vpow.pop %v4431
    %v4433 = vmul.f32 %v4397, 1.442695
    %v4434 = vpow.pop %v4433
    %v4435 = vmul.f32 %v4398, 1.442695
    %v4436 = vpow.pop %v4435
    %v4437 = vmul.f32 %v4399, 1.442695
    %v4438 = vpow.pop %v4437
    %v4439 = vmul.f32 %v4400, 1.442695
    %v4440 = vpow.pop %v4439
    %v4441 = vmul.f32 %v4401, 1.442695
    %v4442 = vpow.pop %v4441
    %v4443 = vmul.f32 %v4402, 1.442695
    %v4444 = vpow.pop %v4443
    %v4445 = vmul.f32 %v4403, 1.442695
    %v4446 = vpow.pop %v4445
    %v4447 = vmul.f32 %v4404, 1.442695
    %v4448 = vpow.pop %v4447
    %v4449 = vmul.f32 %v4405, 1.442695
    %v4450 = vpow.pop %v4449
    %v4451 = vmul.f32 %v4406, 1.442695
    %v4452 = vpow.pop %v4451
    %v4453 = vmul.f32 %v4407, 1.442695
    %v4454 = vpow.pop %v4453
    %v4455 = vmul.f32 %v4408, 1.442695
    %v4456 = vpow.pop %v4455
    %v4457 = vmul.f32 %v4409, 1.442695
    %v4458 = vpow.pop %v4457
    %v4459 = vmul.f32 %v4410, 1.442695
    %v4460 = vpow.pop %v4459
    %v4461 = vmul.f32 %v4411, 1.442695
    %v4462 = vpow.pop %v4461
    %v4463 = vmul.f32 %v4412, 1.442695
    %v4464 = vpow.pop %v4463
    %v4465 = vmul.f32 %v4413, 1.442695
    %v4466 = vpow.pop %v4465
    %v4467 = vmul.f32 %v4414, 1.442695
    %v4468 = vpow.pop %v4467
    %v4469 = vmul.f32 %v4415, 1.442695
    %v4470 = vpow.pop %v4469
    %v4471 = vmul.f32 %v4416, 1.442695
    %v4472 = vpow.pop %v4471
    %v4473 = vmul.f32 %v4417, 1.442695
    %v4474 = vpow.pop %v4473
    %v4475 = vmul.f32 %v4418, 1.442695
    %v4476 = vpow.pop %v4475
    %v4477 = vmul.f32 %v4419, 1.442695
    %v4478 = vpow.pop %v4477
    %v4479 = vmul.f32 %v4420, 1.442695
    %v4480 = vpow.pop %v4479
    %v4481 = vmul.f32 %v4421, 1.442695
    %v4482 = vpow.pop %v4481
    %v4483 = vmul.f32 %v4422, 1.442695
    %v4484 = vpow.pop %v4483
    %v4485 = vmul.f32 %v4423, 1.442695
    %v4486 = vpow.pop %v4485
    %v4487 = vmul.f32 %v4424, 1.442695
    %v4488 = vpow.pop %v4487
    %v4489 = vadd.f32 %v4426, 1.0
    %v4490 = vadd.f32 %v4428, 1.0
    %v4491 = vadd.f32 %v4430, 1.0
    %v4492 = vadd.f32 %v4432, 1.0
    %v4493 = vadd.f32 %v4434, 1.0
    %v4494 = vadd.f32 %v4436, 1.0
    %v4495 = vadd.f32 %v4438, 1.0
    %v4496 = vadd.f32 %v4440, 1.0
    %v4497 = vadd.f32 %v4442, 1.0
    %v4498 = vadd.f32 %v4444, 1.0
    %v4499 = vadd.f32 %v4446, 1.0
    %v4500 = vadd.f32 %v4448, 1.0
    %v4501 = vadd.f32 %v4450, 1.0
    %v4502 = vadd.f32 %v4452, 1.0
    %v4503 = vadd.f32 %v4454, 1.0
    %v4504 = vadd.f32 %v4456, 1.0
    %v4505 = vadd.f32 %v4458, 1.0
    %v4506 = vadd.f32 %v4460, 1.0
    %v4507 = vadd.f32 %v4462, 1.0
    %v4508 = vadd.f32 %v4464, 1.0
    %v4509 = vadd.f32 %v4466, 1.0
    %v4510 = vadd.f32 %v4468, 1.0
    %v4511 = vadd.f32 %v4470, 1.0
    %v4512 = vadd.f32 %v4472, 1.0
    %v4513 = vadd.f32 %v4474, 1.0
    %v4514 = vadd.f32 %v4476, 1.0
    %v4515 = vadd.f32 %v4478, 1.0
    %v4516 = vadd.f32 %v4480, 1.0
    %v4517 = vadd.f32 %v4482, 1.0
    %v4518 = vadd.f32 %v4484, 1.0
    %v4519 = vadd.f32 %v4486, 1.0
    %v4520 = vadd.f32 %v4488, 1.0
    %v4521 = vrcp.pop %v4489
    %v4522 = vmul.f32 %v4489, %v4521
    %v4523 = vsub.f32 1.0, %v4522
    %v4524 = vmul.f32 %v4521, %v4523
    %v4525 = vadd.f32 %v4521, %v4524
    %vm4526 = vweird.f32 %v4489
    %vm4527 = vweird.f32 %v4521
    %vm4528 = vmor %vm4526, %vm4527
    %v4529 = vsel %vm4528, %v4521, %v4525
    %v4530 = vand.u32 2147483647, %v4489
    %vm4531 = vcmp.eq.f32.partialorder %v4530, 8.507059e+37
    %v4532 = vand.u32 %v4489, 2147483648
    %v4533 = vor.u32 1.1754944e-38, %v4532
    %v4534 = vsel %vm4531, %v4533, %v4529
    %v4535 = vmul.f32 1.0, %v4534
    %v4536 = vrcp.pop %v4490
    %v4537 = vmul.f32 %v4490, %v4536
    %v4538 = vsub.f32 1.0, %v4537
    %v4539 = vmul.f32 %v4536, %v4538
    %v4540 = vadd.f32 %v4536, %v4539
    %vm4541 = vweird.f32 %v4490
    %vm4542 = vweird.f32 %v4536
    %vm4543 = vmor %vm4541, %vm4542
    %v4544 = vsel %vm4543, %v4536, %v4540
    %v4545 = vand.u32 2147483647, %v4490
    %vm4546 = vcmp.eq.f32.partialorder %v4545, 8.507059e+37
    %v4547 = vand.u32 %v4490, 2147483648
    %v4548 = vor.u32 1.1754944e-38, %v4547
    %v4549 = vsel %vm4546, %v4548, %v4544
    %v4550 = vmul.f32 1.0, %v4549
    %v4551 = vrcp.pop %v4491
    %v4552 = vmul.f32 %v4491, %v4551
    %v4553 = vsub.f32 1.0, %v4552
    %v4554 = vmul.f32 %v4551, %v4553
    %v4555 = vadd.f32 %v4551, %v4554
    %vm4556 = vweird.f32 %v4491
    %vm4557 = vweird.f32 %v4551
    %vm4558 = vmor %vm4556, %vm4557
    %v4559 = vsel %vm4558, %v4551, %v4555
    %v4560 = vand.u32 2147483647, %v4491
    %vm4561 = vcmp.eq.f32.partialorder %v4560, 8.507059e+37
    %v4562 = vand.u32 %v4491, 2147483648
    %v4563 = vor.u32 1.1754944e-38, %v4562
    %v4564 = vsel %vm4561, %v4563, %v4559
    %v4565 = vmul.f32 1.0, %v4564
    %v4566 = vrcp.pop %v4492
    %v4567 = vmul.f32 %v4492, %v4566
    %v4568 = vsub.f32 1.0, %v4567
    %v4569 = vmul.f32 %v4566, %v4568
    %v4570 = vadd.f32 %v4566, %v4569
    %vm4571 = vweird.f32 %v4492
    %vm4572 = vweird.f32 %v4566
    %vm4573 = vmor %vm4571, %vm4572
    %v4574 = vsel %vm4573, %v4566, %v4570
    %v4575 = vand.u32 2147483647, %v4492
    %vm4576 = vcmp.eq.f32.partialorder %v4575, 8.507059e+37
    %v4577 = vand.u32 %v4492, 2147483648
    %v4578 = vor.u32 1.1754944e-38, %v4577
    %v4579 = vsel %vm4576, %v4578, %v4574
    %v4580 = vmul.f32 1.0, %v4579
    %v4581 = vrcp.pop %v4493
    %v4582 = vmul.f32 %v4493, %v4581
    %v4583 = vsub.f32 1.0, %v4582
    %v4584 = vmul.f32 %v4581, %v4583
    %v4585 = vadd.f32 %v4581, %v4584
    %vm4586 = vweird.f32 %v4493
    %vm4587 = vweird.f32 %v4581
    %vm4588 = vmor %vm4586, %vm4587
    %v4589 = vsel %vm4588, %v4581, %v4585
    %v4590 = vand.u32 2147483647, %v4493
    %vm4591 = vcmp.eq.f32.partialorder %v4590, 8.507059e+37
    %v4592 = vand.u32 %v4493, 2147483648
    %v4593 = vor.u32 1.1754944e-38, %v4592
    %v4594 = vsel %vm4591, %v4593, %v4589
    %v4595 = vmul.f32 1.0, %v4594
    %v4596 = vrcp.pop %v4494
    %v4597 = vmul.f32 %v4494, %v4596
    %v4598 = vsub.f32 1.0, %v4597
    %v4599 = vmul.f32 %v4596, %v4598
    %v4600 = vadd.f32 %v4596, %v4599
    %vm4601 = vweird.f32 %v4494
    %vm4602 = vweird.f32 %v4596
    %vm4603 = vmor %vm4601, %vm4602
    %v4604 = vsel %vm4603, %v4596, %v4600
    %v4605 = vand.u32 2147483647, %v4494
    %vm4606 = vcmp.eq.f32.partialorder %v4605, 8.507059e+37
    %v4607 = vand.u32 %v4494, 2147483648
    %v4608 = vor.u32 1.1754944e-38, %v4607
    %v4609 = vsel %vm4606, %v4608, %v4604
    %v4610 = vmul.f32 1.0, %v4609
    %v4611 = vrcp.pop %v4495
    %v4612 = vmul.f32 %v4495, %v4611
    %v4613 = vsub.f32 1.0, %v4612
    %v4614 = vmul.f32 %v4611, %v4613
    %v4615 = vadd.f32 %v4611, %v4614
    %vm4616 = vweird.f32 %v4495
    %vm4617 = vweird.f32 %v4611
    %vm4618 = vmor %vm4616, %vm4617
    %v4619 = vsel %vm4618, %v4611, %v4615
    %v4620 = vand.u32 2147483647, %v4495
    %vm4621 = vcmp.eq.f32.partialorder %v4620, 8.507059e+37
    %v4622 = vand.u32 %v4495, 2147483648
    %v4623 = vor.u32 1.1754944e-38, %v4622
    %v4624 = vsel %vm4621, %v4623, %v4619
    %v4625 = vmul.f32 1.0, %v4624
    %v4626 = vrcp.pop %v4496
    %v4627 = vmul.f32 %v4496, %v4626
    %v4628 = vsub.f32 1.0, %v4627
    %v4629 = vmul.f32 %v4626, %v4628
    %v4630 = vadd.f32 %v4626, %v4629
    %vm4631 = vweird.f32 %v4496
    %vm4632 = vweird.f32 %v4626
    %vm4633 = vmor %vm4631, %vm4632
    %v4634 = vsel %vm4633, %v4626, %v4630
    %v4635 = vand.u32 2147483647, %v4496
    %vm4636 = vcmp.eq.f32.partialorder %v4635, 8.507059e+37
    %v4637 = vand.u32 %v4496, 2147483648
    %v4638 = vor.u32 1.1754944e-38, %v4637
    %v4639 = vsel %vm4636, %v4638, %v4634
    %v4640 = vmul.f32 1.0, %v4639
    %v4641 = vrcp.pop %v4497
    %v4642 = vmul.f32 %v4497, %v4641
    %v4643 = vsub.f32 1.0, %v4642
    %v4644 = vmul.f32 %v4641, %v4643
    %v4645 = vadd.f32 %v4641, %v4644
    %vm4646 = vweird.f32 %v4497
    %vm4647 = vweird.f32 %v4641
    %vm4648 = vmor %vm4646, %vm4647
    %v4649 = vsel %vm4648, %v4641, %v4645
    %v4650 = vand.u32 2147483647, %v4497
    %vm4651 = vcmp.eq.f32.partialorder %v4650, 8.507059e+37
    %v4652 = vand.u32 %v4497, 2147483648
    %v4653 = vor.u32 1.1754944e-38, %v4652
    %v4654 = vsel %vm4651, %v4653, %v4649
    %v4655 = vmul.f32 1.0, %v4654
    %v4656 = vrcp.pop %v4498
    %v4657 = vmul.f32 %v4498, %v4656
    %v4658 = vsub.f32 1.0, %v4657
    %v4659 = vmul.f32 %v4656, %v4658
    %v4660 = vadd.f32 %v4656, %v4659
    %vm4661 = vweird.f32 %v4498
    %vm4662 = vweird.f32 %v4656
    %vm4663 = vmor %vm4661, %vm4662
    %v4664 = vsel %vm4663, %v4656, %v4660
    %v4665 = vand.u32 2147483647, %v4498
    %vm4666 = vcmp.eq.f32.partialorder %v4665, 8.507059e+37
    %v4667 = vand.u32 %v4498, 2147483648
    %v4668 = vor.u32 1.1754944e-38, %v4667
    %v4669 = vsel %vm4666, %v4668, %v4664
    %v4670 = vmul.f32 1.0, %v4669
    %v4671 = vrcp.pop %v4499
    %v4672 = vmul.f32 %v4499, %v4671
    %v4673 = vsub.f32 1.0, %v4672
    %v4674 = vmul.f32 %v4671, %v4673
    %v4675 = vadd.f32 %v4671, %v4674
    %vm4676 = vweird.f32 %v4499
    %vm4677 = vweird.f32 %v4671
    %vm4678 = vmor %vm4676, %vm4677
    %v4679 = vsel %vm4678, %v4671, %v4675
    %v4680 = vand.u32 2147483647, %v4499
    %vm4681 = vcmp.eq.f32.partialorder %v4680, 8.507059e+37
    %v4682 = vand.u32 %v4499, 2147483648
    %v4683 = vor.u32 1.1754944e-38, %v4682
    %v4684 = vsel %vm4681, %v4683, %v4679
    %v4685 = vmul.f32 1.0, %v4684
    %v4686 = vrcp.pop %v4500
    %v4687 = vmul.f32 %v4500, %v4686
    %v4688 = vsub.f32 1.0, %v4687
    %v4689 = vmul.f32 %v4686, %v4688
    %v4690 = vadd.f32 %v4686, %v4689
    %vm4691 = vweird.f32 %v4500
    %vm4692 = vweird.f32 %v4686
    %vm4693 = vmor %vm4691, %vm4692
    %v4694 = vsel %vm4693, %v4686, %v4690
    %v4695 = vand.u32 2147483647, %v4500
    %vm4696 = vcmp.eq.f32.partialorder %v4695, 8.507059e+37
    %v4697 = vand.u32 %v4500, 2147483648
    %v4698 = vor.u32 1.1754944e-38, %v4697
    %v4699 = vsel %vm4696, %v4698, %v4694
    %v4700 = vmul.f32 1.0, %v4699
    %v4701 = vrcp.pop %v4501
    %v4702 = vmul.f32 %v4501, %v4701
    %v4703 = vsub.f32 1.0, %v4702
    %v4704 = vmul.f32 %v4701, %v4703
    %v4705 = vadd.f32 %v4701, %v4704
    %vm4706 = vweird.f32 %v4501
    %vm4707 = vweird.f32 %v4701
    %vm4708 = vmor %vm4706, %vm4707
    %v4709 = vsel %vm4708, %v4701, %v4705
    %v4710 = vand.u32 2147483647, %v4501
    %vm4711 = vcmp.eq.f32.partialorder %v4710, 8.507059e+37
    %v4712 = vand.u32 %v4501, 2147483648
    %v4713 = vor.u32 1.1754944e-38, %v4712
    %v4714 = vsel %vm4711, %v4713, %v4709
    %v4715 = vmul.f32 1.0, %v4714
    %v4716 = vrcp.pop %v4502
    %v4717 = vmul.f32 %v4502, %v4716
    %v4718 = vsub.f32 1.0, %v4717
    %v4719 = vmul.f32 %v4716, %v4718
    %v4720 = vadd.f32 %v4716, %v4719
    %vm4721 = vweird.f32 %v4502
    %vm4722 = vweird.f32 %v4716
    %vm4723 = vmor %vm4721, %vm4722
    %v4724 = vsel %vm4723, %v4716, %v4720
    %v4725 = vand.u32 2147483647, %v4502
    %vm4726 = vcmp.eq.f32.partialorder %v4725, 8.507059e+37
    %v4727 = vand.u32 %v4502, 2147483648
    %v4728 = vor.u32 1.1754944e-38, %v4727
    %v4729 = vsel %vm4726, %v4728, %v4724
    %v4730 = vmul.f32 1.0, %v4729
    %v4731 = vrcp.pop %v4503
    %v4732 = vmul.f32 %v4503, %v4731
    %v4733 = vsub.f32 1.0, %v4732
    %v4734 = vmul.f32 %v4731, %v4733
    %v4735 = vadd.f32 %v4731, %v4734
    %vm4736 = vweird.f32 %v4503
    %vm4737 = vweird.f32 %v4731
    %vm4738 = vmor %vm4736, %vm4737
    %v4739 = vsel %vm4738, %v4731, %v4735
    %v4740 = vand.u32 2147483647, %v4503
    %vm4741 = vcmp.eq.f32.partialorder %v4740, 8.507059e+37
    %v4742 = vand.u32 %v4503, 2147483648
    %v4743 = vor.u32 1.1754944e-38, %v4742
    %v4744 = vsel %vm4741, %v4743, %v4739
    %v4745 = vmul.f32 1.0, %v4744
    %v4746 = vrcp.pop %v4504
    %v4747 = vmul.f32 %v4504, %v4746
    %v4748 = vsub.f32 1.0, %v4747
    %v4749 = vmul.f32 %v4746, %v4748
    %v4750 = vadd.f32 %v4746, %v4749
    %vm4751 = vweird.f32 %v4504
    %vm4752 = vweird.f32 %v4746
    %vm4753 = vmor %vm4751, %vm4752
    %v4754 = vsel %vm4753, %v4746, %v4750
    %v4755 = vand.u32 2147483647, %v4504
    %vm4756 = vcmp.eq.f32.partialorder %v4755, 8.507059e+37
    %v4757 = vand.u32 %v4504, 2147483648
    %v4758 = vor.u32 1.1754944e-38, %v4757
    %v4759 = vsel %vm4756, %v4758, %v4754
    %v4760 = vmul.f32 1.0, %v4759
    %v4761 = vrcp.pop %v4505
    %v4762 = vmul.f32 %v4505, %v4761
    %v4763 = vsub.f32 1.0, %v4762
    %v4764 = vmul.f32 %v4761, %v4763
    %v4765 = vadd.f32 %v4761, %v4764
    %vm4766 = vweird.f32 %v4505
    %vm4767 = vweird.f32 %v4761
    %vm4768 = vmor %vm4766, %vm4767
    %v4769 = vsel %vm4768, %v4761, %v4765
    %v4770 = vand.u32 2147483647, %v4505
    %vm4771 = vcmp.eq.f32.partialorder %v4770, 8.507059e+37
    %v4772 = vand.u32 %v4505, 2147483648
    %v4773 = vor.u32 1.1754944e-38, %v4772
    %v4774 = vsel %vm4771, %v4773, %v4769
    %v4775 = vmul.f32 1.0, %v4774
    %v4776 = vrcp.pop %v4506
    %v4777 = vmul.f32 %v4506, %v4776
    %v4778 = vsub.f32 1.0, %v4777
    %v4779 = vmul.f32 %v4776, %v4778
    %v4780 = vadd.f32 %v4776, %v4779
    %vm4781 = vweird.f32 %v4506
    %vm4782 = vweird.f32 %v4776
    %vm4783 = vmor %vm4781, %vm4782
    %v4784 = vsel %vm4783, %v4776, %v4780
    %v4785 = vand.u32 2147483647, %v4506
    %vm4786 = vcmp.eq.f32.partialorder %v4785, 8.507059e+37
    %v4787 = vand.u32 %v4506, 2147483648
    %v4788 = vor.u32 1.1754944e-38, %v4787
    %v4789 = vsel %vm4786, %v4788, %v4784
    %v4790 = vmul.f32 1.0, %v4789
    %v4791 = vrcp.pop %v4507
    %v4792 = vmul.f32 %v4507, %v4791
    %v4793 = vsub.f32 1.0, %v4792
    %v4794 = vmul.f32 %v4791, %v4793
    %v4795 = vadd.f32 %v4791, %v4794
    %vm4796 = vweird.f32 %v4507
    %vm4797 = vweird.f32 %v4791
    %vm4798 = vmor %vm4796, %vm4797
    %v4799 = vsel %vm4798, %v4791, %v4795
    %v4800 = vand.u32 2147483647, %v4507
    %vm4801 = vcmp.eq.f32.partialorder %v4800, 8.507059e+37
    %v4802 = vand.u32 %v4507, 2147483648
    %v4803 = vor.u32 1.1754944e-38, %v4802
    %v4804 = vsel %vm4801, %v4803, %v4799
    %v4805 = vmul.f32 1.0, %v4804
    %v4806 = vrcp.pop %v4508
    %v4807 = vmul.f32 %v4508, %v4806
    %v4808 = vsub.f32 1.0, %v4807
    %v4809 = vmul.f32 %v4806, %v4808
    %v4810 = vadd.f32 %v4806, %v4809
    %vm4811 = vweird.f32 %v4508
    %vm4812 = vweird.f32 %v4806
    %vm4813 = vmor %vm4811, %vm4812
    %v4814 = vsel %vm4813, %v4806, %v4810
    %v4815 = vand.u32 2147483647, %v4508
    %vm4816 = vcmp.eq.f32.partialorder %v4815, 8.507059e+37
    %v4817 = vand.u32 %v4508, 2147483648
    %v4818 = vor.u32 1.1754944e-38, %v4817
    %v4819 = vsel %vm4816, %v4818, %v4814
    %v4820 = vmul.f32 1.0, %v4819
    %v4821 = vrcp.pop %v4509
    %v4822 = vmul.f32 %v4509, %v4821
    %v4823 = vsub.f32 1.0, %v4822
    %v4824 = vmul.f32 %v4821, %v4823
    %v4825 = vadd.f32 %v4821, %v4824
    %vm4826 = vweird.f32 %v4509
    %vm4827 = vweird.f32 %v4821
    %vm4828 = vmor %vm4826, %vm4827
    %v4829 = vsel %vm4828, %v4821, %v4825
    %v4830 = vand.u32 2147483647, %v4509
    %vm4831 = vcmp.eq.f32.partialorder %v4830, 8.507059e+37
    %v4832 = vand.u32 %v4509, 2147483648
    %v4833 = vor.u32 1.1754944e-38, %v4832
    %v4834 = vsel %vm4831, %v4833, %v4829
    %v4835 = vmul.f32 1.0, %v4834
    %v4836 = vrcp.pop %v4510
    %v4837 = vmul.f32 %v4510, %v4836
    %v4838 = vsub.f32 1.0, %v4837
    %v4839 = vmul.f32 %v4836, %v4838
    %v4840 = vadd.f32 %v4836, %v4839
    %vm4841 = vweird.f32 %v4510
    %vm4842 = vweird.f32 %v4836
    %vm4843 = vmor %vm4841, %vm4842
    %v4844 = vsel %vm4843, %v4836, %v4840
    %v4845 = vand.u32 2147483647, %v4510
    %vm4846 = vcmp.eq.f32.partialorder %v4845, 8.507059e+37
    %v4847 = vand.u32 %v4510, 2147483648
    %v4848 = vor.u32 1.1754944e-38, %v4847
    %v4849 = vsel %vm4846, %v4848, %v4844
    %v4850 = vmul.f32 1.0, %v4849
    %v4851 = vrcp.pop %v4511
    %v4852 = vmul.f32 %v4511, %v4851
    %v4853 = vsub.f32 1.0, %v4852
    %v4854 = vmul.f32 %v4851, %v4853
    %v4855 = vadd.f32 %v4851, %v4854
    %vm4856 = vweird.f32 %v4511
    %vm4857 = vweird.f32 %v4851
    %vm4858 = vmor %vm4856, %vm4857
    %v4859 = vsel %vm4858, %v4851, %v4855
    %v4860 = vand.u32 2147483647, %v4511
    %vm4861 = vcmp.eq.f32.partialorder %v4860, 8.507059e+37
    %v4862 = vand.u32 %v4511, 2147483648
    %v4863 = vor.u32 1.1754944e-38, %v4862
    %v4864 = vsel %vm4861, %v4863, %v4859
    %v4865 = vmul.f32 1.0, %v4864
    %v4866 = vrcp.pop %v4512
    %v4867 = vmul.f32 %v4512, %v4866
    %v4868 = vsub.f32 1.0, %v4867
    %v4869 = vmul.f32 %v4866, %v4868
    %v4870 = vadd.f32 %v4866, %v4869
    %vm4871 = vweird.f32 %v4512
    %vm4872 = vweird.f32 %v4866
    %vm4873 = vmor %vm4871, %vm4872
    %v4874 = vsel %vm4873, %v4866, %v4870
    %v4875 = vand.u32 2147483647, %v4512
    %vm4876 = vcmp.eq.f32.partialorder %v4875, 8.507059e+37
    %v4877 = vand.u32 %v4512, 2147483648
    %v4878 = vor.u32 1.1754944e-38, %v4877
    %v4879 = vsel %vm4876, %v4878, %v4874
    %v4880 = vmul.f32 1.0, %v4879
    %v4881 = vrcp.pop %v4513
    %v4882 = vmul.f32 %v4513, %v4881
    %v4883 = vsub.f32 1.0, %v4882
    %v4884 = vmul.f32 %v4881, %v4883
    %v4885 = vadd.f32 %v4881, %v4884
    %vm4886 = vweird.f32 %v4513
    %vm4887 = vweird.f32 %v4881
    %vm4888 = vmor %vm4886, %vm4887
    %v4889 = vsel %vm4888, %v4881, %v4885
    %v4890 = vand.u32 2147483647, %v4513
    %vm4891 = vcmp.eq.f32.partialorder %v4890, 8.507059e+37
    %v4892 = vand.u32 %v4513, 2147483648
    %v4893 = vor.u32 1.1754944e-38, %v4892
    %v4894 = vsel %vm4891, %v4893, %v4889
    %v4895 = vmul.f32 1.0, %v4894
    %v4896 = vrcp.pop %v4514
    %v4897 = vmul.f32 %v4514, %v4896
    %v4898 = vsub.f32 1.0, %v4897
    %v4899 = vmul.f32 %v4896, %v4898
    %v4900 = vadd.f32 %v4896, %v4899
    %vm4901 = vweird.f32 %v4514
    %vm4902 = vweird.f32 %v4896
    %vm4903 = vmor %vm4901, %vm4902
    %v4904 = vsel %vm4903, %v4896, %v4900
    %v4905 = vand.u32 2147483647, %v4514
    %vm4906 = vcmp.eq.f32.partialorder %v4905, 8.507059e+37
    %v4907 = vand.u32 %v4514, 2147483648
    %v4908 = vor.u32 1.1754944e-38, %v4907
    %v4909 = vsel %vm4906, %v4908, %v4904
    %v4910 = vmul.f32 1.0, %v4909
    %v4911 = vrcp.pop %v4515
    %v4912 = vmul.f32 %v4515, %v4911
    %v4913 = vsub.f32 1.0, %v4912
    %v4914 = vmul.f32 %v4911, %v4913
    %v4915 = vadd.f32 %v4911, %v4914
    %vm4916 = vweird.f32 %v4515
    %vm4917 = vweird.f32 %v4911
    %vm4918 = vmor %vm4916, %vm4917
    %v4919 = vsel %vm4918, %v4911, %v4915
    %v4920 = vand.u32 2147483647, %v4515
    %vm4921 = vcmp.eq.f32.partialorder %v4920, 8.507059e+37
    %v4922 = vand.u32 %v4515, 2147483648
    %v4923 = vor.u32 1.1754944e-38, %v4922
    %v4924 = vsel %vm4921, %v4923, %v4919
    %v4925 = vmul.f32 1.0, %v4924
    %v4926 = vrcp.pop %v4516
    %v4927 = vmul.f32 %v4516, %v4926
    %v4928 = vsub.f32 1.0, %v4927
    %v4929 = vmul.f32 %v4926, %v4928
    %v4930 = vadd.f32 %v4926, %v4929
    %vm4931 = vweird.f32 %v4516
    %vm4932 = vweird.f32 %v4926
    %vm4933 = vmor %vm4931, %vm4932
    %v4934 = vsel %vm4933, %v4926, %v4930
    %v4935 = vand.u32 2147483647, %v4516
    %vm4936 = vcmp.eq.f32.partialorder %v4935, 8.507059e+37
    %v4937 = vand.u32 %v4516, 2147483648
    %v4938 = vor.u32 1.1754944e-38, %v4937
    %v4939 = vsel %vm4936, %v4938, %v4934
    %v4940 = vmul.f32 1.0, %v4939
    %v4941 = vrcp.pop %v4517
    %v4942 = vmul.f32 %v4517, %v4941
    %v4943 = vsub.f32 1.0, %v4942
    %v4944 = vmul.f32 %v4941, %v4943
    %v4945 = vadd.f32 %v4941, %v4944
    %vm4946 = vweird.f32 %v4517
    %vm4947 = vweird.f32 %v4941
    %vm4948 = vmor %vm4946, %vm4947
    %v4949 = vsel %vm4948, %v4941, %v4945
    %v4950 = vand.u32 2147483647, %v4517
    %vm4951 = vcmp.eq.f32.partialorder %v4950, 8.507059e+37
    %v4952 = vand.u32 %v4517, 2147483648
    %v4953 = vor.u32 1.1754944e-38, %v4952
    %v4954 = vsel %vm4951, %v4953, %v4949
    %v4955 = vmul.f32 1.0, %v4954
    %v4956 = vrcp.pop %v4518
    %v4957 = vmul.f32 %v4518, %v4956
    %v4958 = vsub.f32 1.0, %v4957
    %v4959 = vmul.f32 %v4956, %v4958
    %v4960 = vadd.f32 %v4956, %v4959
    %vm4961 = vweird.f32 %v4518
    %vm4962 = vweird.f32 %v4956
    %vm4963 = vmor %vm4961, %vm4962
    %v4964 = vsel %vm4963, %v4956, %v4960
    %v4965 = vand.u32 2147483647, %v4518
    %vm4966 = vcmp.eq.f32.partialorder %v4965, 8.507059e+37
    %v4967 = vand.u32 %v4518, 2147483648
    %v4968 = vor.u32 1.1754944e-38, %v4967
    %v4969 = vsel %vm4966, %v4968, %v4964
    %v4970 = vmul.f32 1.0, %v4969
    %v4971 = vrcp.pop %v4519
    %v4972 = vmul.f32 %v4519, %v4971
    %v4973 = vsub.f32 1.0, %v4972
    %v4974 = vmul.f32 %v4971, %v4973
    %v4975 = vadd.f32 %v4971, %v4974
    %vm4976 = vweird.f32 %v4519
    %vm4977 = vweird.f32 %v4971
    %vm4978 = vmor %vm4976, %vm4977
    %v4979 = vsel %vm4978, %v4971, %v4975
    %v4980 = vand.u32 2147483647, %v4519
    %vm4981 = vcmp.eq.f32.partialorder %v4980, 8.507059e+37
    %v4982 = vand.u32 %v4519, 2147483648
    %v4983 = vor.u32 1.1754944e-38, %v4982
    %v4984 = vsel %vm4981, %v4983, %v4979
    %v4985 = vmul.f32 1.0, %v4984
    %v4986 = vrcp.pop %v4520
    %v4987 = vmul.f32 %v4520, %v4986
    %v4988 = vsub.f32 1.0, %v4987
    %v4989 = vmul.f32 %v4986, %v4988
    %v4990 = vadd.f32 %v4986, %v4989
    %vm4991 = vweird.f32 %v4520
    %vm4992 = vweird.f32 %v4986
    %vm4993 = vmor %vm4991, %vm4992
    %v4994 = vsel %vm4993, %v4986, %v4990
    %v4995 = vand.u32 2147483647, %v4520
    %vm4996 = vcmp.eq.f32.partialorder %v4995, 8.507059e+37
    %v4997 = vand.u32 %v4520, 2147483648
    %v4998 = vor.u32 1.1754944e-38, %v4997
    %v4999 = vsel %vm4996, %v4998, %v4994
    %v5000 = vmul.f32 1.0, %v4999
    %v5001 = vmul.f32 %v4361, %v4535
    %v5002 = vmul.f32 %v4362, %v4550
    %v5003 = vmul.f32 %v4363, %v4565
    %v5004 = vmul.f32 %v4364, %v4580
    %v5005 = vmul.f32 %v4365, %v4595
    %v5006 = vmul.f32 %v4366, %v4610
    %v5007 = vmul.f32 %v4367, %v4625
    %v5008 = vmul.f32 %v4368, %v4640
    %v5009 = vmul.f32 %v4369, %v4655
    %v5010 = vmul.f32 %v4370, %v4670
    %v5011 = vmul.f32 %v4371, %v4685
    %v5012 = vmul.f32 %v4372, %v4700
    %v5013 = vmul.f32 %v4373, %v4715
    %v5014 = vmul.f32 %v4374, %v4730
    %v5015 = vmul.f32 %v4375, %v4745
    %v5016 = vmul.f32 %v4376, %v4760
    %v5017 = vmul.f32 %v4377, %v4775
    %v5018 = vmul.f32 %v4378, %v4790
    %v5019 = vmul.f32 %v4379, %v4805
    %v5020 = vmul.f32 %v4380, %v4820
    %v5021 = vmul.f32 %v4381, %v4835
    %v5022 = vmul.f32 %v4382, %v4850
    %v5023 = vmul.f32 %v4383, %v4865
    %v5024 = vmul.f32 %v4384, %v4880
    %v5025 = vmul.f32 %v4385, %v4895
    %v5026 = vmul.f32 %v4386, %v4910
    %v5027 = vmul.f32 %v4387, %v4925
    %v5028 = vmul.f32 %v4388, %v4940
    %v5029 = vmul.f32 %v4389, %v4955
    %v5030 = vmul.f32 %v4390, %v4970
    %v5031 = vmul.f32 %v4391, %v4985
    %v5032 = vmul.f32 %v4392, %v5000
    %v5033 = vadd.f32 %v5001, %v5002
    %v5034 = vadd.f32 %v5033, %v5003
    %v5035 = vadd.f32 %v5034, %v5004
    %v5036 = vadd.f32 %v5035, %v5005
    %v5037 = vadd.f32 %v5036, %v5006
    %v5038 = vadd.f32 %v5037, %v5007
    %v5039 = vadd.f32 %v5038, %v5008
    %v5040 = vadd.f32 %v5039, %v5009
    %v5041 = vadd.f32 %v5040, %v5010
    %v5042 = vadd.f32 %v5041, %v5011
    %v5043 = vadd.f32 %v5042, %v5012
    %v5044 = vadd.f32 %v5043, %v5013
    %v5045 = vadd.f32 %v5044, %v5014
    %v5046 = vadd.f32 %v5045, %v5015
    %v5047 = vadd.f32 %v5046, %v5016
    %v5048 = vadd.f32 %v5047, %v5017
    %v5049 = vadd.f32 %v5048, %v5018
    %v5050 = vadd.f32 %v5049, %v5019
    %v5051 = vadd.f32 %v5050, %v5020
    %v5052 = vadd.f32 %v5051, %v5021
    %v5053 = vadd.f32 %v5052, %v5022
    %v5054 = vadd.f32 %v5053, %v5023
    %v5055 = vadd.f32 %v5054, %v5024
    %v5056 = vadd.f32 %v5055, %v5025
    %v5057 = vadd.f32 %v5056, %v5026
    %v5058 = vadd.f32 %v5057, %v5027
    %v5059 = vadd.f32 %v5058, %v5028
    %v5060 = vadd.f32 %v5059, %v5029
    %v5061 = vadd.f32 %v5060, %v5030
    %v5062 = vadd.f32 %v5061, %v5031
    %v5063 = vadd.f32 %v5062, %v5032
    %v5064 = vrot.slane %v5063, 4
    %v5065 = vadd.f32 %v5063, %v5064
    %v5066 = vrot.slane %v5065, 2
    %v5067 = vadd.f32 %v5065, %v5066
    %v5068 = vrot.slane %v5067, 1
    %v5069 = vadd.f32 %v5067, %v5068
    %v5070 = vrcp.pop 256.0
    %v5071 = vmul.f32 256.0, %v5070
    %v5072 = vsub.f32 1.0, %v5071
    %v5073 = vmul.f32 %v5070, %v5072
    %v5074 = vadd.f32 %v5070, %v5073
    %vm5075 = vweird.f32 %v5070
    %v5076 = vsel %vm5075, %v5070, %v5074
    %v5077 = vmul.f32 %v5069, %v5076
    %v5078 = vld [vmem:[%s8] sm:$0xff]
    %v5079 = vmul.f32 %v5078, %v5077
    %5080 = vadd.xlane.f32.xlu0 %v5079
    %v5081 = vpop.xlane.xlu0 %5080
    %v5082 = vld [vmem:[%s9] sm:$0xff]
    %v5083 = vadd.f32 %v5081, %v5082
    %v5084 = vxor.u32 %v5083, 2147483648
    %v5085 = vmul.f32 %v5084, 1.442695
    %v5086 = vpow.pop %v5085
    %v5087 = vadd.f32 %v5086, 1.0
    %v5088 = vrcp.pop %v5087
    %v5089 = vmul.f32 %v5087, %v5088
    %v5090 = vsub.f32 1.0, %v5089
    %v5091 = vmul.f32 %v5088, %v5090
    %v5092 = vadd.f32 %v5088, %v5091
    %vm5093 = vweird.f32 %v5087
    %vm5094 = vweird.f32 %v5088
    %vm5095 = vmor %vm5093, %vm5094
    %v5096 = vsel %vm5095, %v5088, %v5092
    %v5097 = vand.u32 2147483647, %v5087
    %vm5098 = vcmp.eq.f32.partialorder %v5097, 8.507059e+37
    %v5099 = vand.u32 %v5087, 2147483648
    %v5100 = vor.u32 1.1754944e-38, %v5099
    %v5101 = vsel %vm5098, %v5100, %v5096
    %v5102 = vmul.f32 1.0, %v5101
    %v5103 = vmul.f32 %v5083, %v5102
    %v5104 = vld [vmem:[%s10] sm:$0xff]
    %5106 = vset.pattern.permute.xlu0 0
    %5107 = vperm.xlu0 %5106, %v5103
    %v5108 = vpop.permute.xlu0 %5107
    %v5110 = vmul.f32 %v5104, %v5108
    %v5111 = vrot.slane %v5110, 4
    %v5112 = vadd.f32 %v5110, %v5111
    %v5113 = vrot.slane %v5112, 2
    %v5114 = vadd.f32 %v5112, %v5113
    %v5115 = vrot.slane %v5114, 1
    %v5116 = vadd.f32 %v5114, %v5115
    %v5117 = vld [vmem:[%s11] sm:$0x1]
    %v5118 = vadd.f32 %v5116, %v5117
    %v5119 = vxor.u32 %v5118, 2147483648
    %v5120 = vmul.f32 %v5119, 1.442695
    %v5121 = vpow.pop %v5120
    %v5122 = vadd.f32 %v5121, 1.0
    %v5123 = vrcp.pop %v5122
    %v5124 = vmul.f32 %v5122, %v5123
    %v5125 = vsub.f32 1.0, %v5124
    %v5126 = vmul.f32 %v5123, %v5125
    %v5127 = vadd.f32 %v5123, %v5126
    %vm5128 = vweird.f32 %v5122
    %vm5129 = vweird.f32 %v5123
    %vm5130 = vmor %vm5128, %vm5129
    %v5131 = vsel %vm5130, %v5123, %v5127
    %v5132 = vand.u32 2147483647, %v5122
    %vm5133 = vcmp.eq.f32.partialorder %v5132, 8.507059e+37
    %v5134 = vand.u32 %v5122, 2147483648
    %v5135 = vor.u32 1.1754944e-38, %v5134
    %v5136 = vsel %vm5133, %v5135, %v5131
    %v5137 = vmul.f32 1.0, %v5136
    %v5138 = vperm.slane %v5137, 0
    %v5139 = vmul.f32 %v5001, %v5138
    %v5140 = vmul.f32 %v5002, %v5138
    %v5141 = vmul.f32 %v5003, %v5138
    %v5142 = vmul.f32 %v5004, %v5138
    %v5143 = vmul.f32 %v5005, %v5138
    %v5144 = vmul.f32 %v5006, %v5138
    %v5145 = vmul.f32 %v5007, %v5138
    %v5146 = vmul.f32 %v5008, %v5138
    %v5147 = vmul.f32 %v5009, %v5138
    %v5148 = vmul.f32 %v5010, %v5138
    %v5149 = vmul.f32 %v5011, %v5138
    %v5150 = vmul.f32 %v5012, %v5138
    %v5151 = vmul.f32 %v5013, %v5138
    %v5152 = vmul.f32 %v5014, %v5138
    %v5153 = vmul.f32 %v5015, %v5138
    %v5154 = vmul.f32 %v5016, %v5138
    %v5155 = vmul.f32 %v5017, %v5138
    %v5156 = vmul.f32 %v5018, %v5138
    %v5157 = vmul.f32 %v5019, %v5138
    %v5158 = vmul.f32 %v5020, %v5138
    %v5159 = vmul.f32 %v5021, %v5138
    %v5160 = vmul.f32 %v5022, %v5138
    %v5161 = vmul.f32 %v5023, %v5138
    %v5162 = vmul.f32 %v5024, %v5138
    %v5163 = vmul.f32 %v5025, %v5138
    %v5164 = vmul.f32 %v5026, %v5138
    %v5165 = vmul.f32 %v5027, %v5138
    %v5166 = vmul.f32 %v5028, %v5138
    %v5167 = vmul.f32 %v5029, %v5138
    %v5168 = vmul.f32 %v5030, %v5138
    %v5169 = vmul.f32 %v5031, %v5138
    %v5170 = vmul.f32 %v5032, %v5138
    %v5171 = vpack.c.bf16 %v5140, %v5139
    %v5172 = vpack.c.bf16 %v5142, %v5141
    %v5173 = vpack.c.bf16 %v5144, %v5143
    %v5174 = vpack.c.bf16 %v5146, %v5145
    %v5175 = vpack.c.bf16 %v5148, %v5147
    %v5176 = vpack.c.bf16 %v5150, %v5149
    %v5177 = vpack.c.bf16 %v5152, %v5151
    %v5178 = vpack.c.bf16 %v5154, %v5153
    %v5179 = vpack.c.bf16 %v5156, %v5155
    %v5180 = vpack.c.bf16 %v5158, %v5157
    %v5181 = vpack.c.bf16 %v5160, %v5159
    %v5182 = vpack.c.bf16 %v5162, %v5161
    %v5183 = vpack.c.bf16 %v5164, %v5163
    %v5184 = vpack.c.bf16 %v5166, %v5165
    %v5185 = vpack.c.bf16 %v5168, %v5167
    %v5186 = vpack.c.bf16 %v5170, %v5169
    %v5187 = vld [vmem:[%s12] sm:$0xff]
    %v5188 = vld [vmem:[%s12 + $0x8] sm:$0xff]
    %v5189 = vld [vmem:[%s12 + $0x10] sm:$0xff]
    %v5190 = vld [vmem:[%s12 + $0x18] sm:$0xff]
    %v5191 = vld [vmem:[%s12 + $0x20] sm:$0xff]
    %v5192 = vld [vmem:[%s12 + $0x28] sm:$0xff]
    %v5193 = vld [vmem:[%s12 + $0x30] sm:$0xff]
    %v5194 = vld [vmem:[%s12 + $0x38] sm:$0xff]
    %v5195 = vld [vmem:[%s12 + $0x40] sm:$0xff]
    %v5196 = vld [vmem:[%s12 + $0x48] sm:$0xff]
    %v5197 = vld [vmem:[%s12 + $0x50] sm:$0xff]
    %v5198 = vld [vmem:[%s12 + $0x58] sm:$0xff]
    %v5199 = vld [vmem:[%s12 + $0x60] sm:$0xff]
    %v5200 = vld [vmem:[%s12 + $0x68] sm:$0xff]
    %v5201 = vld [vmem:[%s12 + $0x70] sm:$0xff]
    %v5202 = vld [vmem:[%s12 + $0x78] sm:$0xff]
    %v5203 = vpack.c.bf16 %v5188, %v5187
    %v5204 = vpack.c.bf16 %v5190, %v5189
    %v5205 = vpack.c.bf16 %v5192, %v5191
    %v5206 = vpack.c.bf16 %v5194, %v5193
    %v5207 = vpack.c.bf16 %v5196, %v5195
    %v5208 = vpack.c.bf16 %v5198, %v5197
    %v5209 = vpack.c.bf16 %v5200, %v5199
    %v5210 = vpack.c.bf16 %v5202, %v5201
    %v5211 = vld [vmem:[%s13] sm:$0x1]
    %v5213 = vperm.slane %v5211, 0
    %5215 = vmatpush.bf16.msra.mxu0 %v5210
    %5216 = vmatpush.bf16.msra.mxu0 %v5209
    %5217 = vmatpush.bf16.msra.mxu0 %v5208
    %5218 = vmatpush.bf16.msra.mxu0 %v5207
    %5219 = vmatpush.bf16.msra.mxu0 %v5206
    %5220 = vmatpush.bf16.msra.mxu0 %v5205
    %5221 = vmatpush.bf16.msra.mxu0 %v5204
    %5222 = vmatpush.bf16.msra.mxu0 %v5203
    %5223 = vmatmul.bf16.gmra.mxu0 %v5171
    %v5224 = vpop.f32.mrf.mxu0
    %v5225 = vadd.f32 %v5213, %v5224
    %v5226 = vpop.f32.mrf.mxu0
    %v5227 = vadd.f32 %v5213, %v5226
    %5228 = vmatmul.bf16.gmra.mxu0 %v5172
    %v5229 = vpop.f32.mrf.mxu0
    %v5230 = vadd.f32 %v5213, %v5229
    %v5231 = vpop.f32.mrf.mxu0
    %v5232 = vadd.f32 %v5213, %v5231
    %5233 = vmatmul.bf16.gmra.mxu0 %v5173
    %v5234 = vpop.f32.mrf.mxu0
    %v5235 = vadd.f32 %v5213, %v5234
    %v5236 = vpop.f32.mrf.mxu0
    %v5237 = vadd.f32 %v5213, %v5236
    %5238 = vmatmul.bf16.gmra.mxu0 %v5174
    %v5239 = vpop.f32.mrf.mxu0
    %v5240 = vadd.f32 %v5213, %v5239
    %v5241 = vpop.f32.mrf.mxu0
    %v5242 = vadd.f32 %v5213, %v5241
    %5243 = vmatmul.bf16.gmra.mxu0 %v5175
    %v5244 = vpop.f32.mrf.mxu0
    %v5245 = vadd.f32 %v5213, %v5244
    %v5246 = vpop.f32.mrf.mxu0
    %v5247 = vadd.f32 %v5213, %v5246
    %5248 = vmatmul.bf16.gmra.mxu0 %v5176
    %v5249 = vpop.f32.mrf.mxu0
    %v5250 = vadd.f32 %v5213, %v5249
    %v5251 = vpop.f32.mrf.mxu0
    %v5252 = vadd.f32 %v5213, %v5251
    %5253 = vmatmul.bf16.gmra.mxu0 %v5177
    %v5254 = vpop.f32.mrf.mxu0
    %v5255 = vadd.f32 %v5213, %v5254
    %v5256 = vpop.f32.mrf.mxu0
    %v5257 = vadd.f32 %v5213, %v5256
    %5258 = vmatmul.bf16.gmra.mxu0 %v5178
    %v5259 = vpop.f32.mrf.mxu0
    %v5260 = vadd.f32 %v5213, %v5259
    %v5261 = vpop.f32.mrf.mxu0
    %v5262 = vadd.f32 %v5213, %v5261
    %5263 = vmatmul.bf16.gmra.mxu0 %v5179
    %v5264 = vpop.f32.mrf.mxu0
    %v5265 = vadd.f32 %v5213, %v5264
    %v5266 = vpop.f32.mrf.mxu0
    %v5267 = vadd.f32 %v5213, %v5266
    %5268 = vmatmul.bf16.gmra.mxu0 %v5180
    %v5269 = vpop.f32.mrf.mxu0
    %v5270 = vadd.f32 %v5213, %v5269
    %v5271 = vpop.f32.mrf.mxu0
    %v5272 = vadd.f32 %v5213, %v5271
    %5273 = vmatmul.bf16.gmra.mxu0 %v5181
    %v5274 = vpop.f32.mrf.mxu0
    %v5275 = vadd.f32 %v5213, %v5274
    %v5276 = vpop.f32.mrf.mxu0
    %v5277 = vadd.f32 %v5213, %v5276
    %5278 = vmatmul.bf16.gmra.mxu0 %v5182
    %v5279 = vpop.f32.mrf.mxu0
    %v5280 = vadd.f32 %v5213, %v5279
    %v5281 = vpop.f32.mrf.mxu0
    %v5282 = vadd.f32 %v5213, %v5281
    %5283 = vmatmul.bf16.gmra.mxu0 %v5183
    %v5284 = vpop.f32.mrf.mxu0
    %v5285 = vadd.f32 %v5213, %v5284
    %v5286 = vpop.f32.mrf.mxu0
    %v5287 = vadd.f32 %v5213, %v5286
    %5288 = vmatmul.bf16.gmra.mxu0 %v5184
    %v5289 = vpop.f32.mrf.mxu0
    %v5290 = vadd.f32 %v5213, %v5289
    %v5291 = vpop.f32.mrf.mxu0
    %v5292 = vadd.f32 %v5213, %v5291
    %5293 = vmatmul.bf16.gmra.mxu0 %v5185
    %v5294 = vpop.f32.mrf.mxu0
    %v5295 = vadd.f32 %v5213, %v5294
    %v5296 = vpop.f32.mrf.mxu0
    %v5297 = vadd.f32 %v5213, %v5296
    %5298 = vmatmul.bf16.gmra.mxu0 %v5186
    %v5299 = vpop.f32.mrf.mxu0
    %v5300 = vadd.f32 %v5213, %v5299
    %v5301 = vpop.f32.mrf.mxu0
    %v5302 = vadd.f32 %v5213, %v5301
    %5303 = vdwg.mxu0
    %v5304 = vld [vmem:[#allocation2] sm:$0xf]
    %v5305 = vld [vmem:[#allocation2 + $0x4] sm:$0xf]
    %v5306 = vld [vmem:[#allocation2 + $0x8] sm:$0xf]
    %v5307 = vld [vmem:[#allocation2 + $0xc] sm:$0xf]
    %v5308 = vld [vmem:[#allocation2 + $0x10] sm:$0xf]
    %v5309 = vld [vmem:[#allocation2 + $0x14] sm:$0xf]
    %v5310 = vld [vmem:[#allocation2 + $0x18] sm:$0xf]
    %v5311 = vld [vmem:[#allocation2 + $0x1c] sm:$0xf]
    %v5312 = vld [vmem:[#allocation2 + $0x20] sm:$0xf]
    %v5313 = vld [vmem:[#allocation2 + $0x24] sm:$0xf]
    %v5314 = vld [vmem:[#allocation2 + $0x28] sm:$0xf]
    %v5315 = vld [vmem:[#allocation2 + $0x2c] sm:$0xf]
    %v5316 = vld [vmem:[#allocation2 + $0x30] sm:$0xf]
    %v5317 = vld [vmem:[#allocation2 + $0x34] sm:$0xf]
    %v5318 = vld [vmem:[#allocation2 + $0x38] sm:$0xf]
    %v5319 = vld [vmem:[#allocation2 + $0x3c] sm:$0xf]
    %v5320 = vld [vmem:[#allocation2 + $0x40] sm:$0xf]
    %v5321 = vld [vmem:[#allocation2 + $0x44] sm:$0xf]
    %v5322 = vld [vmem:[#allocation2 + $0x48] sm:$0xf]
    %v5323 = vld [vmem:[#allocation2 + $0x4c] sm:$0xf]
    %v5324 = vld [vmem:[#allocation2 + $0x50] sm:$0xf]
    %v5325 = vld [vmem:[#allocation2 + $0x54] sm:$0xf]
    %v5326 = vld [vmem:[#allocation2 + $0x58] sm:$0xf]
    %v5327 = vld [vmem:[#allocation2 + $0x5c] sm:$0xf]
    %v5328 = vld [vmem:[#allocation2 + $0x60] sm:$0xf]
    %v5329 = vld [vmem:[#allocation2 + $0x64] sm:$0xf]
    %v5330 = vld [vmem:[#allocation2 + $0x68] sm:$0xf]
    %v5331 = vld [vmem:[#allocation2 + $0x6c] sm:$0xf]
    %v5332 = vld [vmem:[#allocation2 + $0x70] sm:$0xf]
    %v5333 = vld [vmem:[#allocation2 + $0x74] sm:$0xf]
    %v5334 = vld [vmem:[#allocation2 + $0x78] sm:$0xf]
    %v5335 = vld [vmem:[#allocation2 + $0x7c] sm:$0xf]
    %v5336 = vunpack.c.l.bf16 %v5304
    %v5337 = vunpack.c.l.bf16 %v5305
    %v5338 = vunpack.c.l.bf16 %v5306
    %v5339 = vunpack.c.l.bf16 %v5307
    %v5340 = vunpack.c.l.bf16 %v5308
    %v5341 = vunpack.c.l.bf16 %v5309
    %v5342 = vunpack.c.l.bf16 %v5310
    %v5343 = vunpack.c.l.bf16 %v5311
    %v5344 = vunpack.c.l.bf16 %v5312
    %v5345 = vunpack.c.l.bf16 %v5313
    %v5346 = vunpack.c.l.bf16 %v5314
    %v5347 = vunpack.c.l.bf16 %v5315
    %v5348 = vunpack.c.l.bf16 %v5316
    %v5349 = vunpack.c.l.bf16 %v5317
    %v5350 = vunpack.c.l.bf16 %v5318
    %v5351 = vunpack.c.l.bf16 %v5319
    %v5352 = vunpack.c.l.bf16 %v5320
    %v5353 = vunpack.c.l.bf16 %v5321
    %v5354 = vunpack.c.l.bf16 %v5322
    %v5355 = vunpack.c.l.bf16 %v5323
    %v5356 = vunpack.c.l.bf16 %v5324
    %v5357 = vunpack.c.l.bf16 %v5325
    %v5358 = vunpack.c.l.bf16 %v5326
    %v5359 = vunpack.c.l.bf16 %v5327
    %v5360 = vunpack.c.l.bf16 %v5328
    %v5361 = vunpack.c.l.bf16 %v5329
    %v5362 = vunpack.c.l.bf16 %v5330
    %v5363 = vunpack.c.l.bf16 %v5331
    %v5364 = vunpack.c.l.bf16 %v5332
    %v5365 = vunpack.c.l.bf16 %v5333
    %v5366 = vunpack.c.l.bf16 %v5334
    %v5367 = vunpack.c.l.bf16 %v5335
    %v5368 = vadd.f32 %v5225, %v5336
    %v5369 = vadd.f32 %v5227, %v5337
    %v5370 = vadd.f32 %v5230, %v5338
    %v5371 = vadd.f32 %v5232, %v5339
    %v5372 = vadd.f32 %v5235, %v5340
    %v5373 = vadd.f32 %v5237, %v5341
    %v5374 = vadd.f32 %v5240, %v5342
    %v5375 = vadd.f32 %v5242, %v5343
    %v5376 = vadd.f32 %v5245, %v5344
    %v5377 = vadd.f32 %v5247, %v5345
    %v5378 = vadd.f32 %v5250, %v5346
    %v5379 = vadd.f32 %v5252, %v5347
    %v5380 = vadd.f32 %v5255, %v5348
    %v5381 = vadd.f32 %v5257, %v5349
    %v5382 = vadd.f32 %v5260, %v5350
    %v5383 = vadd.f32 %v5262, %v5351
    %v5384 = vadd.f32 %v5265, %v5352
    %v5385 = vadd.f32 %v5267, %v5353
    %v5386 = vadd.f32 %v5270, %v5354
    %v5387 = vadd.f32 %v5272, %v5355
    %v5388 = vadd.f32 %v5275, %v5356
    %v5389 = vadd.f32 %v5277, %v5357
    %v5390 = vadd.f32 %v5280, %v5358
    %v5391 = vadd.f32 %v5282, %v5359
    %v5392 = vadd.f32 %v5285, %v5360
    %v5393 = vadd.f32 %v5287, %v5361
    %v5394 = vadd.f32 %v5290, %v5362
    %v5395 = vadd.f32 %v5292, %v5363
    %v5396 = vadd.f32 %v5295, %v5364
    %v5397 = vadd.f32 %v5297, %v5365
    %v5398 = vadd.f32 %v5300, %v5366
    %v5399 = vadd.f32 %v5302, %v5367
    %v5400 = vpack.c.bf16 %v5369, %v5368
    %v5401 = vpack.c.bf16 %v5371, %v5370
    %v5402 = vpack.c.bf16 %v5373, %v5372
    %v5403 = vpack.c.bf16 %v5375, %v5374
    %v5404 = vpack.c.bf16 %v5377, %v5376
    %v5405 = vpack.c.bf16 %v5379, %v5378
    %v5406 = vpack.c.bf16 %v5381, %v5380
    %v5407 = vpack.c.bf16 %v5383, %v5382
    %v5408 = vpack.c.bf16 %v5385, %v5384
    %v5409 = vpack.c.bf16 %v5387, %v5386
    %v5410 = vpack.c.bf16 %v5389, %v5388
    %v5411 = vpack.c.bf16 %v5391, %v5390
    %v5412 = vpack.c.bf16 %v5393, %v5392
    %v5413 = vpack.c.bf16 %v5395, %v5394
    %v5414 = vpack.c.bf16 %v5397, %v5396
    %v5415 = vpack.c.bf16 %v5399, %v5398
    %v5416 = vld [vmem:[%s14] sm:$0xff]
    %v5417 = vld [vmem:[%s14 + $0x8] sm:$0xff]
    %v5418 = vld [vmem:[%s14 + $0x10] sm:$0xff]
    %v5419 = vld [vmem:[%s14 + $0x18] sm:$0xff]
    %v5420 = vld [vmem:[%s14 + $0x20] sm:$0xff]
    %v5421 = vld [vmem:[%s14 + $0x28] sm:$0xff]
    %v5422 = vld [vmem:[%s14 + $0x30] sm:$0xff]
    %v5423 = vld [vmem:[%s14 + $0x38] sm:$0xff]
    %v5424 = vld [vmem:[%s14 + $0x40] sm:$0xff]
    %v5425 = vld [vmem:[%s14 + $0x48] sm:$0xff]
    %v5426 = vld [vmem:[%s14 + $0x50] sm:$0xff]
    %v5427 = vld [vmem:[%s14 + $0x58] sm:$0xff]
    %v5428 = vld [vmem:[%s14 + $0x60] sm:$0xff]
    %v5429 = vld [vmem:[%s14 + $0x68] sm:$0xff]
    %v5430 = vld [vmem:[%s14 + $0x70] sm:$0xff]
    %v5431 = vld [vmem:[%s14 + $0x78] sm:$0xff]
    %v5432 = vpack.c.bf16 %v5417, %v5416
    %v5433 = vpack.c.bf16 %v5419, %v5418
    %v5434 = vpack.c.bf16 %v5421, %v5420
    %v5435 = vpack.c.bf16 %v5423, %v5422
    %v5436 = vpack.c.bf16 %v5425, %v5424
    %v5437 = vpack.c.bf16 %v5427, %v5426
    %v5438 = vpack.c.bf16 %v5429, %v5428
    %v5439 = vpack.c.bf16 %v5431, %v5430
    %v5440 = vld [vmem:[%s15] sm:$0x1]
    %v5442 = vperm.slane %v5440, 0
    %5444 = vmatpush.bf16.msra.mxu0 %v5439
    %5445 = vmatpush.bf16.msra.mxu0 %v5438
    %5446 = vmatpush.bf16.msra.mxu0 %v5437
    %5447 = vmatpush.bf16.msra.mxu0 %v5436
    %5448 = vmatpush.bf16.msra.mxu0 %v5435
    %5449 = vmatpush.bf16.msra.mxu0 %v5434
    %5450 = vmatpush.bf16.msra.mxu0 %v5433
    %5451 = vmatpush.bf16.msra.mxu0 %v5432
    %5452 = vmatmul.bf16.gmra.mxu0 %v5400
    %v5453 = vpop.f32.mrf.mxu0
    %v5454 = vadd.f32 %v5442, %v5453
    %v5455 = vpop.f32.mrf.mxu0
    %v5456 = vadd.f32 %v5442, %v5455
    %5457 = vmatmul.bf16.gmra.mxu0 %v5401
    %v5458 = vpop.f32.mrf.mxu0
    %v5459 = vadd.f32 %v5442, %v5458
    %v5460 = vpop.f32.mrf.mxu0
    %v5461 = vadd.f32 %v5442, %v5460
    %5462 = vmatmul.bf16.gmra.mxu0 %v5402
    %v5463 = vpop.f32.mrf.mxu0
    %v5464 = vadd.f32 %v5442, %v5463
    %v5465 = vpop.f32.mrf.mxu0
    %v5466 = vadd.f32 %v5442, %v5465
    %5467 = vmatmul.bf16.gmra.mxu0 %v5403
    %v5468 = vpop.f32.mrf.mxu0
    %v5469 = vadd.f32 %v5442, %v5468
    %v5470 = vpop.f32.mrf.mxu0
    %v5471 = vadd.f32 %v5442, %v5470
    %5472 = vmatmul.bf16.gmra.mxu0 %v5404
    %v5473 = vpop.f32.mrf.mxu0
    %v5474 = vadd.f32 %v5442, %v5473
    %v5475 = vpop.f32.mrf.mxu0
    %v5476 = vadd.f32 %v5442, %v5475
    %5477 = vmatmul.bf16.gmra.mxu0 %v5405
    %v5478 = vpop.f32.mrf.mxu0
    %v5479 = vadd.f32 %v5442, %v5478
    %v5480 = vpop.f32.mrf.mxu0
    %v5481 = vadd.f32 %v5442, %v5480
    %5482 = vmatmul.bf16.gmra.mxu0 %v5406
    %v5483 = vpop.f32.mrf.mxu0
    %v5484 = vadd.f32 %v5442, %v5483
    %v5485 = vpop.f32.mrf.mxu0
    %v5486 = vadd.f32 %v5442, %v5485
    %5487 = vmatmul.bf16.gmra.mxu0 %v5407
    %v5488 = vpop.f32.mrf.mxu0
    %v5489 = vadd.f32 %v5442, %v5488
    %v5490 = vpop.f32.mrf.mxu0
    %v5491 = vadd.f32 %v5442, %v5490
    %5492 = vmatmul.bf16.gmra.mxu0 %v5408
    %v5493 = vpop.f32.mrf.mxu0
    %v5494 = vadd.f32 %v5442, %v5493
    %v5495 = vpop.f32.mrf.mxu0
    %v5496 = vadd.f32 %v5442, %v5495
    %5497 = vmatmul.bf16.gmra.mxu0 %v5409
    %v5498 = vpop.f32.mrf.mxu0
    %v5499 = vadd.f32 %v5442, %v5498
    %v5500 = vpop.f32.mrf.mxu0
    %v5501 = vadd.f32 %v5442, %v5500
    %5502 = vmatmul.bf16.gmra.mxu0 %v5410
    %v5503 = vpop.f32.mrf.mxu0
    %v5504 = vadd.f32 %v5442, %v5503
    %v5505 = vpop.f32.mrf.mxu0
    %v5506 = vadd.f32 %v5442, %v5505
    %5507 = vmatmul.bf16.gmra.mxu0 %v5411
    %v5508 = vpop.f32.mrf.mxu0
    %v5509 = vadd.f32 %v5442, %v5508
    %v5510 = vpop.f32.mrf.mxu0
    %v5511 = vadd.f32 %v5442, %v5510
    %5512 = vmatmul.bf16.gmra.mxu0 %v5412
    %v5513 = vpop.f32.mrf.mxu0
    %v5514 = vadd.f32 %v5442, %v5513
    %v5515 = vpop.f32.mrf.mxu0
    %v5516 = vadd.f32 %v5442, %v5515
    %5517 = vmatmul.bf16.gmra.mxu0 %v5413
    %v5518 = vpop.f32.mrf.mxu0
    %v5519 = vadd.f32 %v5442, %v5518
    %v5520 = vpop.f32.mrf.mxu0
    %v5521 = vadd.f32 %v5442, %v5520
    %5522 = vmatmul.bf16.gmra.mxu0 %v5414
    %v5523 = vpop.f32.mrf.mxu0
    %v5524 = vadd.f32 %v5442, %v5523
    %v5525 = vpop.f32.mrf.mxu0
    %v5526 = vadd.f32 %v5442, %v5525
    %5527 = vmatmul.bf16.gmra.mxu0 %v5415
    %v5528 = vpop.f32.mrf.mxu0
    %v5529 = vadd.f32 %v5442, %v5528
    %v5530 = vpop.f32.mrf.mxu0
    %v5531 = vadd.f32 %v5442, %v5530
    %5532 = vdwg.mxu0
    %v5533 = vxor.u32 %v5454, 2147483648
    %v5534 = vxor.u32 %v5456, 2147483648
    %v5535 = vxor.u32 %v5459, 2147483648
    %v5536 = vxor.u32 %v5461, 2147483648
    %v5537 = vxor.u32 %v5464, 2147483648
    %v5538 = vxor.u32 %v5466, 2147483648
    %v5539 = vxor.u32 %v5469, 2147483648
    %v5540 = vxor.u32 %v5471, 2147483648
    %v5541 = vxor.u32 %v5474, 2147483648
    %v5542 = vxor.u32 %v5476, 2147483648
    %v5543 = vxor.u32 %v5479, 2147483648
    %v5544 = vxor.u32 %v5481, 2147483648
    %v5545 = vxor.u32 %v5484, 2147483648
    %v5546 = vxor.u32 %v5486, 2147483648
    %v5547 = vxor.u32 %v5489, 2147483648
    %v5548 = vxor.u32 %v5491, 2147483648
    %v5549 = vxor.u32 %v5494, 2147483648
    %v5550 = vxor.u32 %v5496, 2147483648
    %v5551 = vxor.u32 %v5499, 2147483648
    %v5552 = vxor.u32 %v5501, 2147483648
    %v5553 = vxor.u32 %v5504, 2147483648
    %v5554 = vxor.u32 %v5506, 2147483648
    %v5555 = vxor.u32 %v5509, 2147483648
    %v5556 = vxor.u32 %v5511, 2147483648
    %v5557 = vxor.u32 %v5514, 2147483648
    %v5558 = vxor.u32 %v5516, 2147483648
    %v5559 = vxor.u32 %v5519, 2147483648
    %v5560 = vxor.u32 %v5521, 2147483648
    %v5561 = vxor.u32 %v5524, 2147483648
    %v5562 = vxor.u32 %v5526, 2147483648
    %v5563 = vxor.u32 %v5529, 2147483648
    %v5564 = vxor.u32 %v5531, 2147483648
    %v5565 = vmul.f32 %v5533, 1.442695
    %v5566 = vpow.pop %v5565
    %v5567 = vmul.f32 %v5534, 1.442695
    %v5568 = vpow.pop %v5567
    %v5569 = vmul.f32 %v5535, 1.442695
    %v5570 = vpow.pop %v5569
    %v5571 = vmul.f32 %v5536, 1.442695
    %v5572 = vpow.pop %v5571
    %v5573 = vmul.f32 %v5537, 1.442695
    %v5574 = vpow.pop %v5573
    %v5575 = vmul.f32 %v5538, 1.442695
    %v5576 = vpow.pop %v5575
    %v5577 = vmul.f32 %v5539, 1.442695
    %v5578 = vpow.pop %v5577
    %v5579 = vmul.f32 %v5540, 1.442695
    %v5580 = vpow.pop %v5579
    %v5581 = vmul.f32 %v5541, 1.442695
    %v5582 = vpow.pop %v5581
    %v5583 = vmul.f32 %v5542, 1.442695
    %v5584 = vpow.pop %v5583
    %v5585 = vmul.f32 %v5543, 1.442695
    %v5586 = vpow.pop %v5585
    %v5587 = vmul.f32 %v5544, 1.442695
    %v5588 = vpow.pop %v5587
    %v5589 = vmul.f32 %v5545, 1.442695
    %v5590 = vpow.pop %v5589
    %v5591 = vmul.f32 %v5546, 1.442695
    %v5592 = vpow.pop %v5591
    %v5593 = vmul.f32 %v5547, 1.442695
    %v5594 = vpow.pop %v5593
    %v5595 = vmul.f32 %v5548, 1.442695
    %v5596 = vpow.pop %v5595
    %v5597 = vmul.f32 %v5549, 1.442695
    %v5598 = vpow.pop %v5597
    %v5599 = vmul.f32 %v5550, 1.442695
    %v5600 = vpow.pop %v5599
    %v5601 = vmul.f32 %v5551, 1.442695
    %v5602 = vpow.pop %v5601
    %v5603 = vmul.f32 %v5552, 1.442695
    %v5604 = vpow.pop %v5603
    %v5605 = vmul.f32 %v5553, 1.442695
    %v5606 = vpow.pop %v5605
    %v5607 = vmul.f32 %v5554, 1.442695
    %v5608 = vpow.pop %v5607
    %v5609 = vmul.f32 %v5555, 1.442695
    %v5610 = vpow.pop %v5609
    %v5611 = vmul.f32 %v5556, 1.442695
    %v5612 = vpow.pop %v5611
    %v5613 = vmul.f32 %v5557, 1.442695
    %v5614 = vpow.pop %v5613
    %v5615 = vmul.f32 %v5558, 1.442695
    %v5616 = vpow.pop %v5615
    %v5617 = vmul.f32 %v5559, 1.442695
    %v5618 = vpow.pop %v5617
    %v5619 = vmul.f32 %v5560, 1.442695
    %v5620 = vpow.pop %v5619
    %v5621 = vmul.f32 %v5561, 1.442695
    %v5622 = vpow.pop %v5621
    %v5623 = vmul.f32 %v5562, 1.442695
    %v5624 = vpow.pop %v5623
    %v5625 = vmul.f32 %v5563, 1.442695
    %v5626 = vpow.pop %v5625
    %v5627 = vmul.f32 %v5564, 1.442695
    %v5628 = vpow.pop %v5627
    %v5629 = vadd.f32 %v5566, 1.0
    %v5630 = vadd.f32 %v5568, 1.0
    %v5631 = vadd.f32 %v5570, 1.0
    %v5632 = vadd.f32 %v5572, 1.0
    %v5633 = vadd.f32 %v5574, 1.0
    %v5634 = vadd.f32 %v5576, 1.0
    %v5635 = vadd.f32 %v5578, 1.0
    %v5636 = vadd.f32 %v5580, 1.0
    %v5637 = vadd.f32 %v5582, 1.0
    %v5638 = vadd.f32 %v5584, 1.0
    %v5639 = vadd.f32 %v5586, 1.0
    %v5640 = vadd.f32 %v5588, 1.0
    %v5641 = vadd.f32 %v5590, 1.0
    %v5642 = vadd.f32 %v5592, 1.0
    %v5643 = vadd.f32 %v5594, 1.0
    %v5644 = vadd.f32 %v5596, 1.0
    %v5645 = vadd.f32 %v5598, 1.0
    %v5646 = vadd.f32 %v5600, 1.0
    %v5647 = vadd.f32 %v5602, 1.0
    %v5648 = vadd.f32 %v5604, 1.0
    %v5649 = vadd.f32 %v5606, 1.0
    %v5650 = vadd.f32 %v5608, 1.0
    %v5651 = vadd.f32 %v5610, 1.0
    %v5652 = vadd.f32 %v5612, 1.0
    %v5653 = vadd.f32 %v5614, 1.0
    %v5654 = vadd.f32 %v5616, 1.0
    %v5655 = vadd.f32 %v5618, 1.0
    %v5656 = vadd.f32 %v5620, 1.0
    %v5657 = vadd.f32 %v5622, 1.0
    %v5658 = vadd.f32 %v5624, 1.0
    %v5659 = vadd.f32 %v5626, 1.0
    %v5660 = vadd.f32 %v5628, 1.0
    %v5661 = vrcp.pop %v5629
    %v5662 = vmul.f32 %v5629, %v5661
    %v5663 = vsub.f32 1.0, %v5662
    %v5664 = vmul.f32 %v5661, %v5663
    %v5665 = vadd.f32 %v5661, %v5664
    %vm5666 = vweird.f32 %v5629
    %vm5667 = vweird.f32 %v5661
    %vm5668 = vmor %vm5666, %vm5667
    %v5669 = vsel %vm5668, %v5661, %v5665
    %v5670 = vand.u32 2147483647, %v5629
    %vm5671 = vcmp.eq.f32.partialorder %v5670, 8.507059e+37
    %v5672 = vand.u32 %v5629, 2147483648
    %v5673 = vor.u32 1.1754944e-38, %v5672
    %v5674 = vsel %vm5671, %v5673, %v5669
    %v5675 = vmul.f32 1.0, %v5674
    %v5676 = vrcp.pop %v5630
    %v5677 = vmul.f32 %v5630, %v5676
    %v5678 = vsub.f32 1.0, %v5677
    %v5679 = vmul.f32 %v5676, %v5678
    %v5680 = vadd.f32 %v5676, %v5679
    %vm5681 = vweird.f32 %v5630
    %vm5682 = vweird.f32 %v5676
    %vm5683 = vmor %vm5681, %vm5682
    %v5684 = vsel %vm5683, %v5676, %v5680
    %v5685 = vand.u32 2147483647, %v5630
    %vm5686 = vcmp.eq.f32.partialorder %v5685, 8.507059e+37
    %v5687 = vand.u32 %v5630, 2147483648
    %v5688 = vor.u32 1.1754944e-38, %v5687
    %v5689 = vsel %vm5686, %v5688, %v5684
    %v5690 = vmul.f32 1.0, %v5689
    %v5691 = vrcp.pop %v5631
    %v5692 = vmul.f32 %v5631, %v5691
    %v5693 = vsub.f32 1.0, %v5692
    %v5694 = vmul.f32 %v5691, %v5693
    %v5695 = vadd.f32 %v5691, %v5694
    %vm5696 = vweird.f32 %v5631
    %vm5697 = vweird.f32 %v5691
    %vm5698 = vmor %vm5696, %vm5697
    %v5699 = vsel %vm5698, %v5691, %v5695
    %v5700 = vand.u32 2147483647, %v5631
    %vm5701 = vcmp.eq.f32.partialorder %v5700, 8.507059e+37
    %v5702 = vand.u32 %v5631, 2147483648
    %v5703 = vor.u32 1.1754944e-38, %v5702
    %v5704 = vsel %vm5701, %v5703, %v5699
    %v5705 = vmul.f32 1.0, %v5704
    %v5706 = vrcp.pop %v5632
    %v5707 = vmul.f32 %v5632, %v5706
    %v5708 = vsub.f32 1.0, %v5707
    %v5709 = vmul.f32 %v5706, %v5708
    %v5710 = vadd.f32 %v5706, %v5709
    %vm5711 = vweird.f32 %v5632
    %vm5712 = vweird.f32 %v5706
    %vm5713 = vmor %vm5711, %vm5712
    %v5714 = vsel %vm5713, %v5706, %v5710
    %v5715 = vand.u32 2147483647, %v5632
    %vm5716 = vcmp.eq.f32.partialorder %v5715, 8.507059e+37
    %v5717 = vand.u32 %v5632, 2147483648
    %v5718 = vor.u32 1.1754944e-38, %v5717
    %v5719 = vsel %vm5716, %v5718, %v5714
    %v5720 = vmul.f32 1.0, %v5719
    %v5721 = vrcp.pop %v5633
    %v5722 = vmul.f32 %v5633, %v5721
    %v5723 = vsub.f32 1.0, %v5722
    %v5724 = vmul.f32 %v5721, %v5723
    %v5725 = vadd.f32 %v5721, %v5724
    %vm5726 = vweird.f32 %v5633
    %vm5727 = vweird.f32 %v5721
    %vm5728 = vmor %vm5726, %vm5727
    %v5729 = vsel %vm5728, %v5721, %v5725
    %v5730 = vand.u32 2147483647, %v5633
    %vm5731 = vcmp.eq.f32.partialorder %v5730, 8.507059e+37
    %v5732 = vand.u32 %v5633, 2147483648
    %v5733 = vor.u32 1.1754944e-38, %v5732
    %v5734 = vsel %vm5731, %v5733, %v5729
    %v5735 = vmul.f32 1.0, %v5734
    %v5736 = vrcp.pop %v5634
    %v5737 = vmul.f32 %v5634, %v5736
    %v5738 = vsub.f32 1.0, %v5737
    %v5739 = vmul.f32 %v5736, %v5738
    %v5740 = vadd.f32 %v5736, %v5739
    %vm5741 = vweird.f32 %v5634
    %vm5742 = vweird.f32 %v5736
    %vm5743 = vmor %vm5741, %vm5742
    %v5744 = vsel %vm5743, %v5736, %v5740
    %v5745 = vand.u32 2147483647, %v5634
    %vm5746 = vcmp.eq.f32.partialorder %v5745, 8.507059e+37
    %v5747 = vand.u32 %v5634, 2147483648
    %v5748 = vor.u32 1.1754944e-38, %v5747
    %v5749 = vsel %vm5746, %v5748, %v5744
    %v5750 = vmul.f32 1.0, %v5749
    %v5751 = vrcp.pop %v5635
    %v5752 = vmul.f32 %v5635, %v5751
    %v5753 = vsub.f32 1.0, %v5752
    %v5754 = vmul.f32 %v5751, %v5753
    %v5755 = vadd.f32 %v5751, %v5754
    %vm5756 = vweird.f32 %v5635
    %vm5757 = vweird.f32 %v5751
    %vm5758 = vmor %vm5756, %vm5757
    %v5759 = vsel %vm5758, %v5751, %v5755
    %v5760 = vand.u32 2147483647, %v5635
    %vm5761 = vcmp.eq.f32.partialorder %v5760, 8.507059e+37
    %v5762 = vand.u32 %v5635, 2147483648
    %v5763 = vor.u32 1.1754944e-38, %v5762
    %v5764 = vsel %vm5761, %v5763, %v5759
    %v5765 = vmul.f32 1.0, %v5764
    %v5766 = vrcp.pop %v5636
    %v5767 = vmul.f32 %v5636, %v5766
    %v5768 = vsub.f32 1.0, %v5767
    %v5769 = vmul.f32 %v5766, %v5768
    %v5770 = vadd.f32 %v5766, %v5769
    %vm5771 = vweird.f32 %v5636
    %vm5772 = vweird.f32 %v5766
    %vm5773 = vmor %vm5771, %vm5772
    %v5774 = vsel %vm5773, %v5766, %v5770
    %v5775 = vand.u32 2147483647, %v5636
    %vm5776 = vcmp.eq.f32.partialorder %v5775, 8.507059e+37
    %v5777 = vand.u32 %v5636, 2147483648
    %v5778 = vor.u32 1.1754944e-38, %v5777
    %v5779 = vsel %vm5776, %v5778, %v5774
    %v5780 = vmul.f32 1.0, %v5779
    %v5781 = vrcp.pop %v5637
    %v5782 = vmul.f32 %v5637, %v5781
    %v5783 = vsub.f32 1.0, %v5782
    %v5784 = vmul.f32 %v5781, %v5783
    %v5785 = vadd.f32 %v5781, %v5784
    %vm5786 = vweird.f32 %v5637
    %vm5787 = vweird.f32 %v5781
    %vm5788 = vmor %vm5786, %vm5787
    %v5789 = vsel %vm5788, %v5781, %v5785
    %v5790 = vand.u32 2147483647, %v5637
    %vm5791 = vcmp.eq.f32.partialorder %v5790, 8.507059e+37
    %v5792 = vand.u32 %v5637, 2147483648
    %v5793 = vor.u32 1.1754944e-38, %v5792
    %v5794 = vsel %vm5791, %v5793, %v5789
    %v5795 = vmul.f32 1.0, %v5794
    %v5796 = vrcp.pop %v5638
    %v5797 = vmul.f32 %v5638, %v5796
    %v5798 = vsub.f32 1.0, %v5797
    %v5799 = vmul.f32 %v5796, %v5798
    %v5800 = vadd.f32 %v5796, %v5799
    %vm5801 = vweird.f32 %v5638
    %vm5802 = vweird.f32 %v5796
    %vm5803 = vmor %vm5801, %vm5802
    %v5804 = vsel %vm5803, %v5796, %v5800
    %v5805 = vand.u32 2147483647, %v5638
    %vm5806 = vcmp.eq.f32.partialorder %v5805, 8.507059e+37
    %v5807 = vand.u32 %v5638, 2147483648
    %v5808 = vor.u32 1.1754944e-38, %v5807
    %v5809 = vsel %vm5806, %v5808, %v5804
    %v5810 = vmul.f32 1.0, %v5809
    %v5811 = vrcp.pop %v5639
    %v5812 = vmul.f32 %v5639, %v5811
    %v5813 = vsub.f32 1.0, %v5812
    %v5814 = vmul.f32 %v5811, %v5813
    %v5815 = vadd.f32 %v5811, %v5814
    %vm5816 = vweird.f32 %v5639
    %vm5817 = vweird.f32 %v5811
    %vm5818 = vmor %vm5816, %vm5817
    %v5819 = vsel %vm5818, %v5811, %v5815
    %v5820 = vand.u32 2147483647, %v5639
    %vm5821 = vcmp.eq.f32.partialorder %v5820, 8.507059e+37
    %v5822 = vand.u32 %v5639, 2147483648
    %v5823 = vor.u32 1.1754944e-38, %v5822
    %v5824 = vsel %vm5821, %v5823, %v5819
    %v5825 = vmul.f32 1.0, %v5824
    %v5826 = vrcp.pop %v5640
    %v5827 = vmul.f32 %v5640, %v5826
    %v5828 = vsub.f32 1.0, %v5827
    %v5829 = vmul.f32 %v5826, %v5828
    %v5830 = vadd.f32 %v5826, %v5829
    %vm5831 = vweird.f32 %v5640
    %vm5832 = vweird.f32 %v5826
    %vm5833 = vmor %vm5831, %vm5832
    %v5834 = vsel %vm5833, %v5826, %v5830
    %v5835 = vand.u32 2147483647, %v5640
    %vm5836 = vcmp.eq.f32.partialorder %v5835, 8.507059e+37
    %v5837 = vand.u32 %v5640, 2147483648
    %v5838 = vor.u32 1.1754944e-38, %v5837
    %v5839 = vsel %vm5836, %v5838, %v5834
    %v5840 = vmul.f32 1.0, %v5839
    %v5841 = vrcp.pop %v5641
    %v5842 = vmul.f32 %v5641, %v5841
    %v5843 = vsub.f32 1.0, %v5842
    %v5844 = vmul.f32 %v5841, %v5843
    %v5845 = vadd.f32 %v5841, %v5844
    %vm5846 = vweird.f32 %v5641
    %vm5847 = vweird.f32 %v5841
    %vm5848 = vmor %vm5846, %vm5847
    %v5849 = vsel %vm5848, %v5841, %v5845
    %v5850 = vand.u32 2147483647, %v5641
    %vm5851 = vcmp.eq.f32.partialorder %v5850, 8.507059e+37
    %v5852 = vand.u32 %v5641, 2147483648
    %v5853 = vor.u32 1.1754944e-38, %v5852
    %v5854 = vsel %vm5851, %v5853, %v5849
    %v5855 = vmul.f32 1.0, %v5854
    %v5856 = vrcp.pop %v5642
    %v5857 = vmul.f32 %v5642, %v5856
    %v5858 = vsub.f32 1.0, %v5857
    %v5859 = vmul.f32 %v5856, %v5858
    %v5860 = vadd.f32 %v5856, %v5859
    %vm5861 = vweird.f32 %v5642
    %vm5862 = vweird.f32 %v5856
    %vm5863 = vmor %vm5861, %vm5862
    %v5864 = vsel %vm5863, %v5856, %v5860
    %v5865 = vand.u32 2147483647, %v5642
    %vm5866 = vcmp.eq.f32.partialorder %v5865, 8.507059e+37
    %v5867 = vand.u32 %v5642, 2147483648
    %v5868 = vor.u32 1.1754944e-38, %v5867
    %v5869 = vsel %vm5866, %v5868, %v5864
    %v5870 = vmul.f32 1.0, %v5869
    %v5871 = vrcp.pop %v5643
    %v5872 = vmul.f32 %v5643, %v5871
    %v5873 = vsub.f32 1.0, %v5872
    %v5874 = vmul.f32 %v5871, %v5873
    %v5875 = vadd.f32 %v5871, %v5874
    %vm5876 = vweird.f32 %v5643
    %vm5877 = vweird.f32 %v5871
    %vm5878 = vmor %vm5876, %vm5877
    %v5879 = vsel %vm5878, %v5871, %v5875
    %v5880 = vand.u32 2147483647, %v5643
    %vm5881 = vcmp.eq.f32.partialorder %v5880, 8.507059e+37
    %v5882 = vand.u32 %v5643, 2147483648
    %v5883 = vor.u32 1.1754944e-38, %v5882
    %v5884 = vsel %vm5881, %v5883, %v5879
    %v5885 = vmul.f32 1.0, %v5884
    %v5886 = vrcp.pop %v5644
    %v5887 = vmul.f32 %v5644, %v5886
    %v5888 = vsub.f32 1.0, %v5887
    %v5889 = vmul.f32 %v5886, %v5888
    %v5890 = vadd.f32 %v5886, %v5889
    %vm5891 = vweird.f32 %v5644
    %vm5892 = vweird.f32 %v5886
    %vm5893 = vmor %vm5891, %vm5892
    %v5894 = vsel %vm5893, %v5886, %v5890
    %v5895 = vand.u32 2147483647, %v5644
    %vm5896 = vcmp.eq.f32.partialorder %v5895, 8.507059e+37
    %v5897 = vand.u32 %v5644, 2147483648
    %v5898 = vor.u32 1.1754944e-38, %v5897
    %v5899 = vsel %vm5896, %v5898, %v5894
    %v5900 = vmul.f32 1.0, %v5899
    %v5901 = vrcp.pop %v5645
    %v5902 = vmul.f32 %v5645, %v5901
    %v5903 = vsub.f32 1.0, %v5902
    %v5904 = vmul.f32 %v5901, %v5903
    %v5905 = vadd.f32 %v5901, %v5904
    %vm5906 = vweird.f32 %v5645
    %vm5907 = vweird.f32 %v5901
    %vm5908 = vmor %vm5906, %vm5907
    %v5909 = vsel %vm5908, %v5901, %v5905
    %v5910 = vand.u32 2147483647, %v5645
    %vm5911 = vcmp.eq.f32.partialorder %v5910, 8.507059e+37
    %v5912 = vand.u32 %v5645, 2147483648
    %v5913 = vor.u32 1.1754944e-38, %v5912
    %v5914 = vsel %vm5911, %v5913, %v5909
    %v5915 = vmul.f32 1.0, %v5914
    %v5916 = vrcp.pop %v5646
    %v5917 = vmul.f32 %v5646, %v5916
    %v5918 = vsub.f32 1.0, %v5917
    %v5919 = vmul.f32 %v5916, %v5918
    %v5920 = vadd.f32 %v5916, %v5919
    %vm5921 = vweird.f32 %v5646
    %vm5922 = vweird.f32 %v5916
    %vm5923 = vmor %vm5921, %vm5922
    %v5924 = vsel %vm5923, %v5916, %v5920
    %v5925 = vand.u32 2147483647, %v5646
    %vm5926 = vcmp.eq.f32.partialorder %v5925, 8.507059e+37
    %v5927 = vand.u32 %v5646, 2147483648
    %v5928 = vor.u32 1.1754944e-38, %v5927
    %v5929 = vsel %vm5926, %v5928, %v5924
    %v5930 = vmul.f32 1.0, %v5929
    %v5931 = vrcp.pop %v5647
    %v5932 = vmul.f32 %v5647, %v5931
    %v5933 = vsub.f32 1.0, %v5932
    %v5934 = vmul.f32 %v5931, %v5933
    %v5935 = vadd.f32 %v5931, %v5934
    %vm5936 = vweird.f32 %v5647
    %vm5937 = vweird.f32 %v5931
    %vm5938 = vmor %vm5936, %vm5937
    %v5939 = vsel %vm5938, %v5931, %v5935
    %v5940 = vand.u32 2147483647, %v5647
    %vm5941 = vcmp.eq.f32.partialorder %v5940, 8.507059e+37
    %v5942 = vand.u32 %v5647, 2147483648
    %v5943 = vor.u32 1.1754944e-38, %v5942
    %v5944 = vsel %vm5941, %v5943, %v5939
    %v5945 = vmul.f32 1.0, %v5944
    %v5946 = vrcp.pop %v5648
    %v5947 = vmul.f32 %v5648, %v5946
    %v5948 = vsub.f32 1.0, %v5947
    %v5949 = vmul.f32 %v5946, %v5948
    %v5950 = vadd.f32 %v5946, %v5949
    %vm5951 = vweird.f32 %v5648
    %vm5952 = vweird.f32 %v5946
    %vm5953 = vmor %vm5951, %vm5952
    %v5954 = vsel %vm5953, %v5946, %v5950
    %v5955 = vand.u32 2147483647, %v5648
    %vm5956 = vcmp.eq.f32.partialorder %v5955, 8.507059e+37
    %v5957 = vand.u32 %v5648, 2147483648
    %v5958 = vor.u32 1.1754944e-38, %v5957
    %v5959 = vsel %vm5956, %v5958, %v5954
    %v5960 = vmul.f32 1.0, %v5959
    %v5961 = vrcp.pop %v5649
    %v5962 = vmul.f32 %v5649, %v5961
    %v5963 = vsub.f32 1.0, %v5962
    %v5964 = vmul.f32 %v5961, %v5963
    %v5965 = vadd.f32 %v5961, %v5964
    %vm5966 = vweird.f32 %v5649
    %vm5967 = vweird.f32 %v5961
    %vm5968 = vmor %vm5966, %vm5967
    %v5969 = vsel %vm5968, %v5961, %v5965
    %v5970 = vand.u32 2147483647, %v5649
    %vm5971 = vcmp.eq.f32.partialorder %v5970, 8.507059e+37
    %v5972 = vand.u32 %v5649, 2147483648
    %v5973 = vor.u32 1.1754944e-38, %v5972
    %v5974 = vsel %vm5971, %v5973, %v5969
    %v5975 = vmul.f32 1.0, %v5974
    %v5976 = vrcp.pop %v5650
    %v5977 = vmul.f32 %v5650, %v5976
    %v5978 = vsub.f32 1.0, %v5977
    %v5979 = vmul.f32 %v5976, %v5978
    %v5980 = vadd.f32 %v5976, %v5979
    %vm5981 = vweird.f32 %v5650
    %vm5982 = vweird.f32 %v5976
    %vm5983 = vmor %vm5981, %vm5982
    %v5984 = vsel %vm5983, %v5976, %v5980
    %v5985 = vand.u32 2147483647, %v5650
    %vm5986 = vcmp.eq.f32.partialorder %v5985, 8.507059e+37
    %v5987 = vand.u32 %v5650, 2147483648
    %v5988 = vor.u32 1.1754944e-38, %v5987
    %v5989 = vsel %vm5986, %v5988, %v5984
    %v5990 = vmul.f32 1.0, %v5989
    %v5991 = vrcp.pop %v5651
    %v5992 = vmul.f32 %v5651, %v5991
    %v5993 = vsub.f32 1.0, %v5992
    %v5994 = vmul.f32 %v5991, %v5993
    %v5995 = vadd.f32 %v5991, %v5994
    %vm5996 = vweird.f32 %v5651
    %vm5997 = vweird.f32 %v5991
    %vm5998 = vmor %vm5996, %vm5997
    %v5999 = vsel %vm5998, %v5991, %v5995
    %v6000 = vand.u32 2147483647, %v5651
    %vm6001 = vcmp.eq.f32.partialorder %v6000, 8.507059e+37
    %v6002 = vand.u32 %v5651, 2147483648
    %v6003 = vor.u32 1.1754944e-38, %v6002
    %v6004 = vsel %vm6001, %v6003, %v5999
    %v6005 = vmul.f32 1.0, %v6004
    %v6006 = vrcp.pop %v5652
    %v6007 = vmul.f32 %v5652, %v6006
    %v6008 = vsub.f32 1.0, %v6007
    %v6009 = vmul.f32 %v6006, %v6008
    %v6010 = vadd.f32 %v6006, %v6009
    %vm6011 = vweird.f32 %v5652
    %vm6012 = vweird.f32 %v6006
    %vm6013 = vmor %vm6011, %vm6012
    %v6014 = vsel %vm6013, %v6006, %v6010
    %v6015 = vand.u32 2147483647, %v5652
    %vm6016 = vcmp.eq.f32.partialorder %v6015, 8.507059e+37
    %v6017 = vand.u32 %v5652, 2147483648
    %v6018 = vor.u32 1.1754944e-38, %v6017
    %v6019 = vsel %vm6016, %v6018, %v6014
    %v6020 = vmul.f32 1.0, %v6019
    %v6021 = vrcp.pop %v5653
    %v6022 = vmul.f32 %v5653, %v6021
    %v6023 = vsub.f32 1.0, %v6022
    %v6024 = vmul.f32 %v6021, %v6023
    %v6025 = vadd.f32 %v6021, %v6024
    %vm6026 = vweird.f32 %v5653
    %vm6027 = vweird.f32 %v6021
    %vm6028 = vmor %vm6026, %vm6027
    %v6029 = vsel %vm6028, %v6021, %v6025
    %v6030 = vand.u32 2147483647, %v5653
    %vm6031 = vcmp.eq.f32.partialorder %v6030, 8.507059e+37
    %v6032 = vand.u32 %v5653, 2147483648
    %v6033 = vor.u32 1.1754944e-38, %v6032
    %v6034 = vsel %vm6031, %v6033, %v6029
    %v6035 = vmul.f32 1.0, %v6034
    %v6036 = vrcp.pop %v5654
    %v6037 = vmul.f32 %v5654, %v6036
    %v6038 = vsub.f32 1.0, %v6037
    %v6039 = vmul.f32 %v6036, %v6038
    %v6040 = vadd.f32 %v6036, %v6039
    %vm6041 = vweird.f32 %v5654
    %vm6042 = vweird.f32 %v6036
    %vm6043 = vmor %vm6041, %vm6042
    %v6044 = vsel %vm6043, %v6036, %v6040
    %v6045 = vand.u32 2147483647, %v5654
    %vm6046 = vcmp.eq.f32.partialorder %v6045, 8.507059e+37
    %v6047 = vand.u32 %v5654, 2147483648
    %v6048 = vor.u32 1.1754944e-38, %v6047
    %v6049 = vsel %vm6046, %v6048, %v6044
    %v6050 = vmul.f32 1.0, %v6049
    %v6051 = vrcp.pop %v5655
    %v6052 = vmul.f32 %v5655, %v6051
    %v6053 = vsub.f32 1.0, %v6052
    %v6054 = vmul.f32 %v6051, %v6053
    %v6055 = vadd.f32 %v6051, %v6054
    %vm6056 = vweird.f32 %v5655
    %vm6057 = vweird.f32 %v6051
    %vm6058 = vmor %vm6056, %vm6057
    %v6059 = vsel %vm6058, %v6051, %v6055
    %v6060 = vand.u32 2147483647, %v5655
    %vm6061 = vcmp.eq.f32.partialorder %v6060, 8.507059e+37
    %v6062 = vand.u32 %v5655, 2147483648
    %v6063 = vor.u32 1.1754944e-38, %v6062
    %v6064 = vsel %vm6061, %v6063, %v6059
    %v6065 = vmul.f32 1.0, %v6064
    %v6066 = vrcp.pop %v5656
    %v6067 = vmul.f32 %v5656, %v6066
    %v6068 = vsub.f32 1.0, %v6067
    %v6069 = vmul.f32 %v6066, %v6068
    %v6070 = vadd.f32 %v6066, %v6069
    %vm6071 = vweird.f32 %v5656
    %vm6072 = vweird.f32 %v6066
    %vm6073 = vmor %vm6071, %vm6072
    %v6074 = vsel %vm6073, %v6066, %v6070
    %v6075 = vand.u32 2147483647, %v5656
    %vm6076 = vcmp.eq.f32.partialorder %v6075, 8.507059e+37
    %v6077 = vand.u32 %v5656, 2147483648
    %v6078 = vor.u32 1.1754944e-38, %v6077
    %v6079 = vsel %vm6076, %v6078, %v6074
    %v6080 = vmul.f32 1.0, %v6079
    %v6081 = vrcp.pop %v5657
    %v6082 = vmul.f32 %v5657, %v6081
    %v6083 = vsub.f32 1.0, %v6082
    %v6084 = vmul.f32 %v6081, %v6083
    %v6085 = vadd.f32 %v6081, %v6084
    %vm6086 = vweird.f32 %v5657
    %vm6087 = vweird.f32 %v6081
    %vm6088 = vmor %vm6086, %vm6087
    %v6089 = vsel %vm6088, %v6081, %v6085
    %v6090 = vand.u32 2147483647, %v5657
    %vm6091 = vcmp.eq.f32.partialorder %v6090, 8.507059e+37
    %v6092 = vand.u32 %v5657, 2147483648
    %v6093 = vor.u32 1.1754944e-38, %v6092
    %v6094 = vsel %vm6091, %v6093, %v6089
    %v6095 = vmul.f32 1.0, %v6094
    %v6096 = vrcp.pop %v5658
    %v6097 = vmul.f32 %v5658, %v6096
    %v6098 = vsub.f32 1.0, %v6097
    %v6099 = vmul.f32 %v6096, %v6098
    %v6100 = vadd.f32 %v6096, %v6099
    %vm6101 = vweird.f32 %v5658
    %vm6102 = vweird.f32 %v6096
    %vm6103 = vmor %vm6101, %vm6102
    %v6104 = vsel %vm6103, %v6096, %v6100
    %v6105 = vand.u32 2147483647, %v5658
    %vm6106 = vcmp.eq.f32.partialorder %v6105, 8.507059e+37
    %v6107 = vand.u32 %v5658, 2147483648
    %v6108 = vor.u32 1.1754944e-38, %v6107
    %v6109 = vsel %vm6106, %v6108, %v6104
    %v6110 = vmul.f32 1.0, %v6109
    %v6111 = vrcp.pop %v5659
    %v6112 = vmul.f32 %v5659, %v6111
    %v6113 = vsub.f32 1.0, %v6112
    %v6114 = vmul.f32 %v6111, %v6113
    %v6115 = vadd.f32 %v6111, %v6114
    %vm6116 = vweird.f32 %v5659
    %vm6117 = vweird.f32 %v6111
    %vm6118 = vmor %vm6116, %vm6117
    %v6119 = vsel %vm6118, %v6111, %v6115
    %v6120 = vand.u32 2147483647, %v5659
    %vm6121 = vcmp.eq.f32.partialorder %v6120, 8.507059e+37
    %v6122 = vand.u32 %v5659, 2147483648
    %v6123 = vor.u32 1.1754944e-38, %v6122
    %v6124 = vsel %vm6121, %v6123, %v6119
    %v6125 = vmul.f32 1.0, %v6124
    %v6126 = vrcp.pop %v5660
    %v6127 = vmul.f32 %v5660, %v6126
    %v6128 = vsub.f32 1.0, %v6127
    %v6129 = vmul.f32 %v6126, %v6128
    %v6130 = vadd.f32 %v6126, %v6129
    %vm6131 = vweird.f32 %v5660
    %vm6132 = vweird.f32 %v6126
    %vm6133 = vmor %vm6131, %vm6132
    %v6134 = vsel %vm6133, %v6126, %v6130
    %v6135 = vand.u32 2147483647, %v5660
    %vm6136 = vcmp.eq.f32.partialorder %v6135, 8.507059e+37
    %v6137 = vand.u32 %v5660, 2147483648
    %v6138 = vor.u32 1.1754944e-38, %v6137
    %v6139 = vsel %vm6136, %v6138, %v6134
    %v6140 = vmul.f32 1.0, %v6139
    %v6141 = vmul.f32 %v5454, %v5675
    %v6142 = vmul.f32 %v5456, %v5690
    %v6143 = vmul.f32 %v5459, %v5705
    %v6144 = vmul.f32 %v5461, %v5720
    %v6145 = vmul.f32 %v5464, %v5735
    %v6146 = vmul.f32 %v5466, %v5750
    %v6147 = vmul.f32 %v5469, %v5765
    %v6148 = vmul.f32 %v5471, %v5780
    %v6149 = vmul.f32 %v5474, %v5795
    %v6150 = vmul.f32 %v5476, %v5810
    %v6151 = vmul.f32 %v5479, %v5825
    %v6152 = vmul.f32 %v5481, %v5840
    %v6153 = vmul.f32 %v5484, %v5855
    %v6154 = vmul.f32 %v5486, %v5870
    %v6155 = vmul.f32 %v5489, %v5885
    %v6156 = vmul.f32 %v5491, %v5900
    %v6157 = vmul.f32 %v5494, %v5915
    %v6158 = vmul.f32 %v5496, %v5930
    %v6159 = vmul.f32 %v5499, %v5945
    %v6160 = vmul.f32 %v5501, %v5960
    %v6161 = vmul.f32 %v5504, %v5975
    %v6162 = vmul.f32 %v5506, %v5990
    %v6163 = vmul.f32 %v5509, %v6005
    %v6164 = vmul.f32 %v5511, %v6020
    %v6165 = vmul.f32 %v5514, %v6035
    %v6166 = vmul.f32 %v5516, %v6050
    %v6167 = vmul.f32 %v5519, %v6065
    %v6168 = vmul.f32 %v5521, %v6080
    %v6169 = vmul.f32 %v5524, %v6095
    %v6170 = vmul.f32 %v5526, %v6110
    %v6171 = vmul.f32 %v5529, %v6125
    %v6172 = vmul.f32 %v5531, %v6140
    %v6173 = vadd.f32 %v6141, %v6142
    %v6174 = vadd.f32 %v6173, %v6143
    %v6175 = vadd.f32 %v6174, %v6144
    %v6176 = vadd.f32 %v6175, %v6145
    %v6177 = vadd.f32 %v6176, %v6146
    %v6178 = vadd.f32 %v6177, %v6147
    %v6179 = vadd.f32 %v6178, %v6148
    %v6180 = vadd.f32 %v6179, %v6149
    %v6181 = vadd.f32 %v6180, %v6150
    %v6182 = vadd.f32 %v6181, %v6151
    %v6183 = vadd.f32 %v6182, %v6152
    %v6184 = vadd.f32 %v6183, %v6153
    %v6185 = vadd.f32 %v6184, %v6154
    %v6186 = vadd.f32 %v6185, %v6155
    %v6187 = vadd.f32 %v6186, %v6156
    %v6188 = vadd.f32 %v6187, %v6157
    %v6189 = vadd.f32 %v6188, %v6158
    %v6190 = vadd.f32 %v6189, %v6159
    %v6191 = vadd.f32 %v6190, %v6160
    %v6192 = vadd.f32 %v6191, %v6161
    %v6193 = vadd.f32 %v6192, %v6162
    %v6194 = vadd.f32 %v6193, %v6163
    %v6195 = vadd.f32 %v6194, %v6164
    %v6196 = vadd.f32 %v6195, %v6165
    %v6197 = vadd.f32 %v6196, %v6166
    %v6198 = vadd.f32 %v6197, %v6167
    %v6199 = vadd.f32 %v6198, %v6168
    %v6200 = vadd.f32 %v6199, %v6169
    %v6201 = vadd.f32 %v6200, %v6170
    %v6202 = vadd.f32 %v6201, %v6171
    %v6203 = vadd.f32 %v6202, %v6172
    %v6204 = vrot.slane %v6203, 4
    %v6205 = vadd.f32 %v6203, %v6204
    %v6206 = vrot.slane %v6205, 2
    %v6207 = vadd.f32 %v6205, %v6206
    %v6208 = vrot.slane %v6207, 1
    %v6209 = vadd.f32 %v6207, %v6208
    %v6210 = vmul.f32 %v6209, %v5076
    %v6211 = vld [vmem:[%s16] sm:$0xff]
    %v6212 = vld [vmem:[%s16 + $0x8] sm:$0xff]
    %v6213 = vld [vmem:[%s16 + $0x10] sm:$0xff]
    %v6214 = vld [vmem:[%s16 + $0x18] sm:$0xff]
    %v6215 = vld [vmem:[%s16 + $0x20] sm:$0xff]
    %v6216 = vld [vmem:[%s16 + $0x28] sm:$0xff]
    %v6217 = vld [vmem:[%s16 + $0x30] sm:$0xff]
    %v6218 = vld [vmem:[%s16 + $0x38] sm:$0xff]
    %v6219 = vld [vmem:[%s16 + $0x40] sm:$0xff]
    %v6220 = vld [vmem:[%s16 + $0x48] sm:$0xff]
    %v6221 = vld [vmem:[%s16 + $0x50] sm:$0xff]
    %v6222 = vld [vmem:[%s16 + $0x58] sm:$0xff]
    %v6223 = vld [vmem:[%s16 + $0x60] sm:$0xff]
    %v6224 = vld [vmem:[%s16 + $0x68] sm:$0xff]
    %v6225 = vld [vmem:[%s16 + $0x70] sm:$0xff]
    %v6226 = vld [vmem:[%s16 + $0x78] sm:$0xff]
    %v6227 = vld [vmem:[%s17] sm:$0x1]
    %6228 = vmatpush.msra.mxu0 %v6226
    %6229 = vmatpush.msra.mxu0 %v6225
    %6230 = vmatpush.msra.mxu0 %v6224
    %6231 = vmatpush.msra.mxu0 %v6223
    %6232 = vmatpush.msra.mxu0 %v6222
    %6233 = vmatpush.msra.mxu0 %v6221
    %6234 = vmatpush.msra.mxu0 %v6220
    %6235 = vmatpush.msra.mxu0 %v6219
    %6236 = vmatpush.msra.mxu0 %v6218
    %6237 = vmatpush.msra.mxu0 %v6217
    %6238 = vmatpush.msra.mxu0 %v6216
    %6239 = vmatpush.msra.mxu0 %v6215
    %6240 = vmatpush.msra.mxu0 %v6214
    %6241 = vmatpush.msra.mxu0 %v6213
    %6242 = vmatpush.msra.mxu0 %v6212
    %6243 = vmatpush.msra.mxu0 %v6211
    %6244 = vmatmul.f32.gmra.mxu0 %v6210
    %v6245 = vpop.f32.mrf.mxu0
    %v6246 = vadd.f32 %v6227, %v6245
    %6247 = vdwg.mxu0
    %v6248 = vxor.u32 %v6246, 2147483648
    %v6249 = vmul.f32 %v6248, 1.442695
    %v6250 = vpow.pop %v6249
    %v6251 = vadd.f32 %v6250, 1.0
    %v6252 = vrcp.pop %v6251
    %v6253 = vmul.f32 %v6251, %v6252
    %v6254 = vsub.f32 1.0, %v6253
    %v6255 = vmul.f32 %v6252, %v6254
    %v6256 = vadd.f32 %v6252, %v6255
    %vm6257 = vweird.f32 %v6251
    %vm6258 = vweird.f32 %v6252
    %vm6259 = vmor %vm6257, %vm6258
    %v6260 = vsel %vm6259, %v6252, %v6256
    %v6261 = vand.u32 2147483647, %v6251
    %vm6262 = vcmp.eq.f32.partialorder %v6261, 8.507059e+37
    %v6263 = vand.u32 %v6251, 2147483648
    %v6264 = vor.u32 1.1754944e-38, %v6263
    %v6265 = vsel %vm6262, %v6264, %v6260
    %v6266 = vmul.f32 1.0, %v6265
    %vm6267 = vcmask 8192
    %6268 = vst.msk [vmem:[#allocation3] sm:$0x1] %vm6267, %v6266
    // Predicated region
    $region74: #{valid_efficientnet_forward.1} parent=1 // pred_check
      _
    $region75: #{valid_efficientnet_forward.1} parent=1 // pred_check_branch
      %6270 = sbr.rel (0) target = $region77
    $region76: #{valid_efficientnet_forward.1} parent=1 // pred_region
      %6272 = vsyncadd [#allocation4], 0
      %s6274 = sshll.u32 [#allocation3], 4
      %s6275 = int_to_ptr.vmem [resolvable:$true] %s6274
      %s6276 = sshll.u32 %s18, 4
      %s6277 = int_to_ptr.hbm [resolvable:$true] %s6276
      %6279 = dma.vmem_to_hbm [thread:$0]  %s6275, 16, %s6277, [#allocation4]
    $region77: #{valid_efficientnet_forward.1} parent=1 // pred_fallthru
      _
    // Predicated region
    $region78: #{valid_efficientnet_forward.1} parent=1 // pred_check
      _
    $region79: #{valid_efficientnet_forward.1} parent=1 // pred_check_branch
      %6281 = sbr.rel (0) target = $region81
    $region80: #{valid_efficientnet_forward.1} parent=1 // pred_region
      %6283 = dma.done [#allocation4], 16
    $region81: #{valid_efficientnet_forward.1} parent=1 // pred_fallthru
      _
    %6284 = vsyncpa [#allocation4], 1

</llo_original>
